<compile_context>
chip_gen: v5e
topology: v5e:2x2
jax: 0.10.0
libtpu: 0.0.40
codegen_flags: <defaults>
</compile_context>

<pallas_src>
import jax
import jax.numpy as jnp
import numpy as np
from jax import lax
from jax.experimental import pallas as pl
from jax.experimental.pallas import tpu as pltpu

# ---------------- configuration (matches a small synthetic MegaNeRF) --------
BOUNDARY_MARGIN = 2.0      # > 1 -> soft inverse-distance weighting branch
CLUSTER_DIM_START = 0      # cluster_2d = False
XYZ_REAL = False           # experts consume the full input row
D_IN = 6                   # xyz(3) + 3 extra features
D_OUT = 4                  # rgb + sigma
HIDDEN = 32
N_EXPERTS = 4              # number of sub-modules / centroids
MAX_TILE_N = 4096          # points per grid step (lane axis), multiple of 128


# ---------------- Pallas kernel ----------------------------------------------
def mega_nerf_kernel(x_ref, cen_ref, w1_ref, w2b_ref, out_ref):
    x_aug = x_ref[...]                                 # (D_IN+1, TN) f32, last row = 1
    cen_t = cen_ref[...]                               # (dims, C)
    n_exp = cen_t.shape[1]
    ch = w1_ref.shape[0]                               # C * HIDDEN (= 128)
    hidden = ch // n_exp
    tn = x_aug.shape[1]

    xyz = x_aug[CLUSTER_DIM_START:3, :]                # (dims, TN)

    # Direct squared distances (statically unrolled over centroids): matches
    # the reference cdist numerics, no cancellation near the margin boundary.
    d2_rows = []
    for i in range(n_exp):
        diff = xyz - cen_t[:, i:i + 1]                 # (dims, TN) lane-broadcast
        d2_rows.append(jnp.sum(diff * diff, axis=0, keepdims=True))
    dist = jnp.sqrt(jnp.concatenate(d2_rows, axis=0))  # (C, TN)

    # Inverse-distance blend weights (same eps / mask as the reference).
    inv = 1.0 / (dist + 1e-8)
    min_d = jnp.min(dist, axis=0, keepdims=True)       # (1, TN)
    inv = jnp.where(dist > BOUNDARY_MARGIN * min_d, 0.0, inv)
    weights = inv / jnp.sum(inv, axis=0, keepdims=True)   # (C, TN)

    # Fused expert layer 1: one (C*H, D_IN+1) @ (D_IN+1, TN) MXU matmul.
    # (bias folded into the matmul via the ones row of x_aug)
    h = jnp.dot(w1_ref[...], x_aug, preferred_element_type=jnp.float32)  # (C*H, TN)

    # Fused ReLU + per-expert blend-weight scaling: sublane broadcast of the
    # (C, 1, TN) weights over each expert's H=32 rows -- no concatenate, no
    # duplicate (C*H, TN) buffer.
    hw = (jnp.maximum(h, 0.0).reshape(n_exp, hidden, tn)
          * weights[:, None, :]).reshape(ch, tn)       # (C*H, TN)

    # Fused weighted layer 2 + weighted bias (expert sum falls out of K).
    w2 = w2b_ref[:, :ch]                               # (D_OUT_PAD, C*H)
    b2 = w2b_ref[:, ch:]                               # (D_OUT_PAD, C)
    out = jnp.dot(w2, hw, preferred_element_type=jnp.float32)          # (D_OUT_PAD, TN)
    out = out + jnp.dot(b2, weights, preferred_element_type=jnp.float32)
    out_ref[...] = out


# ---------------- wrapper -----------------------------------------------------
def mega_nerf_forward(x, centroids, w1, b1, w2, b2, max_tile_n=MAX_TILE_N):
    n, d_in = x.shape
    c, _, hidden = w1.shape
    d_out = w2.shape[2]
    d_out_pad = ((d_out + 7) // 8) * 8                 # full-sublane output tile

    # Tile choice: big enough to amortize per-step overhead, small enough to
    # fit v5e's default scoped VMEM and keep >=2 grid steps on v7x for large N.
    n128 = ((n + 127) // 128) * 128
    tile_n = min(max_tile_n, n128)
    n_pad = ((n + tile_n - 1) // tile_n) * tile_n

    # Feature-major layout with the bias-ones row appended (K = D_IN+1).
    # Padded columns are all-ones: finite everywhere, discarded after slicing.
    # TODO(synk): for large N, emit x feature-major upstream to kill this copy.
    x_aug = jnp.ones((d_in + 1, n_pad), jnp.float32)
    x_aug = x_aug.at[:d_in, :n].set(jnp.transpose(x).astype(jnp.float32))

    cen_t = jnp.transpose(centroids[:, CLUSTER_DIM_START:]).astype(jnp.float32)
    dims = cen_t.shape[0]                              # (dims, C)

    # Stacked expert parameters for the fused matmuls.
    w1s = jnp.transpose(w1, (0, 2, 1)).reshape(c * hidden, d_in)       # (C*H, D_IN)
    w1_aug = jnp.concatenate(
        [w1s, b1.reshape(c * hidden, 1)], axis=1).astype(jnp.float32)  # (C*H, D_IN+1)

    w2s = jnp.transpose(w2, (2, 0, 1)).reshape(d_out, c * hidden)      # (D_OUT, C*H)
    b2t = jnp.transpose(b2)                                            # (D_OUT, C)
    w2b = jnp.concatenate([w2s, b2t], axis=1)                          # (D_OUT, C*H+C)
    w2b = jnp.pad(w2b, ((0, d_out_pad - d_out), (0, 0))).astype(jnp.float32)

    out_t = pl.pallas_call(
        mega_nerf_kernel,
        out_shape=jax.ShapeDtypeStruct((d_out_pad, n_pad), jnp.float32),
        grid_spec=pltpu.PrefetchScalarGridSpec(
            num_scalar_prefetch=0,
            grid=(n_pad // tile_n,),
            in_specs=[
                pl.BlockSpec((d_in + 1, tile_n), lambda i: (0, i)),
                pl.BlockSpec((dims, c), lambda i: (0, 0)),
                pl.BlockSpec((c * hidden, d_in + 1), lambda i: (0, 0)),
                pl.BlockSpec((d_out_pad, c * hidden + c), lambda i: (0, 0)),
            ],
            out_specs=pl.BlockSpec((d_out_pad, tile_n), lambda i: (0, i)),
        ),
        compiler_params=pltpu.CompilerParams(
            dimension_semantics=("parallel",),
            vmem_limit_bytes=32 * 1024 * 1024),
    )(x_aug, cen_t, w1_aug, w2b)

    return jnp.transpose(out_t[:d_out, :n])            # (N, D_OUT)


# ---------------- pure-JAX reference (for correctness check) ----------------
def mega_nerf_reference(x, centroids, w1, b1, w2, b2):
    xyz = x[:, CLUSTER_DIM_START:3]
    cen = centroids[:, CLUSTER_DIM_START:]
    dist = jnp.sqrt(jnp.sum((xyz[:, None, :] - cen[None, :, :]) ** 2, axis=-1))
    inv = 1.0 / (dist + 1e-8)
    min_d = jnp.min(dist, axis=1, keepdims=True)
    inv = jnp.where(dist > BOUNDARY_MARGIN * min_d, 0.0, inv)
    w = inv / jnp.sum(inv, axis=-1, keepdims=True)
    out = jnp.zeros((x.shape[0], D_OUT), jnp.float32)
    for i in range(N_EXPERTS):
        h = jnp.maximum(x @ w1[i] + b1[i], 0.0)
        o = h @ w2[i] + b2[i]
        out = out + w[:, i:i + 1] * o
    return out


# ---------------- main --------------------------------------------------------
if __name__ == "__main__":
    key = jax.random.PRNGKey(0)
    k_x, k_c, k_w1, k_b1, k_w2, k_b2 = jax.random.split(key, 6)

    N = 2000   # non-multiple of 128 on purpose: exercises the pad/slice path
    x = jax.random.normal(k_x, (N, D_IN), dtype=jnp.float32)
    centroids = jax.random.normal(k_c, (N_EXPERTS, 3), dtype=jnp.float32)

    # Deterministic synthetic sub-module (2-layer MLP) parameters.
    w1 = 0.2 * jax.random.normal(k_w1, (N_EXPERTS, D_IN, HIDDEN), dtype=jnp.float32)
    b1 = 0.1 * jax.random.normal(k_b1, (N_EXPERTS, HIDDEN), dtype=jnp.float32)
    w2 = 0.2 * jax.random.normal(k_w2, (N_EXPERTS, HIDDEN, D_OUT), dtype=jnp.float32)
    b2 = 0.1 * jax.random.normal(k_b2, (N_EXPERTS, D_OUT), dtype=jnp.float32)

    fwd = jax.jit(mega_nerf_forward)
    out = jax.block_until_ready(fwd(x, centroids, w1, b1, w2, b2))

    ref = jax.block_until_ready(mega_nerf_reference(x, centroids, w1, b1, w2, b2))
    np.testing.assert_allclose(np.asarray(out), np.asarray(ref), rtol=1e-3, atol=1e-3)

    print("KERNEL_OK")
</pallas_src>

<mosaic_0001>
module attributes {stable_mosaic.version = 11 : i64} {
  func.func @mega_nerf_kernel(%arg0: i32, %arg1: memref<7x2048xf32, #tpu.memory_space<vmem>>, %arg2: memref<3x4xf32, #tpu.memory_space<vmem>>, %arg3: memref<128x7xf32, #tpu.memory_space<vmem>>, %arg4: memref<8x132xf32, #tpu.memory_space<vmem>>, %arg5: memref<8x2048xf32, #tpu.memory_space<vmem>>) attributes {dimension_semantics = [#tpu.dimension_semantics<parallel>], iteration_bounds = array<i64: 1>, scalar_prefetch = 0 : i64, scratch_operands = 0 : i64, tpu.core_type = #tpu.core_type<tc>, window_params = [{transform_indices = @transform_0, window_bounds = array<i64: 7, 2048>}, {pipeline_mode = #tpu.pipeline_mode<synchronous>, transform_indices = @transform_1, window_bounds = array<i64: 3, 4>}, {pipeline_mode = #tpu.pipeline_mode<synchronous>, transform_indices = @transform_2, window_bounds = array<i64: 128, 7>}, {pipeline_mode = #tpu.pipeline_mode<synchronous>, transform_indices = @transform_3, window_bounds = array<i64: 8, 132>}, {transform_indices = @transform_4, window_bounds = array<i64: 8, 2048>}]} {
    %c0 = arith.constant 0 : index
    %c0_0 = arith.constant 0 : index
    %0 = vector.load %arg1[%c0, %c0_0] : memref<7x2048xf32, #tpu.memory_space<vmem>>, vector<7x2048xf32>
    %c0_1 = arith.constant 0 : index
    %c0_2 = arith.constant 0 : index
    %1 = vector.load %arg2[%c0_1, %c0_2] : memref<3x4xf32, #tpu.memory_space<vmem>>, vector<3x4xf32>
    %2 = vector.extract_strided_slice %0 {offsets = [0, 0], sizes = [3, 2048], strides = [1, 1]} : vector<7x2048xf32> to vector<3x2048xf32>
    %3 = vector.extract_strided_slice %1 {offsets = [0, 0], sizes = [3, 1], strides = [1, 1]} : vector<3x4xf32> to vector<3x1xf32>
    %4 = vector.broadcast %3 : vector<3x1xf32> to vector<3x2048xf32>
    %5 = arith.subf %2, %4 : vector<3x2048xf32>
    %6 = arith.mulf %5, %5 : vector<3x2048xf32>
    %cst = arith.constant dense<0.000000e+00> : vector<2048xf32>
    %7 = vector.multi_reduction <add>, %6, %cst [0] : vector<3x2048xf32> to vector<2048xf32>
    %8 = vector.shape_cast %7 : vector<2048xf32> to vector<1x2048xf32>
    %9 = vector.extract_strided_slice %1 {offsets = [0, 1], sizes = [3, 1], strides = [1, 1]} : vector<3x4xf32> to vector<3x1xf32>
    %10 = vector.broadcast %9 : vector<3x1xf32> to vector<3x2048xf32>
    %11 = arith.subf %2, %10 : vector<3x2048xf32>
    %12 = arith.mulf %11, %11 : vector<3x2048xf32>
    %cst_3 = arith.constant dense<0.000000e+00> : vector<2048xf32>
    %13 = vector.multi_reduction <add>, %12, %cst_3 [0] : vector<3x2048xf32> to vector<2048xf32>
    %14 = vector.shape_cast %13 : vector<2048xf32> to vector<1x2048xf32>
    %15 = vector.extract_strided_slice %1 {offsets = [0, 2], sizes = [3, 1], strides = [1, 1]} : vector<3x4xf32> to vector<3x1xf32>
    %16 = vector.broadcast %15 : vector<3x1xf32> to vector<3x2048xf32>
    %17 = arith.subf %2, %16 : vector<3x2048xf32>
    %18 = arith.mulf %17, %17 : vector<3x2048xf32>
    %cst_4 = arith.constant dense<0.000000e+00> : vector<2048xf32>
    %19 = vector.multi_reduction <add>, %18, %cst_4 [0] : vector<3x2048xf32> to vector<2048xf32>
    %20 = vector.shape_cast %19 : vector<2048xf32> to vector<1x2048xf32>
    %21 = vector.extract_strided_slice %1 {offsets = [0, 3], sizes = [3, 1], strides = [1, 1]} : vector<3x4xf32> to vector<3x1xf32>
    %22 = vector.broadcast %21 : vector<3x1xf32> to vector<3x2048xf32>
    %23 = arith.subf %2, %22 : vector<3x2048xf32>
    %24 = arith.mulf %23, %23 : vector<3x2048xf32>
    %cst_5 = arith.constant dense<0.000000e+00> : vector<2048xf32>
    %25 = vector.multi_reduction <add>, %24, %cst_5 [0] : vector<3x2048xf32> to vector<2048xf32>
    %26 = vector.shape_cast %25 : vector<2048xf32> to vector<1x2048xf32>
    %27 = tpu.concatenate %8, %14, %20, %26 in 0 : vector<1x2048xf32>, vector<1x2048xf32>, vector<1x2048xf32>, vector<1x2048xf32> -> vector<4x2048xf32>
    %28 = math.sqrt %27 : vector<4x2048xf32>
    %cst_6 = arith.constant 9.99999993E-9 : f32
    %29 = vector.broadcast %cst_6 : f32 to vector<4x2048xf32>
    %30 = arith.addf %28, %29 : vector<4x2048xf32>
    %cst_7 = arith.constant 1.000000e+00 : f32
    %31 = vector.broadcast %cst_7 : f32 to vector<4x2048xf32>
    %32 = arith.divf %31, %30 : vector<4x2048xf32>
    %cst_8 = arith.constant dense<0x7F800000> : vector<2048xf32>
    %33 = vector.multi_reduction <minimumf>, %28, %cst_8 [0] : vector<4x2048xf32> to vector<2048xf32>
    %34 = vector.shape_cast %33 : vector<2048xf32> to vector<1x2048xf32>
    %cst_9 = arith.constant 2.000000e+00 : f32
    %35 = vector.broadcast %cst_9 : f32 to vector<1x2048xf32>
    %36 = arith.mulf %35, %34 : vector<1x2048xf32>
    %37 = vector.broadcast %36 : vector<1x2048xf32> to vector<4x2048xf32>
    %38 = arith.cmpf ogt, %28, %37 : vector<4x2048xf32>
    %cst_10 = arith.constant 0.000000e+00 : f32
    %39 = vector.broadcast %cst_10 : f32 to vector<4x2048xf32>
    %40 = arith.select %38, %39, %32 : vector<4x2048xi1>, vector<4x2048xf32>
    %cst_11 = arith.constant dense<0.000000e+00> : vector<2048xf32>
    %41 = vector.multi_reduction <add>, %40, %cst_11 [0] : vector<4x2048xf32> to vector<2048xf32>
    %42 = vector.shape_cast %41 : vector<2048xf32> to vector<1x2048xf32>
    %43 = vector.broadcast %42 : vector<1x2048xf32> to vector<4x2048xf32>
    %44 = arith.divf %40, %43 : vector<4x2048xf32>
    %c0_12 = arith.constant 0 : index
    %c0_13 = arith.constant 0 : index
    %45 = vector.load %arg3[%c0_12, %c0_13] : memref<128x7xf32, #tpu.memory_space<vmem>>, vector<128x7xf32>
    %cst_14 = arith.constant dense<0.000000e+00> : vector<128x2048xf32>
    %46 = tpu.matmul %45, %0, %cst_14 {dimension_numbers = #tpu.dot_dimension_numbers<[1], [0], [0], [1], [0, 0, 1, 1], [], []>} : vector<128x7xf32>, vector<7x2048xf32>, vector<128x2048xf32> -> vector<128x2048xf32>
    %cst_15 = arith.constant 0.000000e+00 : f32
    %47 = vector.broadcast %cst_15 : f32 to vector<128x2048xf32>
    %48 = arith.maximumf %46, %47 : vector<128x2048xf32>
    %49 = vector.shape_cast %48 : vector<128x2048xf32> to vector<4x32x2048xf32>
    %50 = vector.shape_cast %44 : vector<4x2048xf32> to vector<4x1x2048xf32>
    %51 = vector.broadcast %50 : vector<4x1x2048xf32> to vector<4x32x2048xf32>
    %52 = arith.mulf %49, %51 : vector<4x32x2048xf32>
    %53 = vector.shape_cast %52 : vector<4x32x2048xf32> to vector<128x2048xf32>
    %c0_16 = arith.constant 0 : index
    %c0_17 = arith.constant 0 : index
    %54 = vector.load %arg4[%c0_16, %c0_17] : memref<8x132xf32, #tpu.memory_space<vmem>>, vector<8x128xf32>
    %c0_18 = arith.constant 0 : index
    %c128 = arith.constant 128 : index
    %55 = vector.load %arg4[%c0_18, %c128] : memref<8x132xf32, #tpu.memory_space<vmem>>, vector<8x4xf32>
    %cst_19 = arith.constant dense<0.000000e+00> : vector<8x2048xf32>
    %56 = tpu.matmul %54, %53, %cst_19 {dimension_numbers = #tpu.dot_dimension_numbers<[1], [0], [0], [1], [0, 0, 1, 1], [], []>} : vector<8x128xf32>, vector<128x2048xf32>, vector<8x2048xf32> -> vector<8x2048xf32>
    %cst_20 = arith.constant dense<0.000000e+00> : vector<8x2048xf32>
    %57 = tpu.matmul %55, %44, %cst_20 {dimension_numbers = #tpu.dot_dimension_numbers<[1], [0], [0], [1], [0, 0, 1, 1], [], []>} : vector<8x4xf32>, vector<4x2048xf32>, vector<8x2048xf32> -> vector<8x2048xf32>
    %58 = arith.addf %56, %57 : vector<8x2048xf32>
    %c0_21 = arith.constant 0 : index
    %c0_22 = arith.constant 0 : index
    %59 = vector.load %arg5[%c0_21, %c0_22] : memref<8x2048xf32, #tpu.memory_space<vmem>>, vector<8x2048xf32>
    tpu.vector_store %arg5[%c0_21, %c0_22], %58 {strides = array<i32>} : memref<8x2048xf32, #tpu.memory_space<vmem>>, vector<8x2048xf32>,
    return
  }
  func.func @transform_0(%arg0: i32) -> (i32, i32) {
    %c0_i32 = arith.constant 0 : i32
    %c0_i32_0 = arith.constant 0 : i32
    return %c0_i32, %arg0 : i32, i32
  }
  func.func @transform_1(%arg0: i32) -> (i32, i32) {
    %c0_i32 = arith.constant 0 : i32
    %c0_i32_0 = arith.constant 0 : i32
    %c0_i32_1 = arith.constant 0 : i32
    return %c0_i32, %c0_i32_0 : i32, i32
  }
  func.func @transform_2(%arg0: i32) -> (i32, i32) {
    %c0_i32 = arith.constant 0 : i32
    %c0_i32_0 = arith.constant 0 : i32
    %c0_i32_1 = arith.constant 0 : i32
    return %c0_i32, %c0_i32_0 : i32, i32
  }
  func.func @transform_3(%arg0: i32) -> (i32, i32) {
    %c0_i32 = arith.constant 0 : i32
    %c0_i32_0 = arith.constant 0 : i32
    %c0_i32_1 = arith.constant 0 : i32
    return %c0_i32, %c0_i32_0 : i32, i32
  }
  func.func @transform_4(%arg0: i32) -> (i32, i32) {
    %c0_i32 = arith.constant 0 : i32
    %c0_i32_0 = arith.constant 0 : i32
    return %c0_i32, %arg0 : i32, i32
  }
}

</mosaic_0001>

<llo_original>
// kernel: mega_nerf_forward.1
$region0: #{mega_nerf_forward.1}
  #allocation0 [shape = 'u32[]', space=smem, size = 0x4, offset = 0x4, fixed_abs, tag = 'smem constant byte address 0x4 - core index']
  #allocation1 [shape = 'u32[72,128]{1,0:T(1,128)}', space=vmem, size = 0x9000, scoped, tag = 'internal scratch']
  %s0 = inlined_call_operand.vmem [shape: f32[7,2048], index: 0, kind: input, shape index: {}]
  %s1 = inlined_call_operand.vmem [shape: f32[3,4], index: 1, kind: input, shape index: {}]
  %s2 = inlined_call_operand.vmem [shape: f32[128,7], index: 2, kind: input, shape index: {}]
  %s3 = inlined_call_operand.vmem [shape: f32[8,132], index: 3, kind: input, shape index: {}]
  %s4 = inlined_call_operand.vmem [shape: f32[8,2048], index: 4, kind: output, shape index: {}]
  %s5 = sld [smem:[#allocation0]]
  $region26: #{mega_nerf_forward.1} parent=0
    _
  %s7 = ssub.s32 1, %s5
  %s8 = scalar_select 0, %s7, %s5
  // Predicated region
  $region2: #{mega_nerf_forward.1} parent=0 // pred_check
    _
  $region3: #{mega_nerf_forward.1} parent=0 // pred_check_branch
    %10 = sbr.rel (0) target = $region5
  $region4: #{mega_nerf_forward.1} parent=0 // pred_region
    _
  $region5: #{mega_nerf_forward.1} parent=0 // pred_fallthru
    _
  // Predicated region
  $region6: #{mega_nerf_forward.1} parent=0 // pred_check
    _
  $region7: #{mega_nerf_forward.1} parent=0 // pred_check_branch
    %12 = sbr.rel (0) target = $region9
  $region8: #{mega_nerf_forward.1} parent=0 // pred_region
    _
  $region9: #{mega_nerf_forward.1} parent=0 // pred_fallthru
    _
  // Predicated region
  $region10: #{mega_nerf_forward.1} parent=0 // pred_check
    _
  $region11: #{mega_nerf_forward.1} parent=0 // pred_check_branch
    %14 = sbr.rel (0) target = $region13
  $region12: #{mega_nerf_forward.1} parent=0 // pred_region
    _
  $region13: #{mega_nerf_forward.1} parent=0 // pred_fallthru
    _
  // Predicated region
  $region14: #{mega_nerf_forward.1} parent=0 // pred_check
    _
  $region15: #{mega_nerf_forward.1} parent=0 // pred_check_branch
    %16 = sbr.rel (0) target = $region17
  $region16: #{mega_nerf_forward.1} parent=0 // pred_region
    _
  $region17: #{mega_nerf_forward.1} parent=0 // pred_fallthru
    _
  %v17 = vld [vmem:[%s0] sm:$0x7f]
  %v18 = vld [vmem:[%s0 + $0x8] sm:$0x7f]
  %v19 = vld [vmem:[%s0 + $0x10] sm:$0x7f]
  %v20 = vld [vmem:[%s0 + $0x18] sm:$0x7f]
  %v21 = vld [vmem:[%s0 + $0x20] sm:$0x7f]
  %v22 = vld [vmem:[%s0 + $0x28] sm:$0x7f]
  %v23 = vld [vmem:[%s0 + $0x30] sm:$0x7f]
  %v24 = vld [vmem:[%s0 + $0x38] sm:$0x7f]
  %v25 = vld [vmem:[%s0 + $0x40] sm:$0x7f]
  %v26 = vld [vmem:[%s0 + $0x48] sm:$0x7f]
  %v27 = vld [vmem:[%s0 + $0x50] sm:$0x7f]
  %v28 = vld [vmem:[%s0 + $0x58] sm:$0x7f]
  %v29 = vld [vmem:[%s0 + $0x60] sm:$0x7f]
  %v30 = vld [vmem:[%s0 + $0x68] sm:$0x7f]
  %v31 = vld [vmem:[%s0 + $0x70] sm:$0x7f]
  %v32 = vld [vmem:[%s0 + $0x78] sm:$0x7f]
  %v33 = vld [vmem:[%s1] sm:$0x7]
  %35 = vset.pattern.permute.xlu0 0
  %36 = vperm.xlu0 %35, %v33
  %v37 = vpop.permute.xlu0 %36
  %v39 = vsub.f32 %v17, %v37
  %v40 = vsub.f32 %v18, %v37
  %v41 = vsub.f32 %v19, %v37
  %v42 = vsub.f32 %v20, %v37
  %v43 = vsub.f32 %v21, %v37
  %v44 = vsub.f32 %v22, %v37
  %v45 = vsub.f32 %v23, %v37
  %v46 = vsub.f32 %v24, %v37
  %v47 = vsub.f32 %v25, %v37
  %v48 = vsub.f32 %v26, %v37
  %v49 = vsub.f32 %v27, %v37
  %v50 = vsub.f32 %v28, %v37
  %v51 = vsub.f32 %v29, %v37
  %v52 = vsub.f32 %v30, %v37
  %v53 = vsub.f32 %v31, %v37
  %v54 = vsub.f32 %v32, %v37
  %v55 = vmul.f32 %v39, %v39
  %v56 = vmul.f32 %v40, %v40
  %v57 = vmul.f32 %v41, %v41
  %v58 = vmul.f32 %v42, %v42
  %v59 = vmul.f32 %v43, %v43
  %v60 = vmul.f32 %v44, %v44
  %v61 = vmul.f32 %v45, %v45
  %v62 = vmul.f32 %v46, %v46
  %v63 = vmul.f32 %v47, %v47
  %v64 = vmul.f32 %v48, %v48
  %v65 = vmul.f32 %v49, %v49
  %v66 = vmul.f32 %v50, %v50
  %v67 = vmul.f32 %v51, %v51
  %v68 = vmul.f32 %v52, %v52
  %v69 = vmul.f32 %v53, %v53
  %v70 = vmul.f32 %v54, %v54
  %vm71 = vcmask 1042432
  %v72 = vsel %vm71, %v55, 0.0
  %v73 = vrot.slane %v72, 4
  %v74 = vadd.f32 %v72, %v73
  %v75 = vrot.slane %v74, 2
  %v76 = vadd.f32 %v74, %v75
  %v77 = vrot.slane %v76, 1
  %v78 = vadd.f32 %v76, %v77
  %v79 = vsel %vm71, %v56, 0.0
  %v80 = vrot.slane %v79, 4
  %v81 = vadd.f32 %v79, %v80
  %v82 = vrot.slane %v81, 2
  %v83 = vadd.f32 %v81, %v82
  %v84 = vrot.slane %v83, 1
  %v85 = vadd.f32 %v83, %v84
  %v86 = vsel %vm71, %v57, 0.0
  %v87 = vrot.slane %v86, 4
  %v88 = vadd.f32 %v86, %v87
  %v89 = vrot.slane %v88, 2
  %v90 = vadd.f32 %v88, %v89
  %v91 = vrot.slane %v90, 1
  %v92 = vadd.f32 %v90, %v91
  %v93 = vsel %vm71, %v58, 0.0
  %v94 = vrot.slane %v93, 4
  %v95 = vadd.f32 %v93, %v94
  %v96 = vrot.slane %v95, 2
  %v97 = vadd.f32 %v95, %v96
  %v98 = vrot.slane %v97, 1
  %v99 = vadd.f32 %v97, %v98
  %v100 = vsel %vm71, %v59, 0.0
  %v101 = vrot.slane %v100, 4
  %v102 = vadd.f32 %v100, %v101
  %v103 = vrot.slane %v102, 2
  %v104 = vadd.f32 %v102, %v103
  %v105 = vrot.slane %v104, 1
  %v106 = vadd.f32 %v104, %v105
  %v107 = vsel %vm71, %v60, 0.0
  %v108 = vrot.slane %v107, 4
  %v109 = vadd.f32 %v107, %v108
  %v110 = vrot.slane %v109, 2
  %v111 = vadd.f32 %v109, %v110
  %v112 = vrot.slane %v111, 1
  %v113 = vadd.f32 %v111, %v112
  %v114 = vsel %vm71, %v61, 0.0
  %v115 = vrot.slane %v114, 4
  %v116 = vadd.f32 %v114, %v115
  %v117 = vrot.slane %v116, 2
  %v118 = vadd.f32 %v116, %v117
  %v119 = vrot.slane %v118, 1
  %v120 = vadd.f32 %v118, %v119
  %v121 = vsel %vm71, %v62, 0.0
  %v122 = vrot.slane %v121, 4
  %v123 = vadd.f32 %v121, %v122
  %v124 = vrot.slane %v123, 2
  %v125 = vadd.f32 %v123, %v124
  %v126 = vrot.slane %v125, 1
  %v127 = vadd.f32 %v125, %v126
  %v128 = vsel %vm71, %v63, 0.0
  %v129 = vrot.slane %v128, 4
  %v130 = vadd.f32 %v128, %v129
  %v131 = vrot.slane %v130, 2
  %v132 = vadd.f32 %v130, %v131
  %v133 = vrot.slane %v132, 1
  %v134 = vadd.f32 %v132, %v133
  %v135 = vsel %vm71, %v64, 0.0
  %v136 = vrot.slane %v135, 4
  %v137 = vadd.f32 %v135, %v136
  %v138 = vrot.slane %v137, 2
  %v139 = vadd.f32 %v137, %v138
  %v140 = vrot.slane %v139, 1
  %v141 = vadd.f32 %v139, %v140
  %v142 = vsel %vm71, %v65, 0.0
  %v143 = vrot.slane %v142, 4
  %v144 = vadd.f32 %v142, %v143
  %v145 = vrot.slane %v144, 2
  %v146 = vadd.f32 %v144, %v145
  %v147 = vrot.slane %v146, 1
  %v148 = vadd.f32 %v146, %v147
  %v149 = vsel %vm71, %v66, 0.0
  %v150 = vrot.slane %v149, 4
  %v151 = vadd.f32 %v149, %v150
  %v152 = vrot.slane %v151, 2
  %v153 = vadd.f32 %v151, %v152
  %v154 = vrot.slane %v153, 1
  %v155 = vadd.f32 %v153, %v154
  %v156 = vsel %vm71, %v67, 0.0
  %v157 = vrot.slane %v156, 4
  %v158 = vadd.f32 %v156, %v157
  %v159 = vrot.slane %v158, 2
  %v160 = vadd.f32 %v158, %v159
  %v161 = vrot.slane %v160, 1
  %v162 = vadd.f32 %v160, %v161
  %v163 = vsel %vm71, %v68, 0.0
  %v164 = vrot.slane %v163, 4
  %v165 = vadd.f32 %v163, %v164
  %v166 = vrot.slane %v165, 2
  %v167 = vadd.f32 %v165, %v166
  %v168 = vrot.slane %v167, 1
  %v169 = vadd.f32 %v167, %v168
  %v170 = vsel %vm71, %v69, 0.0
  %v171 = vrot.slane %v170, 4
  %v172 = vadd.f32 %v170, %v171
  %v173 = vrot.slane %v172, 2
  %v174 = vadd.f32 %v172, %v173
  %v175 = vrot.slane %v174, 1
  %v176 = vadd.f32 %v174, %v175
  %v177 = vsel %vm71, %v70, 0.0
  %v178 = vrot.slane %v177, 4
  %v179 = vadd.f32 %v177, %v178
  %v180 = vrot.slane %v179, 2
  %v181 = vadd.f32 %v179, %v180
  %v182 = vrot.slane %v181, 1
  %v183 = vadd.f32 %v181, %v182
  %184 = vset.pattern.permute.xlu0 1
  %185 = vperm.xlu0 %184, %v33
  %v186 = vpop.permute.xlu0 %185
  %v188 = vsub.f32 %v17, %v186
  %v189 = vsub.f32 %v18, %v186
  %v190 = vsub.f32 %v19, %v186
  %v191 = vsub.f32 %v20, %v186
  %v192 = vsub.f32 %v21, %v186
  %v193 = vsub.f32 %v22, %v186
  %v194 = vsub.f32 %v23, %v186
  %v195 = vsub.f32 %v24, %v186
  %v196 = vsub.f32 %v25, %v186
  %v197 = vsub.f32 %v26, %v186
  %v198 = vsub.f32 %v27, %v186
  %v199 = vsub.f32 %v28, %v186
  %v200 = vsub.f32 %v29, %v186
  %v201 = vsub.f32 %v30, %v186
  %v202 = vsub.f32 %v31, %v186
  %v203 = vsub.f32 %v32, %v186
  %v204 = vmul.f32 %v188, %v188
  %v205 = vmul.f32 %v189, %v189
  %v206 = vmul.f32 %v190, %v190
  %v207 = vmul.f32 %v191, %v191
  %v208 = vmul.f32 %v192, %v192
  %v209 = vmul.f32 %v193, %v193
  %v210 = vmul.f32 %v194, %v194
  %v211 = vmul.f32 %v195, %v195
  %v212 = vmul.f32 %v196, %v196
  %v213 = vmul.f32 %v197, %v197
  %v214 = vmul.f32 %v198, %v198
  %v215 = vmul.f32 %v199, %v199
  %v216 = vmul.f32 %v200, %v200
  %v217 = vmul.f32 %v201, %v201
  %v218 = vmul.f32 %v202, %v202
  %v219 = vmul.f32 %v203, %v203
  %v220 = vsel %vm71, %v204, 0.0
  %v221 = vrot.slane %v220, 4
  %v222 = vadd.f32 %v220, %v221
  %v223 = vrot.slane %v222, 2
  %v224 = vadd.f32 %v222, %v223
  %v225 = vrot.slane %v224, 1
  %v226 = vadd.f32 %v224, %v225
  %v227 = vsel %vm71, %v205, 0.0
  %v228 = vrot.slane %v227, 4
  %v229 = vadd.f32 %v227, %v228
  %v230 = vrot.slane %v229, 2
  %v231 = vadd.f32 %v229, %v230
  %v232 = vrot.slane %v231, 1
  %v233 = vadd.f32 %v231, %v232
  %v234 = vsel %vm71, %v206, 0.0
  %v235 = vrot.slane %v234, 4
  %v236 = vadd.f32 %v234, %v235
  %v237 = vrot.slane %v236, 2
  %v238 = vadd.f32 %v236, %v237
  %v239 = vrot.slane %v238, 1
  %v240 = vadd.f32 %v238, %v239
  %v241 = vsel %vm71, %v207, 0.0
  %v242 = vrot.slane %v241, 4
  %v243 = vadd.f32 %v241, %v242
  %v244 = vrot.slane %v243, 2
  %v245 = vadd.f32 %v243, %v244
  %v246 = vrot.slane %v245, 1
  %v247 = vadd.f32 %v245, %v246
  %v248 = vsel %vm71, %v208, 0.0
  %v249 = vrot.slane %v248, 4
  %v250 = vadd.f32 %v248, %v249
  %v251 = vrot.slane %v250, 2
  %v252 = vadd.f32 %v250, %v251
  %v253 = vrot.slane %v252, 1
  %v254 = vadd.f32 %v252, %v253
  %v255 = vsel %vm71, %v209, 0.0
  %v256 = vrot.slane %v255, 4
  %v257 = vadd.f32 %v255, %v256
  %v258 = vrot.slane %v257, 2
  %v259 = vadd.f32 %v257, %v258
  %v260 = vrot.slane %v259, 1
  %v261 = vadd.f32 %v259, %v260
  %v262 = vsel %vm71, %v210, 0.0
  %v263 = vrot.slane %v262, 4
  %v264 = vadd.f32 %v262, %v263
  %v265 = vrot.slane %v264, 2
  %v266 = vadd.f32 %v264, %v265
  %v267 = vrot.slane %v266, 1
  %v268 = vadd.f32 %v266, %v267
  %v269 = vsel %vm71, %v211, 0.0
  %v270 = vrot.slane %v269, 4
  %v271 = vadd.f32 %v269, %v270
  %v272 = vrot.slane %v271, 2
  %v273 = vadd.f32 %v271, %v272
  %v274 = vrot.slane %v273, 1
  %v275 = vadd.f32 %v273, %v274
  %v276 = vsel %vm71, %v212, 0.0
  %v277 = vrot.slane %v276, 4
  %v278 = vadd.f32 %v276, %v277
  %v279 = vrot.slane %v278, 2
  %v280 = vadd.f32 %v278, %v279
  %v281 = vrot.slane %v280, 1
  %v282 = vadd.f32 %v280, %v281
  %v283 = vsel %vm71, %v213, 0.0
  %v284 = vrot.slane %v283, 4
  %v285 = vadd.f32 %v283, %v284
  %v286 = vrot.slane %v285, 2
  %v287 = vadd.f32 %v285, %v286
  %v288 = vrot.slane %v287, 1
  %v289 = vadd.f32 %v287, %v288
  %v290 = vsel %vm71, %v214, 0.0
  %v291 = vrot.slane %v290, 4
  %v292 = vadd.f32 %v290, %v291
  %v293 = vrot.slane %v292, 2
  %v294 = vadd.f32 %v292, %v293
  %v295 = vrot.slane %v294, 1
  %v296 = vadd.f32 %v294, %v295
  %v297 = vsel %vm71, %v215, 0.0
  %v298 = vrot.slane %v297, 4
  %v299 = vadd.f32 %v297, %v298
  %v300 = vrot.slane %v299, 2
  %v301 = vadd.f32 %v299, %v300
  %v302 = vrot.slane %v301, 1
  %v303 = vadd.f32 %v301, %v302
  %v304 = vsel %vm71, %v216, 0.0
  %v305 = vrot.slane %v304, 4
  %v306 = vadd.f32 %v304, %v305
  %v307 = vrot.slane %v306, 2
  %v308 = vadd.f32 %v306, %v307
  %v309 = vrot.slane %v308, 1
  %v310 = vadd.f32 %v308, %v309
  %v311 = vsel %vm71, %v217, 0.0
  %v312 = vrot.slane %v311, 4
  %v313 = vadd.f32 %v311, %v312
  %v314 = vrot.slane %v313, 2
  %v315 = vadd.f32 %v313, %v314
  %v316 = vrot.slane %v315, 1
  %v317 = vadd.f32 %v315, %v316
  %v318 = vsel %vm71, %v218, 0.0
  %v319 = vrot.slane %v318, 4
  %v320 = vadd.f32 %v318, %v319
  %v321 = vrot.slane %v320, 2
  %v322 = vadd.f32 %v320, %v321
  %v323 = vrot.slane %v322, 1
  %v324 = vadd.f32 %v322, %v323
  %v325 = vsel %vm71, %v219, 0.0
  %v326 = vrot.slane %v325, 4
  %v327 = vadd.f32 %v325, %v326
  %v328 = vrot.slane %v327, 2
  %v329 = vadd.f32 %v327, %v328
  %v330 = vrot.slane %v329, 1
  %v331 = vadd.f32 %v329, %v330
  %332 = vset.pattern.permute.xlu0 2
  %333 = vperm.xlu0 %332, %v33
  %v334 = vpop.permute.xlu0 %333
  %v336 = vsub.f32 %v17, %v334
  %v337 = vsub.f32 %v18, %v334
  %v338 = vsub.f32 %v19, %v334
  %v339 = vsub.f32 %v20, %v334
  %v340 = vsub.f32 %v21, %v334
  %v341 = vsub.f32 %v22, %v334
  %v342 = vsub.f32 %v23, %v334
  %v343 = vsub.f32 %v24, %v334
  %v344 = vsub.f32 %v25, %v334
  %v345 = vsub.f32 %v26, %v334
  %v346 = vsub.f32 %v27, %v334
  %v347 = vsub.f32 %v28, %v334
  %v348 = vsub.f32 %v29, %v334
  %v349 = vsub.f32 %v30, %v334
  %v350 = vsub.f32 %v31, %v334
  %v351 = vsub.f32 %v32, %v334
  %v352 = vmul.f32 %v336, %v336
  %v353 = vmul.f32 %v337, %v337
  %v354 = vmul.f32 %v338, %v338
  %v355 = vmul.f32 %v339, %v339
  %v356 = vmul.f32 %v340, %v340
  %v357 = vmul.f32 %v341, %v341
  %v358 = vmul.f32 %v342, %v342
  %v359 = vmul.f32 %v343, %v343
  %v360 = vmul.f32 %v344, %v344
  %v361 = vmul.f32 %v345, %v345
  %v362 = vmul.f32 %v346, %v346
  %v363 = vmul.f32 %v347, %v347
  %v364 = vmul.f32 %v348, %v348
  %v365 = vmul.f32 %v349, %v349
  %v366 = vmul.f32 %v350, %v350
  %v367 = vmul.f32 %v351, %v351
  %v368 = vsel %vm71, %v352, 0.0
  %v369 = vrot.slane %v368, 4
  %v370 = vadd.f32 %v368, %v369
  %v371 = vrot.slane %v370, 2
  %v372 = vadd.f32 %v370, %v371
  %v373 = vrot.slane %v372, 1
  %v374 = vadd.f32 %v372, %v373
  %v375 = vsel %vm71, %v353, 0.0
  %v376 = vrot.slane %v375, 4
  %v377 = vadd.f32 %v375, %v376
  %v378 = vrot.slane %v377, 2
  %v379 = vadd.f32 %v377, %v378
  %v380 = vrot.slane %v379, 1
  %v381 = vadd.f32 %v379, %v380
  %v382 = vsel %vm71, %v354, 0.0
  %v383 = vrot.slane %v382, 4
  %v384 = vadd.f32 %v382, %v383
  %v385 = vrot.slane %v384, 2
  %v386 = vadd.f32 %v384, %v385
  %v387 = vrot.slane %v386, 1
  %v388 = vadd.f32 %v386, %v387
  %v389 = vsel %vm71, %v355, 0.0
  %v390 = vrot.slane %v389, 4
  %v391 = vadd.f32 %v389, %v390
  %v392 = vrot.slane %v391, 2
  %v393 = vadd.f32 %v391, %v392
  %v394 = vrot.slane %v393, 1
  %v395 = vadd.f32 %v393, %v394
  %v396 = vsel %vm71, %v356, 0.0
  %v397 = vrot.slane %v396, 4
  %v398 = vadd.f32 %v396, %v397
  %v399 = vrot.slane %v398, 2
  %v400 = vadd.f32 %v398, %v399
  %v401 = vrot.slane %v400, 1
  %v402 = vadd.f32 %v400, %v401
  %v403 = vsel %vm71, %v357, 0.0
  %v404 = vrot.slane %v403, 4
  %v405 = vadd.f32 %v403, %v404
  %v406 = vrot.slane %v405, 2
  %v407 = vadd.f32 %v405, %v406
  %v408 = vrot.slane %v407, 1
  %v409 = vadd.f32 %v407, %v408
  %v410 = vsel %vm71, %v358, 0.0
  %v411 = vrot.slane %v410, 4
  %v412 = vadd.f32 %v410, %v411
  %v413 = vrot.slane %v412, 2
  %v414 = vadd.f32 %v412, %v413
  %v415 = vrot.slane %v414, 1
  %v416 = vadd.f32 %v414, %v415
  %v417 = vsel %vm71, %v359, 0.0
  %v418 = vrot.slane %v417, 4
  %v419 = vadd.f32 %v417, %v418
  %v420 = vrot.slane %v419, 2
  %v421 = vadd.f32 %v419, %v420
  %v422 = vrot.slane %v421, 1
  %v423 = vadd.f32 %v421, %v422
  %v424 = vsel %vm71, %v360, 0.0
  %v425 = vrot.slane %v424, 4
  %v426 = vadd.f32 %v424, %v425
  %v427 = vrot.slane %v426, 2
  %v428 = vadd.f32 %v426, %v427
  %v429 = vrot.slane %v428, 1
  %v430 = vadd.f32 %v428, %v429
  %v431 = vsel %vm71, %v361, 0.0
  %v432 = vrot.slane %v431, 4
  %v433 = vadd.f32 %v431, %v432
  %v434 = vrot.slane %v433, 2
  %v435 = vadd.f32 %v433, %v434
  %v436 = vrot.slane %v435, 1
  %v437 = vadd.f32 %v435, %v436
  %v438 = vsel %vm71, %v362, 0.0
  %v439 = vrot.slane %v438, 4
  %v440 = vadd.f32 %v438, %v439
  %v441 = vrot.slane %v440, 2
  %v442 = vadd.f32 %v440, %v441
  %v443 = vrot.slane %v442, 1
  %v444 = vadd.f32 %v442, %v443
  %v445 = vsel %vm71, %v363, 0.0
  %v446 = vrot.slane %v445, 4
  %v447 = vadd.f32 %v445, %v446
  %v448 = vrot.slane %v447, 2
  %v449 = vadd.f32 %v447, %v448
  %v450 = vrot.slane %v449, 1
  %v451 = vadd.f32 %v449, %v450
  %v452 = vsel %vm71, %v364, 0.0
  %v453 = vrot.slane %v452, 4
  %v454 = vadd.f32 %v452, %v453
  %v455 = vrot.slane %v454, 2
  %v456 = vadd.f32 %v454, %v455
  %v457 = vrot.slane %v456, 1
  %v458 = vadd.f32 %v456, %v457
  %v459 = vsel %vm71, %v365, 0.0
  %v460 = vrot.slane %v459, 4
  %v461 = vadd.f32 %v459, %v460
  %v462 = vrot.slane %v461, 2
  %v463 = vadd.f32 %v461, %v462
  %v464 = vrot.slane %v463, 1
  %v465 = vadd.f32 %v463, %v464
  %v466 = vsel %vm71, %v366, 0.0
  %v467 = vrot.slane %v466, 4
  %v468 = vadd.f32 %v466, %v467
  %v469 = vrot.slane %v468, 2
  %v470 = vadd.f32 %v468, %v469
  %v471 = vrot.slane %v470, 1
  %v472 = vadd.f32 %v470, %v471
  %v473 = vsel %vm71, %v367, 0.0
  %v474 = vrot.slane %v473, 4
  %v475 = vadd.f32 %v473, %v474
  %v476 = vrot.slane %v475, 2
  %v477 = vadd.f32 %v475, %v476
  %v478 = vrot.slane %v477, 1
  %v479 = vadd.f32 %v477, %v478
  %480 = vset.pattern.permute.xlu0 3
  %481 = vperm.xlu0 %480, %v33
  %v482 = vpop.permute.xlu0 %481
  %v484 = vsub.f32 %v17, %v482
  %v485 = vsub.f32 %v18, %v482
  %v486 = vsub.f32 %v19, %v482
  %v487 = vsub.f32 %v20, %v482
  %v488 = vsub.f32 %v21, %v482
  %v489 = vsub.f32 %v22, %v482
  %v490 = vsub.f32 %v23, %v482
  %v491 = vsub.f32 %v24, %v482
  %v492 = vsub.f32 %v25, %v482
  %v493 = vsub.f32 %v26, %v482
  %v494 = vsub.f32 %v27, %v482
  %v495 = vsub.f32 %v28, %v482
  %v496 = vsub.f32 %v29, %v482
  %v497 = vsub.f32 %v30, %v482
  %v498 = vsub.f32 %v31, %v482
  %v499 = vsub.f32 %v32, %v482
  %v500 = vmul.f32 %v484, %v484
  %v501 = vmul.f32 %v485, %v485
  %v502 = vmul.f32 %v486, %v486
  %v503 = vmul.f32 %v487, %v487
  %v504 = vmul.f32 %v488, %v488
  %v505 = vmul.f32 %v489, %v489
  %v506 = vmul.f32 %v490, %v490
  %v507 = vmul.f32 %v491, %v491
  %v508 = vmul.f32 %v492, %v492
  %v509 = vmul.f32 %v493, %v493
  %v510 = vmul.f32 %v494, %v494
  %v511 = vmul.f32 %v495, %v495
  %v512 = vmul.f32 %v496, %v496
  %v513 = vmul.f32 %v497, %v497
  %v514 = vmul.f32 %v498, %v498
  %v515 = vmul.f32 %v499, %v499
  %v516 = vsel %vm71, %v500, 0.0
  %v517 = vrot.slane %v516, 4
  %v518 = vadd.f32 %v516, %v517
  %v519 = vrot.slane %v518, 2
  %v520 = vadd.f32 %v518, %v519
  %v521 = vrot.slane %v520, 1
  %v522 = vadd.f32 %v520, %v521
  %v523 = vsel %vm71, %v501, 0.0
  %v524 = vrot.slane %v523, 4
  %v525 = vadd.f32 %v523, %v524
  %v526 = vrot.slane %v525, 2
  %v527 = vadd.f32 %v525, %v526
  %v528 = vrot.slane %v527, 1
  %v529 = vadd.f32 %v527, %v528
  %v530 = vsel %vm71, %v502, 0.0
  %v531 = vrot.slane %v530, 4
  %v532 = vadd.f32 %v530, %v531
  %v533 = vrot.slane %v532, 2
  %v534 = vadd.f32 %v532, %v533
  %v535 = vrot.slane %v534, 1
  %v536 = vadd.f32 %v534, %v535
  %v537 = vsel %vm71, %v503, 0.0
  %v538 = vrot.slane %v537, 4
  %v539 = vadd.f32 %v537, %v538
  %v540 = vrot.slane %v539, 2
  %v541 = vadd.f32 %v539, %v540
  %v542 = vrot.slane %v541, 1
  %v543 = vadd.f32 %v541, %v542
  %v544 = vsel %vm71, %v504, 0.0
  %v545 = vrot.slane %v544, 4
  %v546 = vadd.f32 %v544, %v545
  %v547 = vrot.slane %v546, 2
  %v548 = vadd.f32 %v546, %v547
  %v549 = vrot.slane %v548, 1
  %v550 = vadd.f32 %v548, %v549
  %v551 = vsel %vm71, %v505, 0.0
  %v552 = vrot.slane %v551, 4
  %v553 = vadd.f32 %v551, %v552
  %v554 = vrot.slane %v553, 2
  %v555 = vadd.f32 %v553, %v554
  %v556 = vrot.slane %v555, 1
  %v557 = vadd.f32 %v555, %v556
  %v558 = vsel %vm71, %v506, 0.0
  %v559 = vrot.slane %v558, 4
  %v560 = vadd.f32 %v558, %v559
  %v561 = vrot.slane %v560, 2
  %v562 = vadd.f32 %v560, %v561
  %v563 = vrot.slane %v562, 1
  %v564 = vadd.f32 %v562, %v563
  %v565 = vsel %vm71, %v507, 0.0
  %v566 = vrot.slane %v565, 4
  %v567 = vadd.f32 %v565, %v566
  %v568 = vrot.slane %v567, 2
  %v569 = vadd.f32 %v567, %v568
  %v570 = vrot.slane %v569, 1
  %v571 = vadd.f32 %v569, %v570
  %v572 = vsel %vm71, %v508, 0.0
  %v573 = vrot.slane %v572, 4
  %v574 = vadd.f32 %v572, %v573
  %v575 = vrot.slane %v574, 2
  %v576 = vadd.f32 %v574, %v575
  %v577 = vrot.slane %v576, 1
  %v578 = vadd.f32 %v576, %v577
  %v579 = vsel %vm71, %v509, 0.0
  %v580 = vrot.slane %v579, 4
  %v581 = vadd.f32 %v579, %v580
  %v582 = vrot.slane %v581, 2
  %v583 = vadd.f32 %v581, %v582
  %v584 = vrot.slane %v583, 1
  %v585 = vadd.f32 %v583, %v584
  %v586 = vsel %vm71, %v510, 0.0
  %v587 = vrot.slane %v586, 4
  %v588 = vadd.f32 %v586, %v587
  %v589 = vrot.slane %v588, 2
  %v590 = vadd.f32 %v588, %v589
  %v591 = vrot.slane %v590, 1
  %v592 = vadd.f32 %v590, %v591
  %v593 = vsel %vm71, %v511, 0.0
  %v594 = vrot.slane %v593, 4
  %v595 = vadd.f32 %v593, %v594
  %v596 = vrot.slane %v595, 2
  %v597 = vadd.f32 %v595, %v596
  %v598 = vrot.slane %v597, 1
  %v599 = vadd.f32 %v597, %v598
  %v600 = vsel %vm71, %v512, 0.0
  %v601 = vrot.slane %v600, 4
  %v602 = vadd.f32 %v600, %v601
  %v603 = vrot.slane %v602, 2
  %v604 = vadd.f32 %v602, %v603
  %v605 = vrot.slane %v604, 1
  %v606 = vadd.f32 %v604, %v605
  %v607 = vsel %vm71, %v513, 0.0
  %v608 = vrot.slane %v607, 4
  %v609 = vadd.f32 %v607, %v608
  %v610 = vrot.slane %v609, 2
  %v611 = vadd.f32 %v609, %v610
  %v612 = vrot.slane %v611, 1
  %v613 = vadd.f32 %v611, %v612
  %v614 = vsel %vm71, %v514, 0.0
  %v615 = vrot.slane %v614, 4
  %v616 = vadd.f32 %v614, %v615
  %v617 = vrot.slane %v616, 2
  %v618 = vadd.f32 %v616, %v617
  %v619 = vrot.slane %v618, 1
  %v620 = vadd.f32 %v618, %v619
  %v621 = vsel %vm71, %v515, 0.0
  %v622 = vrot.slane %v621, 4
  %v623 = vadd.f32 %v621, %v622
  %v624 = vrot.slane %v623, 2
  %v625 = vadd.f32 %v623, %v624
  %v626 = vrot.slane %v625, 1
  %v627 = vadd.f32 %v625, %v626
  %vm628 = vcmask 1040384
  %v629 = vsel %vm628, %v78, %v226
  %v630 = vsel %vm628, %v85, %v233
  %v631 = vsel %vm628, %v92, %v240
  %v632 = vsel %vm628, %v99, %v247
  %v633 = vsel %vm628, %v106, %v254
  %v634 = vsel %vm628, %v113, %v261
  %v635 = vsel %vm628, %v120, %v268
  %v636 = vsel %vm628, %v127, %v275
  %v637 = vsel %vm628, %v134, %v282
  %v638 = vsel %vm628, %v141, %v289
  %v639 = vsel %vm628, %v148, %v296
  %v640 = vsel %vm628, %v155, %v303
  %v641 = vsel %vm628, %v162, %v310
  %v642 = vsel %vm628, %v169, %v317
  %v643 = vsel %vm628, %v176, %v324
  %v644 = vsel %vm628, %v183, %v331
  %vm645 = vcmask 1041408
  %v646 = vsel %vm645, %v629, %v374
  %v647 = vsel %vm645, %v630, %v381
  %v648 = vsel %vm645, %v631, %v388
  %v649 = vsel %vm645, %v632, %v395
  %v650 = vsel %vm645, %v633, %v402
  %v651 = vsel %vm645, %v634, %v409
  %v652 = vsel %vm645, %v635, %v416
  %v653 = vsel %vm645, %v636, %v423
  %v654 = vsel %vm645, %v637, %v430
  %v655 = vsel %vm645, %v638, %v437
  %v656 = vsel %vm645, %v639, %v444
  %v657 = vsel %vm645, %v640, %v451
  %v658 = vsel %vm645, %v641, %v458
  %v659 = vsel %vm645, %v642, %v465
  %v660 = vsel %vm645, %v643, %v472
  %v661 = vsel %vm645, %v644, %v479
  %v662 = vsel %vm71, %v646, %v522
  %v663 = vsel %vm71, %v647, %v529
  %v664 = vsel %vm71, %v648, %v536
  %v665 = vsel %vm71, %v649, %v543
  %v666 = vsel %vm71, %v650, %v550
  %v667 = vsel %vm71, %v651, %v557
  %v668 = vsel %vm71, %v652, %v564
  %v669 = vsel %vm71, %v653, %v571
  %v670 = vsel %vm71, %v654, %v578
  %v671 = vsel %vm71, %v655, %v585
  %v672 = vsel %vm71, %v656, %v592
  %v673 = vsel %vm71, %v657, %v599
  %v674 = vsel %vm71, %v658, %v606
  %v675 = vsel %vm71, %v659, %v613
  %v676 = vsel %vm71, %v660, %v620
  %v677 = vsel %vm71, %v661, %v627
  %v678 = vrsqrt.pop %v662
  %v679 = vmul.f32 %v678, %v662
  %v680 = vmul.f32 %v679, %v678
  %v681 = vmul.f32 0.5, %v680
  %v682 = vsub.f32 1.5, %v681
  %v683 = vmul.f32 %v678, %v682
  %v684 = vmul.f32 %v662, %v683
  %vm685 = vcmp.eq.f32.partialorder %v662, inf
  %v686 = vsel %vm685, %v662, %v684
  %vm687 = vcmp.eq.f32.partialorder %v662, 0.0
  %v688 = vand.u32 %v662, 2147483648
  %v689 = vsel %vm687, %v688, %v686
  %v690 = vrsqrt.pop %v663
  %v691 = vmul.f32 %v690, %v663
  %v692 = vmul.f32 %v691, %v690
  %v693 = vmul.f32 0.5, %v692
  %v694 = vsub.f32 1.5, %v693
  %v695 = vmul.f32 %v690, %v694
  %v696 = vmul.f32 %v663, %v695
  %vm697 = vcmp.eq.f32.partialorder %v663, inf
  %v698 = vsel %vm697, %v663, %v696
  %vm699 = vcmp.eq.f32.partialorder %v663, 0.0
  %v700 = vand.u32 %v663, 2147483648
  %v701 = vsel %vm699, %v700, %v698
  %v702 = vrsqrt.pop %v664
  %v703 = vmul.f32 %v702, %v664
  %v704 = vmul.f32 %v703, %v702
  %v705 = vmul.f32 0.5, %v704
  %v706 = vsub.f32 1.5, %v705
  %v707 = vmul.f32 %v702, %v706
  %v708 = vmul.f32 %v664, %v707
  %vm709 = vcmp.eq.f32.partialorder %v664, inf
  %v710 = vsel %vm709, %v664, %v708
  %vm711 = vcmp.eq.f32.partialorder %v664, 0.0
  %v712 = vand.u32 %v664, 2147483648
  %v713 = vsel %vm711, %v712, %v710
  %v714 = vrsqrt.pop %v665
  %v715 = vmul.f32 %v714, %v665
  %v716 = vmul.f32 %v715, %v714
  %v717 = vmul.f32 0.5, %v716
  %v718 = vsub.f32 1.5, %v717
  %v719 = vmul.f32 %v714, %v718
  %v720 = vmul.f32 %v665, %v719
  %vm721 = vcmp.eq.f32.partialorder %v665, inf
  %v722 = vsel %vm721, %v665, %v720
  %vm723 = vcmp.eq.f32.partialorder %v665, 0.0
  %v724 = vand.u32 %v665, 2147483648
  %v725 = vsel %vm723, %v724, %v722
  %v726 = vrsqrt.pop %v666
  %v727 = vmul.f32 %v726, %v666
  %v728 = vmul.f32 %v727, %v726
  %v729 = vmul.f32 0.5, %v728
  %v730 = vsub.f32 1.5, %v729
  %v731 = vmul.f32 %v726, %v730
  %v732 = vmul.f32 %v666, %v731
  %vm733 = vcmp.eq.f32.partialorder %v666, inf
  %v734 = vsel %vm733, %v666, %v732
  %vm735 = vcmp.eq.f32.partialorder %v666, 0.0
  %v736 = vand.u32 %v666, 2147483648
  %v737 = vsel %vm735, %v736, %v734
  %v738 = vrsqrt.pop %v667
  %v739 = vmul.f32 %v738, %v667
  %v740 = vmul.f32 %v739, %v738
  %v741 = vmul.f32 0.5, %v740
  %v742 = vsub.f32 1.5, %v741
  %v743 = vmul.f32 %v738, %v742
  %v744 = vmul.f32 %v667, %v743
  %vm745 = vcmp.eq.f32.partialorder %v667, inf
  %v746 = vsel %vm745, %v667, %v744
  %vm747 = vcmp.eq.f32.partialorder %v667, 0.0
  %v748 = vand.u32 %v667, 2147483648
  %v749 = vsel %vm747, %v748, %v746
  %v750 = vrsqrt.pop %v668
  %v751 = vmul.f32 %v750, %v668
  %v752 = vmul.f32 %v751, %v750
  %v753 = vmul.f32 0.5, %v752
  %v754 = vsub.f32 1.5, %v753
  %v755 = vmul.f32 %v750, %v754
  %v756 = vmul.f32 %v668, %v755
  %vm757 = vcmp.eq.f32.partialorder %v668, inf
  %v758 = vsel %vm757, %v668, %v756
  %vm759 = vcmp.eq.f32.partialorder %v668, 0.0
  %v760 = vand.u32 %v668, 2147483648
  %v761 = vsel %vm759, %v760, %v758
  %v762 = vrsqrt.pop %v669
  %v763 = vmul.f32 %v762, %v669
  %v764 = vmul.f32 %v763, %v762
  %v765 = vmul.f32 0.5, %v764
  %v766 = vsub.f32 1.5, %v765
  %v767 = vmul.f32 %v762, %v766
  %v768 = vmul.f32 %v669, %v767
  %vm769 = vcmp.eq.f32.partialorder %v669, inf
  %v770 = vsel %vm769, %v669, %v768
  %vm771 = vcmp.eq.f32.partialorder %v669, 0.0
  %v772 = vand.u32 %v669, 2147483648
  %v773 = vsel %vm771, %v772, %v770
  %v774 = vrsqrt.pop %v670
  %v775 = vmul.f32 %v774, %v670
  %v776 = vmul.f32 %v775, %v774
  %v777 = vmul.f32 0.5, %v776
  %v778 = vsub.f32 1.5, %v777
  %v779 = vmul.f32 %v774, %v778
  %v780 = vmul.f32 %v670, %v779
  %vm781 = vcmp.eq.f32.partialorder %v670, inf
  %v782 = vsel %vm781, %v670, %v780
  %vm783 = vcmp.eq.f32.partialorder %v670, 0.0
  %v784 = vand.u32 %v670, 2147483648
  %v785 = vsel %vm783, %v784, %v782
  %v786 = vrsqrt.pop %v671
  %v787 = vmul.f32 %v786, %v671
  %v788 = vmul.f32 %v787, %v786
  %v789 = vmul.f32 0.5, %v788
  %v790 = vsub.f32 1.5, %v789
  %v791 = vmul.f32 %v786, %v790
  %v792 = vmul.f32 %v671, %v791
  %vm793 = vcmp.eq.f32.partialorder %v671, inf
  %v794 = vsel %vm793, %v671, %v792
  %vm795 = vcmp.eq.f32.partialorder %v671, 0.0
  %v796 = vand.u32 %v671, 2147483648
  %v797 = vsel %vm795, %v796, %v794
  %v798 = vrsqrt.pop %v672
  %v799 = vmul.f32 %v798, %v672
  %v800 = vmul.f32 %v799, %v798
  %v801 = vmul.f32 0.5, %v800
  %v802 = vsub.f32 1.5, %v801
  %v803 = vmul.f32 %v798, %v802
  %v804 = vmul.f32 %v672, %v803
  %vm805 = vcmp.eq.f32.partialorder %v672, inf
  %v806 = vsel %vm805, %v672, %v804
  %vm807 = vcmp.eq.f32.partialorder %v672, 0.0
  %v808 = vand.u32 %v672, 2147483648
  %v809 = vsel %vm807, %v808, %v806
  %v810 = vrsqrt.pop %v673
  %v811 = vmul.f32 %v810, %v673
  %v812 = vmul.f32 %v811, %v810
  %v813 = vmul.f32 0.5, %v812
  %v814 = vsub.f32 1.5, %v813
  %v815 = vmul.f32 %v810, %v814
  %v816 = vmul.f32 %v673, %v815
  %vm817 = vcmp.eq.f32.partialorder %v673, inf
  %v818 = vsel %vm817, %v673, %v816
  %vm819 = vcmp.eq.f32.partialorder %v673, 0.0
  %v820 = vand.u32 %v673, 2147483648
  %v821 = vsel %vm819, %v820, %v818
  %v822 = vrsqrt.pop %v674
  %v823 = vmul.f32 %v822, %v674
  %v824 = vmul.f32 %v823, %v822
  %v825 = vmul.f32 0.5, %v824
  %v826 = vsub.f32 1.5, %v825
  %v827 = vmul.f32 %v822, %v826
  %v828 = vmul.f32 %v674, %v827
  %vm829 = vcmp.eq.f32.partialorder %v674, inf
  %v830 = vsel %vm829, %v674, %v828
  %vm831 = vcmp.eq.f32.partialorder %v674, 0.0
  %v832 = vand.u32 %v674, 2147483648
  %v833 = vsel %vm831, %v832, %v830
  %v834 = vrsqrt.pop %v675
  %v835 = vmul.f32 %v834, %v675
  %v836 = vmul.f32 %v835, %v834
  %v837 = vmul.f32 0.5, %v836
  %v838 = vsub.f32 1.5, %v837
  %v839 = vmul.f32 %v834, %v838
  %v840 = vmul.f32 %v675, %v839
  %vm841 = vcmp.eq.f32.partialorder %v675, inf
  %v842 = vsel %vm841, %v675, %v840
  %vm843 = vcmp.eq.f32.partialorder %v675, 0.0
  %v844 = vand.u32 %v675, 2147483648
  %v845 = vsel %vm843, %v844, %v842
  %v846 = vrsqrt.pop %v676
  %v847 = vmul.f32 %v846, %v676
  %v848 = vmul.f32 %v847, %v846
  %v849 = vmul.f32 0.5, %v848
  %v850 = vsub.f32 1.5, %v849
  %v851 = vmul.f32 %v846, %v850
  %v852 = vmul.f32 %v676, %v851
  %vm853 = vcmp.eq.f32.partialorder %v676, inf
  %v854 = vsel %vm853, %v676, %v852
  %vm855 = vcmp.eq.f32.partialorder %v676, 0.0
  %v856 = vand.u32 %v676, 2147483648
  %v857 = vsel %vm855, %v856, %v854
  %v858 = vrsqrt.pop %v677
  %v859 = vmul.f32 %v858, %v677
  %v860 = vmul.f32 %v859, %v858
  %v861 = vmul.f32 0.5, %v860
  %v862 = vsub.f32 1.5, %v861
  %v863 = vmul.f32 %v858, %v862
  %v864 = vmul.f32 %v677, %v863
  %vm865 = vcmp.eq.f32.partialorder %v677, inf
  %v866 = vsel %vm865, %v677, %v864
  %vm867 = vcmp.eq.f32.partialorder %v677, 0.0
  %v868 = vand.u32 %v677, 2147483648
  %v869 = vsel %vm867, %v868, %v866
  %v870 = vadd.f32 %v689, 1e-08
  %v871 = vadd.f32 %v701, 1e-08
  %v872 = vadd.f32 %v713, 1e-08
  %v873 = vadd.f32 %v725, 1e-08
  %v874 = vadd.f32 %v737, 1e-08
  %v875 = vadd.f32 %v749, 1e-08
  %v876 = vadd.f32 %v761, 1e-08
  %v877 = vadd.f32 %v773, 1e-08
  %v878 = vadd.f32 %v785, 1e-08
  %v879 = vadd.f32 %v797, 1e-08
  %v880 = vadd.f32 %v809, 1e-08
  %v881 = vadd.f32 %v821, 1e-08
  %v882 = vadd.f32 %v833, 1e-08
  %v883 = vadd.f32 %v845, 1e-08
  %v884 = vadd.f32 %v857, 1e-08
  %v885 = vadd.f32 %v869, 1e-08
  %v886 = vrcp.pop %v870
  %v887 = vmul.f32 %v870, %v886
  %v888 = vsub.f32 1.0, %v887
  %v889 = vmul.f32 %v886, %v888
  %v890 = vadd.f32 %v886, %v889
  %vm891 = vweird.f32 %v870
  %vm892 = vweird.f32 %v886
  %vm893 = vmor %vm891, %vm892
  %v894 = vsel %vm893, %v886, %v890
  %v895 = vand.u32 2147483647, %v870
  %vm896 = vcmp.eq.f32.partialorder %v895, 8.507059e+37
  %v897 = vand.u32 %v870, 2147483648
  %v898 = vor.u32 1.1754944e-38, %v897
  %v899 = vsel %vm896, %v898, %v894
  %v900 = vmul.f32 1.0, %v899
  %v901 = vrcp.pop %v871
  %v902 = vmul.f32 %v871, %v901
  %v903 = vsub.f32 1.0, %v902
  %v904 = vmul.f32 %v901, %v903
  %v905 = vadd.f32 %v901, %v904
  %vm906 = vweird.f32 %v871
  %vm907 = vweird.f32 %v901
  %vm908 = vmor %vm906, %vm907
  %v909 = vsel %vm908, %v901, %v905
  %v910 = vand.u32 2147483647, %v871
  %vm911 = vcmp.eq.f32.partialorder %v910, 8.507059e+37
  %v912 = vand.u32 %v871, 2147483648
  %v913 = vor.u32 1.1754944e-38, %v912
  %v914 = vsel %vm911, %v913, %v909
  %v915 = vmul.f32 1.0, %v914
  %v916 = vrcp.pop %v872
  %v917 = vmul.f32 %v872, %v916
  %v918 = vsub.f32 1.0, %v917
  %v919 = vmul.f32 %v916, %v918
  %v920 = vadd.f32 %v916, %v919
  %vm921 = vweird.f32 %v872
  %vm922 = vweird.f32 %v916
  %vm923 = vmor %vm921, %vm922
  %v924 = vsel %vm923, %v916, %v920
  %v925 = vand.u32 2147483647, %v872
  %vm926 = vcmp.eq.f32.partialorder %v925, 8.507059e+37
  %v927 = vand.u32 %v872, 2147483648
  %v928 = vor.u32 1.1754944e-38, %v927
  %v929 = vsel %vm926, %v928, %v924
  %v930 = vmul.f32 1.0, %v929
  %v931 = vrcp.pop %v873
  %v932 = vmul.f32 %v873, %v931
  %v933 = vsub.f32 1.0, %v932
  %v934 = vmul.f32 %v931, %v933
  %v935 = vadd.f32 %v931, %v934
  %vm936 = vweird.f32 %v873
  %vm937 = vweird.f32 %v931
  %vm938 = vmor %vm936, %vm937
  %v939 = vsel %vm938, %v931, %v935
  %v940 = vand.u32 2147483647, %v873
  %vm941 = vcmp.eq.f32.partialorder %v940, 8.507059e+37
  %v942 = vand.u32 %v873, 2147483648
  %v943 = vor.u32 1.1754944e-38, %v942
  %v944 = vsel %vm941, %v943, %v939
  %v945 = vmul.f32 1.0, %v944
  %v946 = vrcp.pop %v874
  %v947 = vmul.f32 %v874, %v946
  %v948 = vsub.f32 1.0, %v947
  %v949 = vmul.f32 %v946, %v948
  %v950 = vadd.f32 %v946, %v949
  %vm951 = vweird.f32 %v874
  %vm952 = vweird.f32 %v946
  %vm953 = vmor %vm951, %vm952
  %v954 = vsel %vm953, %v946, %v950
  %v955 = vand.u32 2147483647, %v874
  %vm956 = vcmp.eq.f32.partialorder %v955, 8.507059e+37
  %v957 = vand.u32 %v874, 2147483648
  %v958 = vor.u32 1.1754944e-38, %v957
  %v959 = vsel %vm956, %v958, %v954
  %v960 = vmul.f32 1.0, %v959
  %v961 = vrcp.pop %v875
  %v962 = vmul.f32 %v875, %v961
  %v963 = vsub.f32 1.0, %v962
  %v964 = vmul.f32 %v961, %v963
  %v965 = vadd.f32 %v961, %v964
  %vm966 = vweird.f32 %v875
  %vm967 = vweird.f32 %v961
  %vm968 = vmor %vm966, %vm967
  %v969 = vsel %vm968, %v961, %v965
  %v970 = vand.u32 2147483647, %v875
  %vm971 = vcmp.eq.f32.partialorder %v970, 8.507059e+37
  %v972 = vand.u32 %v875, 2147483648
  %v973 = vor.u32 1.1754944e-38, %v972
  %v974 = vsel %vm971, %v973, %v969
  %v975 = vmul.f32 1.0, %v974
  %v976 = vrcp.pop %v876
  %v977 = vmul.f32 %v876, %v976
  %v978 = vsub.f32 1.0, %v977
  %v979 = vmul.f32 %v976, %v978
  %v980 = vadd.f32 %v976, %v979
  %vm981 = vweird.f32 %v876
  %vm982 = vweird.f32 %v976
  %vm983 = vmor %vm981, %vm982
  %v984 = vsel %vm983, %v976, %v980
  %v985 = vand.u32 2147483647, %v876
  %vm986 = vcmp.eq.f32.partialorder %v985, 8.507059e+37
  %v987 = vand.u32 %v876, 2147483648
  %v988 = vor.u32 1.1754944e-38, %v987
  %v989 = vsel %vm986, %v988, %v984
  %v990 = vmul.f32 1.0, %v989
  %v991 = vrcp.pop %v877
  %v992 = vmul.f32 %v877, %v991
  %v993 = vsub.f32 1.0, %v992
  %v994 = vmul.f32 %v991, %v993
  %v995 = vadd.f32 %v991, %v994
  %vm996 = vweird.f32 %v877
  %vm997 = vweird.f32 %v991
  %vm998 = vmor %vm996, %vm997
  %v999 = vsel %vm998, %v991, %v995
  %v1000 = vand.u32 2147483647, %v877
  %vm1001 = vcmp.eq.f32.partialorder %v1000, 8.507059e+37
  %v1002 = vand.u32 %v877, 2147483648
  %v1003 = vor.u32 1.1754944e-38, %v1002
  %v1004 = vsel %vm1001, %v1003, %v999
  %v1005 = vmul.f32 1.0, %v1004
  %v1006 = vrcp.pop %v878
  %v1007 = vmul.f32 %v878, %v1006
  %v1008 = vsub.f32 1.0, %v1007
  %v1009 = vmul.f32 %v1006, %v1008
  %v1010 = vadd.f32 %v1006, %v1009
  %vm1011 = vweird.f32 %v878
  %vm1012 = vweird.f32 %v1006
  %vm1013 = vmor %vm1011, %vm1012
  %v1014 = vsel %vm1013, %v1006, %v1010
  %v1015 = vand.u32 2147483647, %v878
  %vm1016 = vcmp.eq.f32.partialorder %v1015, 8.507059e+37
  %v1017 = vand.u32 %v878, 2147483648
  %v1018 = vor.u32 1.1754944e-38, %v1017
  %v1019 = vsel %vm1016, %v1018, %v1014
  %v1020 = vmul.f32 1.0, %v1019
  %v1021 = vrcp.pop %v879
  %v1022 = vmul.f32 %v879, %v1021
  %v1023 = vsub.f32 1.0, %v1022
  %v1024 = vmul.f32 %v1021, %v1023
  %v1025 = vadd.f32 %v1021, %v1024
  %vm1026 = vweird.f32 %v879
  %vm1027 = vweird.f32 %v1021
  %vm1028 = vmor %vm1026, %vm1027
  %v1029 = vsel %vm1028, %v1021, %v1025
  %v1030 = vand.u32 2147483647, %v879
  %vm1031 = vcmp.eq.f32.partialorder %v1030, 8.507059e+37
  %v1032 = vand.u32 %v879, 2147483648
  %v1033 = vor.u32 1.1754944e-38, %v1032
  %v1034 = vsel %vm1031, %v1033, %v1029
  %v1035 = vmul.f32 1.0, %v1034
  %v1036 = vrcp.pop %v880
  %v1037 = vmul.f32 %v880, %v1036
  %v1038 = vsub.f32 1.0, %v1037
  %v1039 = vmul.f32 %v1036, %v1038
  %v1040 = vadd.f32 %v1036, %v1039
  %vm1041 = vweird.f32 %v880
  %vm1042 = vweird.f32 %v1036
  %vm1043 = vmor %vm1041, %vm1042
  %v1044 = vsel %vm1043, %v1036, %v1040
  %v1045 = vand.u32 2147483647, %v880
  %vm1046 = vcmp.eq.f32.partialorder %v1045, 8.507059e+37
  %v1047 = vand.u32 %v880, 2147483648
  %v1048 = vor.u32 1.1754944e-38, %v1047
  %v1049 = vsel %vm1046, %v1048, %v1044
  %v1050 = vmul.f32 1.0, %v1049
  %v1051 = vrcp.pop %v881
  %v1052 = vmul.f32 %v881, %v1051
  %v1053 = vsub.f32 1.0, %v1052
  %v1054 = vmul.f32 %v1051, %v1053
  %v1055 = vadd.f32 %v1051, %v1054
  %vm1056 = vweird.f32 %v881
  %vm1057 = vweird.f32 %v1051
  %vm1058 = vmor %vm1056, %vm1057
  %v1059 = vsel %vm1058, %v1051, %v1055
  %v1060 = vand.u32 2147483647, %v881
  %vm1061 = vcmp.eq.f32.partialorder %v1060, 8.507059e+37
  %v1062 = vand.u32 %v881, 2147483648
  %v1063 = vor.u32 1.1754944e-38, %v1062
  %v1064 = vsel %vm1061, %v1063, %v1059
  %v1065 = vmul.f32 1.0, %v1064
  %v1066 = vrcp.pop %v882
  %v1067 = vmul.f32 %v882, %v1066
  %v1068 = vsub.f32 1.0, %v1067
  %v1069 = vmul.f32 %v1066, %v1068
  %v1070 = vadd.f32 %v1066, %v1069
  %vm1071 = vweird.f32 %v882
  %vm1072 = vweird.f32 %v1066
  %vm1073 = vmor %vm1071, %vm1072
  %v1074 = vsel %vm1073, %v1066, %v1070
  %v1075 = vand.u32 2147483647, %v882
  %vm1076 = vcmp.eq.f32.partialorder %v1075, 8.507059e+37
  %v1077 = vand.u32 %v882, 2147483648
  %v1078 = vor.u32 1.1754944e-38, %v1077
  %v1079 = vsel %vm1076, %v1078, %v1074
  %v1080 = vmul.f32 1.0, %v1079
  %v1081 = vrcp.pop %v883
  %v1082 = vmul.f32 %v883, %v1081
  %v1083 = vsub.f32 1.0, %v1082
  %v1084 = vmul.f32 %v1081, %v1083
  %v1085 = vadd.f32 %v1081, %v1084
  %vm1086 = vweird.f32 %v883
  %vm1087 = vweird.f32 %v1081
  %vm1088 = vmor %vm1086, %vm1087
  %v1089 = vsel %vm1088, %v1081, %v1085
  %v1090 = vand.u32 2147483647, %v883
  %vm1091 = vcmp.eq.f32.partialorder %v1090, 8.507059e+37
  %v1092 = vand.u32 %v883, 2147483648
  %v1093 = vor.u32 1.1754944e-38, %v1092
  %v1094 = vsel %vm1091, %v1093, %v1089
  %v1095 = vmul.f32 1.0, %v1094
  %v1096 = vrcp.pop %v884
  %v1097 = vmul.f32 %v884, %v1096
  %v1098 = vsub.f32 1.0, %v1097
  %v1099 = vmul.f32 %v1096, %v1098
  %v1100 = vadd.f32 %v1096, %v1099
  %vm1101 = vweird.f32 %v884
  %vm1102 = vweird.f32 %v1096
  %vm1103 = vmor %vm1101, %vm1102
  %v1104 = vsel %vm1103, %v1096, %v1100
  %v1105 = vand.u32 2147483647, %v884
  %vm1106 = vcmp.eq.f32.partialorder %v1105, 8.507059e+37
  %v1107 = vand.u32 %v884, 2147483648
  %v1108 = vor.u32 1.1754944e-38, %v1107
  %v1109 = vsel %vm1106, %v1108, %v1104
  %v1110 = vmul.f32 1.0, %v1109
  %v1111 = vrcp.pop %v885
  %v1112 = vmul.f32 %v885, %v1111
  %v1113 = vsub.f32 1.0, %v1112
  %v1114 = vmul.f32 %v1111, %v1113
  %v1115 = vadd.f32 %v1111, %v1114
  %vm1116 = vweird.f32 %v885
  %vm1117 = vweird.f32 %v1111
  %vm1118 = vmor %vm1116, %vm1117
  %v1119 = vsel %vm1118, %v1111, %v1115
  %v1120 = vand.u32 2147483647, %v885
  %vm1121 = vcmp.eq.f32.partialorder %v1120, 8.507059e+37
  %v1122 = vand.u32 %v885, 2147483648
  %v1123 = vor.u32 1.1754944e-38, %v1122
  %v1124 = vsel %vm1121, %v1123, %v1119
  %v1125 = vmul.f32 1.0, %v1124
  %vm1126 = vcmask 1043456
  %v1127 = vsel %vm1126, %v689, inf
  %v1128 = vrot.slane %v1127, 4
  %v1129 = vmin.f32 %v1127, %v1128
  %v1130 = vrot.slane %v1129, 2
  %v1131 = vmin.f32 %v1129, %v1130
  %v1132 = vrot.slane %v1131, 1
  %v1133 = vmin.f32 %v1131, %v1132
  %v1134 = vsel %vm1126, %v701, inf
  %v1135 = vrot.slane %v1134, 4
  %v1136 = vmin.f32 %v1134, %v1135
  %v1137 = vrot.slane %v1136, 2
  %v1138 = vmin.f32 %v1136, %v1137
  %v1139 = vrot.slane %v1138, 1
  %v1140 = vmin.f32 %v1138, %v1139
  %v1141 = vsel %vm1126, %v713, inf
  %v1142 = vrot.slane %v1141, 4
  %v1143 = vmin.f32 %v1141, %v1142
  %v1144 = vrot.slane %v1143, 2
  %v1145 = vmin.f32 %v1143, %v1144
  %v1146 = vrot.slane %v1145, 1
  %v1147 = vmin.f32 %v1145, %v1146
  %v1148 = vsel %vm1126, %v725, inf
  %v1149 = vrot.slane %v1148, 4
  %v1150 = vmin.f32 %v1148, %v1149
  %v1151 = vrot.slane %v1150, 2
  %v1152 = vmin.f32 %v1150, %v1151
  %v1153 = vrot.slane %v1152, 1
  %v1154 = vmin.f32 %v1152, %v1153
  %v1155 = vsel %vm1126, %v737, inf
  %v1156 = vrot.slane %v1155, 4
  %v1157 = vmin.f32 %v1155, %v1156
  %v1158 = vrot.slane %v1157, 2
  %v1159 = vmin.f32 %v1157, %v1158
  %v1160 = vrot.slane %v1159, 1
  %v1161 = vmin.f32 %v1159, %v1160
  %v1162 = vsel %vm1126, %v749, inf
  %v1163 = vrot.slane %v1162, 4
  %v1164 = vmin.f32 %v1162, %v1163
  %v1165 = vrot.slane %v1164, 2
  %v1166 = vmin.f32 %v1164, %v1165
  %v1167 = vrot.slane %v1166, 1
  %v1168 = vmin.f32 %v1166, %v1167
  %v1169 = vsel %vm1126, %v761, inf
  %v1170 = vrot.slane %v1169, 4
  %v1171 = vmin.f32 %v1169, %v1170
  %v1172 = vrot.slane %v1171, 2
  %v1173 = vmin.f32 %v1171, %v1172
  %v1174 = vrot.slane %v1173, 1
  %v1175 = vmin.f32 %v1173, %v1174
  %v1176 = vsel %vm1126, %v773, inf
  %v1177 = vrot.slane %v1176, 4
  %v1178 = vmin.f32 %v1176, %v1177
  %v1179 = vrot.slane %v1178, 2
  %v1180 = vmin.f32 %v1178, %v1179
  %v1181 = vrot.slane %v1180, 1
  %v1182 = vmin.f32 %v1180, %v1181
  %v1183 = vsel %vm1126, %v785, inf
  %v1184 = vrot.slane %v1183, 4
  %v1185 = vmin.f32 %v1183, %v1184
  %v1186 = vrot.slane %v1185, 2
  %v1187 = vmin.f32 %v1185, %v1186
  %v1188 = vrot.slane %v1187, 1
  %v1189 = vmin.f32 %v1187, %v1188
  %v1190 = vsel %vm1126, %v797, inf
  %v1191 = vrot.slane %v1190, 4
  %v1192 = vmin.f32 %v1190, %v1191
  %v1193 = vrot.slane %v1192, 2
  %v1194 = vmin.f32 %v1192, %v1193
  %v1195 = vrot.slane %v1194, 1
  %v1196 = vmin.f32 %v1194, %v1195
  %v1197 = vsel %vm1126, %v809, inf
  %v1198 = vrot.slane %v1197, 4
  %v1199 = vmin.f32 %v1197, %v1198
  %v1200 = vrot.slane %v1199, 2
  %v1201 = vmin.f32 %v1199, %v1200
  %v1202 = vrot.slane %v1201, 1
  %v1203 = vmin.f32 %v1201, %v1202
  %v1204 = vsel %vm1126, %v821, inf
  %v1205 = vrot.slane %v1204, 4
  %v1206 = vmin.f32 %v1204, %v1205
  %v1207 = vrot.slane %v1206, 2
  %v1208 = vmin.f32 %v1206, %v1207
  %v1209 = vrot.slane %v1208, 1
  %v1210 = vmin.f32 %v1208, %v1209
  %v1211 = vsel %vm1126, %v833, inf
  %v1212 = vrot.slane %v1211, 4
  %v1213 = vmin.f32 %v1211, %v1212
  %v1214 = vrot.slane %v1213, 2
  %v1215 = vmin.f32 %v1213, %v1214
  %v1216 = vrot.slane %v1215, 1
  %v1217 = vmin.f32 %v1215, %v1216
  %v1218 = vsel %vm1126, %v845, inf
  %v1219 = vrot.slane %v1218, 4
  %v1220 = vmin.f32 %v1218, %v1219
  %v1221 = vrot.slane %v1220, 2
  %v1222 = vmin.f32 %v1220, %v1221
  %v1223 = vrot.slane %v1222, 1
  %v1224 = vmin.f32 %v1222, %v1223
  %v1225 = vsel %vm1126, %v857, inf
  %v1226 = vrot.slane %v1225, 4
  %v1227 = vmin.f32 %v1225, %v1226
  %v1228 = vrot.slane %v1227, 2
  %v1229 = vmin.f32 %v1227, %v1228
  %v1230 = vrot.slane %v1229, 1
  %v1231 = vmin.f32 %v1229, %v1230
  %v1232 = vsel %vm1126, %v869, inf
  %v1233 = vrot.slane %v1232, 4
  %v1234 = vmin.f32 %v1232, %v1233
  %v1235 = vrot.slane %v1234, 2
  %v1236 = vmin.f32 %v1234, %v1235
  %v1237 = vrot.slane %v1236, 1
  %v1238 = vmin.f32 %v1236, %v1237
  %v1239 = vmul.f32 %v1133, 2.0
  %v1240 = vmul.f32 %v1140, 2.0
  %v1241 = vmul.f32 %v1147, 2.0
  %v1242 = vmul.f32 %v1154, 2.0
  %v1243 = vmul.f32 %v1161, 2.0
  %v1244 = vmul.f32 %v1168, 2.0
  %v1245 = vmul.f32 %v1175, 2.0
  %v1246 = vmul.f32 %v1182, 2.0
  %v1247 = vmul.f32 %v1189, 2.0
  %v1248 = vmul.f32 %v1196, 2.0
  %v1249 = vmul.f32 %v1203, 2.0
  %v1250 = vmul.f32 %v1210, 2.0
  %v1251 = vmul.f32 %v1217, 2.0
  %v1252 = vmul.f32 %v1224, 2.0
  %v1253 = vmul.f32 %v1231, 2.0
  %v1254 = vmul.f32 %v1238, 2.0
  %vm1255 = vcmp.gt.f32.partialorder %v689, %v1239
  %vm1256 = vcmp.gt.f32.partialorder %v701, %v1240
  %vm1257 = vcmp.gt.f32.partialorder %v713, %v1241
  %vm1258 = vcmp.gt.f32.partialorder %v725, %v1242
  %vm1259 = vcmp.gt.f32.partialorder %v737, %v1243
  %vm1260 = vcmp.gt.f32.partialorder %v749, %v1244
  %vm1261 = vcmp.gt.f32.partialorder %v761, %v1245
  %vm1262 = vcmp.gt.f32.partialorder %v773, %v1246
  %vm1263 = vcmp.gt.f32.partialorder %v785, %v1247
  %vm1264 = vcmp.gt.f32.partialorder %v797, %v1248
  %vm1265 = vcmp.gt.f32.partialorder %v809, %v1249
  %vm1266 = vcmp.gt.f32.partialorder %v821, %v1250
  %vm1267 = vcmp.gt.f32.partialorder %v833, %v1251
  %vm1268 = vcmp.gt.f32.partialorder %v845, %v1252
  %vm1269 = vcmp.gt.f32.partialorder %v857, %v1253
  %vm1270 = vcmp.gt.f32.partialorder %v869, %v1254
  %v1271 = vsel %vm1255, 0.0, %v900
  %v1272 = vsel %vm1256, 0.0, %v915
  %v1273 = vsel %vm1257, 0.0, %v930
  %v1274 = vsel %vm1258, 0.0, %v945
  %v1275 = vsel %vm1259, 0.0, %v960
  %v1276 = vsel %vm1260, 0.0, %v975
  %v1277 = vsel %vm1261, 0.0, %v990
  %v1278 = vsel %vm1262, 0.0, %v1005
  %v1279 = vsel %vm1263, 0.0, %v1020
  %v1280 = vsel %vm1264, 0.0, %v1035
  %v1281 = vsel %vm1265, 0.0, %v1050
  %v1282 = vsel %vm1266, 0.0, %v1065
  %v1283 = vsel %vm1267, 0.0, %v1080
  %v1284 = vsel %vm1268, 0.0, %v1095
  %v1285 = vsel %vm1269, 0.0, %v1110
  %v1286 = vsel %vm1270, 0.0, %v1125
  %v1287 = vsel %vm1126, %v1271, 0.0
  %v1288 = vrot.slane %v1287, 4
  %v1289 = vadd.f32 %v1287, %v1288
  %v1290 = vrot.slane %v1289, 2
  %v1291 = vadd.f32 %v1289, %v1290
  %v1292 = vrot.slane %v1291, 1
  %v1293 = vadd.f32 %v1291, %v1292
  %v1294 = vsel %vm1126, %v1272, 0.0
  %v1295 = vrot.slane %v1294, 4
  %v1296 = vadd.f32 %v1294, %v1295
  %v1297 = vrot.slane %v1296, 2
  %v1298 = vadd.f32 %v1296, %v1297
  %v1299 = vrot.slane %v1298, 1
  %v1300 = vadd.f32 %v1298, %v1299
  %v1301 = vsel %vm1126, %v1273, 0.0
  %v1302 = vrot.slane %v1301, 4
  %v1303 = vadd.f32 %v1301, %v1302
  %v1304 = vrot.slane %v1303, 2
  %v1305 = vadd.f32 %v1303, %v1304
  %v1306 = vrot.slane %v1305, 1
  %v1307 = vadd.f32 %v1305, %v1306
  %v1308 = vsel %vm1126, %v1274, 0.0
  %v1309 = vrot.slane %v1308, 4
  %v1310 = vadd.f32 %v1308, %v1309
  %v1311 = vrot.slane %v1310, 2
  %v1312 = vadd.f32 %v1310, %v1311
  %v1313 = vrot.slane %v1312, 1
  %v1314 = vadd.f32 %v1312, %v1313
  %v1315 = vsel %vm1126, %v1275, 0.0
  %v1316 = vrot.slane %v1315, 4
  %v1317 = vadd.f32 %v1315, %v1316
  %v1318 = vrot.slane %v1317, 2
  %v1319 = vadd.f32 %v1317, %v1318
  %v1320 = vrot.slane %v1319, 1
  %v1321 = vadd.f32 %v1319, %v1320
  %v1322 = vsel %vm1126, %v1276, 0.0
  %v1323 = vrot.slane %v1322, 4
  %v1324 = vadd.f32 %v1322, %v1323
  %v1325 = vrot.slane %v1324, 2
  %v1326 = vadd.f32 %v1324, %v1325
  %v1327 = vrot.slane %v1326, 1
  %v1328 = vadd.f32 %v1326, %v1327
  %v1329 = vsel %vm1126, %v1277, 0.0
  %v1330 = vrot.slane %v1329, 4
  %v1331 = vadd.f32 %v1329, %v1330
  %v1332 = vrot.slane %v1331, 2
  %v1333 = vadd.f32 %v1331, %v1332
  %v1334 = vrot.slane %v1333, 1
  %v1335 = vadd.f32 %v1333, %v1334
  %v1336 = vsel %vm1126, %v1278, 0.0
  %v1337 = vrot.slane %v1336, 4
  %v1338 = vadd.f32 %v1336, %v1337
  %v1339 = vrot.slane %v1338, 2
  %v1340 = vadd.f32 %v1338, %v1339
  %v1341 = vrot.slane %v1340, 1
  %v1342 = vadd.f32 %v1340, %v1341
  %v1343 = vsel %vm1126, %v1279, 0.0
  %v1344 = vrot.slane %v1343, 4
  %v1345 = vadd.f32 %v1343, %v1344
  %v1346 = vrot.slane %v1345, 2
  %v1347 = vadd.f32 %v1345, %v1346
  %v1348 = vrot.slane %v1347, 1
  %v1349 = vadd.f32 %v1347, %v1348
  %v1350 = vsel %vm1126, %v1280, 0.0
  %v1351 = vrot.slane %v1350, 4
  %v1352 = vadd.f32 %v1350, %v1351
  %v1353 = vrot.slane %v1352, 2
  %v1354 = vadd.f32 %v1352, %v1353
  %v1355 = vrot.slane %v1354, 1
  %v1356 = vadd.f32 %v1354, %v1355
  %v1357 = vsel %vm1126, %v1281, 0.0
  %v1358 = vrot.slane %v1357, 4
  %v1359 = vadd.f32 %v1357, %v1358
  %v1360 = vrot.slane %v1359, 2
  %v1361 = vadd.f32 %v1359, %v1360
  %v1362 = vrot.slane %v1361, 1
  %v1363 = vadd.f32 %v1361, %v1362
  %v1364 = vsel %vm1126, %v1282, 0.0
  %v1365 = vrot.slane %v1364, 4
  %v1366 = vadd.f32 %v1364, %v1365
  %v1367 = vrot.slane %v1366, 2
  %v1368 = vadd.f32 %v1366, %v1367
  %v1369 = vrot.slane %v1368, 1
  %v1370 = vadd.f32 %v1368, %v1369
  %v1371 = vsel %vm1126, %v1283, 0.0
  %v1372 = vrot.slane %v1371, 4
  %v1373 = vadd.f32 %v1371, %v1372
  %v1374 = vrot.slane %v1373, 2
  %v1375 = vadd.f32 %v1373, %v1374
  %v1376 = vrot.slane %v1375, 1
  %v1377 = vadd.f32 %v1375, %v1376
  %v1378 = vsel %vm1126, %v1284, 0.0
  %v1379 = vrot.slane %v1378, 4
  %v1380 = vadd.f32 %v1378, %v1379
  %v1381 = vrot.slane %v1380, 2
  %v1382 = vadd.f32 %v1380, %v1381
  %v1383 = vrot.slane %v1382, 1
  %v1384 = vadd.f32 %v1382, %v1383
  %v1385 = vsel %vm1126, %v1285, 0.0
  %v1386 = vrot.slane %v1385, 4
  %v1387 = vadd.f32 %v1385, %v1386
  %v1388 = vrot.slane %v1387, 2
  %v1389 = vadd.f32 %v1387, %v1388
  %v1390 = vrot.slane %v1389, 1
  %v1391 = vadd.f32 %v1389, %v1390
  %v1392 = vsel %vm1126, %v1286, 0.0
  %v1393 = vrot.slane %v1392, 4
  %v1394 = vadd.f32 %v1392, %v1393
  %v1395 = vrot.slane %v1394, 2
  %v1396 = vadd.f32 %v1394, %v1395
  %v1397 = vrot.slane %v1396, 1
  %v1398 = vadd.f32 %v1396, %v1397
  %v1399 = vrcp.pop %v1293
  %v1400 = vmul.f32 %v1293, %v1399
  %v1401 = vsub.f32 1.0, %v1400
  %v1402 = vmul.f32 %v1399, %v1401
  %v1403 = vadd.f32 %v1399, %v1402
  %vm1404 = vweird.f32 %v1293
  %vm1405 = vweird.f32 %v1399
  %vm1406 = vmor %vm1404, %vm1405
  %v1407 = vsel %vm1406, %v1399, %v1403
  %v1408 = vand.u32 2147483647, %v1293
  %vm1409 = vcmp.eq.f32.partialorder %v1408, 8.507059e+37
  %v1410 = vand.u32 %v1293, 2147483648
  %v1411 = vor.u32 1.1754944e-38, %v1410
  %v1412 = vsel %vm1409, %v1411, %v1407
  %v1413 = vmul.f32 %v1271, %v1412
  %v1414 = vrcp.pop %v1300
  %v1415 = vmul.f32 %v1300, %v1414
  %v1416 = vsub.f32 1.0, %v1415
  %v1417 = vmul.f32 %v1414, %v1416
  %v1418 = vadd.f32 %v1414, %v1417
  %vm1419 = vweird.f32 %v1300
  %vm1420 = vweird.f32 %v1414
  %vm1421 = vmor %vm1419, %vm1420
  %v1422 = vsel %vm1421, %v1414, %v1418
  %v1423 = vand.u32 2147483647, %v1300
  %vm1424 = vcmp.eq.f32.partialorder %v1423, 8.507059e+37
  %v1425 = vand.u32 %v1300, 2147483648
  %v1426 = vor.u32 1.1754944e-38, %v1425
  %v1427 = vsel %vm1424, %v1426, %v1422
  %v1428 = vmul.f32 %v1272, %v1427
  %v1429 = vrcp.pop %v1307
  %v1430 = vmul.f32 %v1307, %v1429
  %v1431 = vsub.f32 1.0, %v1430
  %v1432 = vmul.f32 %v1429, %v1431
  %v1433 = vadd.f32 %v1429, %v1432
  %vm1434 = vweird.f32 %v1307
  %vm1435 = vweird.f32 %v1429
  %vm1436 = vmor %vm1434, %vm1435
  %v1437 = vsel %vm1436, %v1429, %v1433
  %v1438 = vand.u32 2147483647, %v1307
  %vm1439 = vcmp.eq.f32.partialorder %v1438, 8.507059e+37
  %v1440 = vand.u32 %v1307, 2147483648
  %v1441 = vor.u32 1.1754944e-38, %v1440
  %v1442 = vsel %vm1439, %v1441, %v1437
  %v1443 = vmul.f32 %v1273, %v1442
  %v1444 = vrcp.pop %v1314
  %v1445 = vmul.f32 %v1314, %v1444
  %v1446 = vsub.f32 1.0, %v1445
  %v1447 = vmul.f32 %v1444, %v1446
  %v1448 = vadd.f32 %v1444, %v1447
  %vm1449 = vweird.f32 %v1314
  %vm1450 = vweird.f32 %v1444
  %vm1451 = vmor %vm1449, %vm1450
  %v1452 = vsel %vm1451, %v1444, %v1448
  %v1453 = vand.u32 2147483647, %v1314
  %vm1454 = vcmp.eq.f32.partialorder %v1453, 8.507059e+37
  %v1455 = vand.u32 %v1314, 2147483648
  %v1456 = vor.u32 1.1754944e-38, %v1455
  %v1457 = vsel %vm1454, %v1456, %v1452
  %v1458 = vmul.f32 %v1274, %v1457
  %v1459 = vrcp.pop %v1321
  %v1460 = vmul.f32 %v1321, %v1459
  %v1461 = vsub.f32 1.0, %v1460
  %v1462 = vmul.f32 %v1459, %v1461
  %v1463 = vadd.f32 %v1459, %v1462
  %vm1464 = vweird.f32 %v1321
  %vm1465 = vweird.f32 %v1459
  %vm1466 = vmor %vm1464, %vm1465
  %v1467 = vsel %vm1466, %v1459, %v1463
  %v1468 = vand.u32 2147483647, %v1321
  %vm1469 = vcmp.eq.f32.partialorder %v1468, 8.507059e+37
  %v1470 = vand.u32 %v1321, 2147483648
  %v1471 = vor.u32 1.1754944e-38, %v1470
  %v1472 = vsel %vm1469, %v1471, %v1467
  %v1473 = vmul.f32 %v1275, %v1472
  %v1474 = vrcp.pop %v1328
  %v1475 = vmul.f32 %v1328, %v1474
  %v1476 = vsub.f32 1.0, %v1475
  %v1477 = vmul.f32 %v1474, %v1476
  %v1478 = vadd.f32 %v1474, %v1477
  %vm1479 = vweird.f32 %v1328
  %vm1480 = vweird.f32 %v1474
  %vm1481 = vmor %vm1479, %vm1480
  %v1482 = vsel %vm1481, %v1474, %v1478
  %v1483 = vand.u32 2147483647, %v1328
  %vm1484 = vcmp.eq.f32.partialorder %v1483, 8.507059e+37
  %v1485 = vand.u32 %v1328, 2147483648
  %v1486 = vor.u32 1.1754944e-38, %v1485
  %v1487 = vsel %vm1484, %v1486, %v1482
  %v1488 = vmul.f32 %v1276, %v1487
  %v1489 = vrcp.pop %v1335
  %v1490 = vmul.f32 %v1335, %v1489
  %v1491 = vsub.f32 1.0, %v1490
  %v1492 = vmul.f32 %v1489, %v1491
  %v1493 = vadd.f32 %v1489, %v1492
  %vm1494 = vweird.f32 %v1335
  %vm1495 = vweird.f32 %v1489
  %vm1496 = vmor %vm1494, %vm1495
  %v1497 = vsel %vm1496, %v1489, %v1493
  %v1498 = vand.u32 2147483647, %v1335
  %vm1499 = vcmp.eq.f32.partialorder %v1498, 8.507059e+37
  %v1500 = vand.u32 %v1335, 2147483648
  %v1501 = vor.u32 1.1754944e-38, %v1500
  %v1502 = vsel %vm1499, %v1501, %v1497
  %v1503 = vmul.f32 %v1277, %v1502
  %v1504 = vrcp.pop %v1342
  %v1505 = vmul.f32 %v1342, %v1504
  %v1506 = vsub.f32 1.0, %v1505
  %v1507 = vmul.f32 %v1504, %v1506
  %v1508 = vadd.f32 %v1504, %v1507
  %vm1509 = vweird.f32 %v1342
  %vm1510 = vweird.f32 %v1504
  %vm1511 = vmor %vm1509, %vm1510
  %v1512 = vsel %vm1511, %v1504, %v1508
  %v1513 = vand.u32 2147483647, %v1342
  %vm1514 = vcmp.eq.f32.partialorder %v1513, 8.507059e+37
  %v1515 = vand.u32 %v1342, 2147483648
  %v1516 = vor.u32 1.1754944e-38, %v1515
  %v1517 = vsel %vm1514, %v1516, %v1512
  %v1518 = vmul.f32 %v1278, %v1517
  %v1519 = vrcp.pop %v1349
  %v1520 = vmul.f32 %v1349, %v1519
  %v1521 = vsub.f32 1.0, %v1520
  %v1522 = vmul.f32 %v1519, %v1521
  %v1523 = vadd.f32 %v1519, %v1522
  %vm1524 = vweird.f32 %v1349
  %vm1525 = vweird.f32 %v1519
  %vm1526 = vmor %vm1524, %vm1525
  %v1527 = vsel %vm1526, %v1519, %v1523
  %v1528 = vand.u32 2147483647, %v1349
  %vm1529 = vcmp.eq.f32.partialorder %v1528, 8.507059e+37
  %v1530 = vand.u32 %v1349, 2147483648
  %v1531 = vor.u32 1.1754944e-38, %v1530
  %v1532 = vsel %vm1529, %v1531, %v1527
  %v1533 = vmul.f32 %v1279, %v1532
  %v1534 = vrcp.pop %v1356
  %v1535 = vmul.f32 %v1356, %v1534
  %v1536 = vsub.f32 1.0, %v1535
  %v1537 = vmul.f32 %v1534, %v1536
  %v1538 = vadd.f32 %v1534, %v1537
  %vm1539 = vweird.f32 %v1356
  %vm1540 = vweird.f32 %v1534
  %vm1541 = vmor %vm1539, %vm1540
  %v1542 = vsel %vm1541, %v1534, %v1538
  %v1543 = vand.u32 2147483647, %v1356
  %vm1544 = vcmp.eq.f32.partialorder %v1543, 8.507059e+37
  %v1545 = vand.u32 %v1356, 2147483648
  %v1546 = vor.u32 1.1754944e-38, %v1545
  %v1547 = vsel %vm1544, %v1546, %v1542
  %v1548 = vmul.f32 %v1280, %v1547
  %v1549 = vrcp.pop %v1363
  %v1550 = vmul.f32 %v1363, %v1549
  %v1551 = vsub.f32 1.0, %v1550
  %v1552 = vmul.f32 %v1549, %v1551
  %v1553 = vadd.f32 %v1549, %v1552
  %vm1554 = vweird.f32 %v1363
  %vm1555 = vweird.f32 %v1549
  %vm1556 = vmor %vm1554, %vm1555
  %v1557 = vsel %vm1556, %v1549, %v1553
  %v1558 = vand.u32 2147483647, %v1363
  %vm1559 = vcmp.eq.f32.partialorder %v1558, 8.507059e+37
  %v1560 = vand.u32 %v1363, 2147483648
  %v1561 = vor.u32 1.1754944e-38, %v1560
  %v1562 = vsel %vm1559, %v1561, %v1557
  %v1563 = vmul.f32 %v1281, %v1562
  %v1564 = vrcp.pop %v1370
  %v1565 = vmul.f32 %v1370, %v1564
  %v1566 = vsub.f32 1.0, %v1565
  %v1567 = vmul.f32 %v1564, %v1566
  %v1568 = vadd.f32 %v1564, %v1567
  %vm1569 = vweird.f32 %v1370
  %vm1570 = vweird.f32 %v1564
  %vm1571 = vmor %vm1569, %vm1570
  %v1572 = vsel %vm1571, %v1564, %v1568
  %v1573 = vand.u32 2147483647, %v1370
  %vm1574 = vcmp.eq.f32.partialorder %v1573, 8.507059e+37
  %v1575 = vand.u32 %v1370, 2147483648
  %v1576 = vor.u32 1.1754944e-38, %v1575
  %v1577 = vsel %vm1574, %v1576, %v1572
  %v1578 = vmul.f32 %v1282, %v1577
  %v1579 = vrcp.pop %v1377
  %v1580 = vmul.f32 %v1377, %v1579
  %v1581 = vsub.f32 1.0, %v1580
  %v1582 = vmul.f32 %v1579, %v1581
  %v1583 = vadd.f32 %v1579, %v1582
  %vm1584 = vweird.f32 %v1377
  %vm1585 = vweird.f32 %v1579
  %vm1586 = vmor %vm1584, %vm1585
  %v1587 = vsel %vm1586, %v1579, %v1583
  %v1588 = vand.u32 2147483647, %v1377
  %vm1589 = vcmp.eq.f32.partialorder %v1588, 8.507059e+37
  %v1590 = vand.u32 %v1377, 2147483648
  %v1591 = vor.u32 1.1754944e-38, %v1590
  %v1592 = vsel %vm1589, %v1591, %v1587
  %v1593 = vmul.f32 %v1283, %v1592
  %v1594 = vrcp.pop %v1384
  %v1595 = vmul.f32 %v1384, %v1594
  %v1596 = vsub.f32 1.0, %v1595
  %v1597 = vmul.f32 %v1594, %v1596
  %v1598 = vadd.f32 %v1594, %v1597
  %vm1599 = vweird.f32 %v1384
  %vm1600 = vweird.f32 %v1594
  %vm1601 = vmor %vm1599, %vm1600
  %v1602 = vsel %vm1601, %v1594, %v1598
  %v1603 = vand.u32 2147483647, %v1384
  %vm1604 = vcmp.eq.f32.partialorder %v1603, 8.507059e+37
  %v1605 = vand.u32 %v1384, 2147483648
  %v1606 = vor.u32 1.1754944e-38, %v1605
  %v1607 = vsel %vm1604, %v1606, %v1602
  %v1608 = vmul.f32 %v1284, %v1607
  %v1609 = vrcp.pop %v1391
  %v1610 = vmul.f32 %v1391, %v1609
  %v1611 = vsub.f32 1.0, %v1610
  %v1612 = vmul.f32 %v1609, %v1611
  %v1613 = vadd.f32 %v1609, %v1612
  %vm1614 = vweird.f32 %v1391
  %vm1615 = vweird.f32 %v1609
  %vm1616 = vmor %vm1614, %vm1615
  %v1617 = vsel %vm1616, %v1609, %v1613
  %v1618 = vand.u32 2147483647, %v1391
  %vm1619 = vcmp.eq.f32.partialorder %v1618, 8.507059e+37
  %v1620 = vand.u32 %v1391, 2147483648
  %v1621 = vor.u32 1.1754944e-38, %v1620
  %v1622 = vsel %vm1619, %v1621, %v1617
  %v1623 = vmul.f32 %v1285, %v1622
  %v1624 = vrcp.pop %v1398
  %v1625 = vmul.f32 %v1398, %v1624
  %v1626 = vsub.f32 1.0, %v1625
  %v1627 = vmul.f32 %v1624, %v1626
  %v1628 = vadd.f32 %v1624, %v1627
  %vm1629 = vweird.f32 %v1398
  %vm1630 = vweird.f32 %v1624
  %vm1631 = vmor %vm1629, %vm1630
  %v1632 = vsel %vm1631, %v1624, %v1628
  %v1633 = vand.u32 2147483647, %v1398
  %vm1634 = vcmp.eq.f32.partialorder %v1633, 8.507059e+37
  %v1635 = vand.u32 %v1398, 2147483648
  %v1636 = vor.u32 1.1754944e-38, %v1635
  %v1637 = vsel %vm1634, %v1636, %v1632
  %v1638 = vmul.f32 %v1286, %v1637
  %v1639 = vld [vmem:[%s2] sm:$0xff]
  %v1640 = vld [vmem:[%s2 + $0x8] sm:$0xff]
  %v1641 = vld [vmem:[%s2 + $0x10] sm:$0xff]
  %v1642 = vld [vmem:[%s2 + $0x18] sm:$0xff]
  %v1643 = vld [vmem:[%s2 + $0x20] sm:$0xff]
  %v1644 = vld [vmem:[%s2 + $0x28] sm:$0xff]
  %v1645 = vld [vmem:[%s2 + $0x30] sm:$0xff]
  %v1646 = vld [vmem:[%s2 + $0x38] sm:$0xff]
  %v1647 = vld [vmem:[%s2 + $0x40] sm:$0xff]
  %v1648 = vld [vmem:[%s2 + $0x48] sm:$0xff]
  %v1649 = vld [vmem:[%s2 + $0x50] sm:$0xff]
  %v1650 = vld [vmem:[%s2 + $0x58] sm:$0xff]
  %v1651 = vld [vmem:[%s2 + $0x60] sm:$0xff]
  %v1652 = vld [vmem:[%s2 + $0x68] sm:$0xff]
  %v1653 = vld [vmem:[%s2 + $0x70] sm:$0xff]
  %v1654 = vld [vmem:[%s2 + $0x78] sm:$0xff]
  %vm1655 = vcmask 56320
  %v1657 = vsel %vm1655, %v1639, 0
  %v1660 = vsel %vm1655, %v1640, 0
  %v1663 = vsel %vm1655, %v1641, 0
  %v1666 = vsel %vm1655, %v1642, 0
  %v1669 = vsel %vm1655, %v1643, 0
  %v1672 = vsel %vm1655, %v1644, 0
  %v1675 = vsel %vm1655, %v1645, 0
  %v1678 = vsel %vm1655, %v1646, 0
  %v1681 = vsel %vm1655, %v1647, 0
  %v1684 = vsel %vm1655, %v1648, 0
  %v1687 = vsel %vm1655, %v1649, 0
  %v1690 = vsel %vm1655, %v1650, 0
  %v1693 = vsel %vm1655, %v1651, 0
  %v1696 = vsel %vm1655, %v1652, 0
  %v1699 = vsel %vm1655, %v1653, 0
  %v1702 = vsel %vm1655, %v1654, 0
  %vm1704 = vcmask 1046528
  %v1706 = vsel %vm1704, %v17, 0
  %v1709 = vsel %vm1704, %v18, 0
  %v1712 = vsel %vm1704, %v19, 0
  %v1715 = vsel %vm1704, %v20, 0
  %v1718 = vsel %vm1704, %v21, 0
  %v1721 = vsel %vm1704, %v22, 0
  %v1724 = vsel %vm1704, %v23, 0
  %v1727 = vsel %vm1704, %v24, 0
  %v1730 = vsel %vm1704, %v25, 0
  %v1733 = vsel %vm1704, %v26, 0
  %v1736 = vsel %vm1704, %v27, 0
  %v1739 = vsel %vm1704, %v28, 0
  %v1742 = vsel %vm1704, %v29, 0
  %v1745 = vsel %vm1704, %v30, 0
  %v1748 = vsel %vm1704, %v31, 0
  %v1751 = vsel %vm1704, %v32, 0
  %1753 = vmatpush.msra.mxu0 0.0
  %1754 = vmatpush.msra.mxu0 0.0
  %1755 = vmatpush.msra.mxu0 0.0
  %1756 = vmatpush.msra.mxu0 0.0
  %1757 = vmatpush.msra.mxu0 0.0
  %1758 = vmatpush.msra.mxu0 0.0
  %1759 = vmatpush.msra.mxu0 0.0
  %1760 = vmatpush.msra.mxu0 0.0
  %1761 = vmatpush.msra.mxu0 0.0
  %1762 = vmatpush.msra.mxu0 0.0
  %1763 = vmatpush.msra.mxu0 0.0
  %1764 = vmatpush.msra.mxu0 0.0
  %1765 = vmatpush.msra.mxu0 0.0
  %1766 = vmatpush.msra.mxu0 0.0
  %1767 = vmatpush.msra.mxu0 0.0
  %1768 = vmatpush.msra.mxu0 %v1706
  %1769 = vmatmul.f32.gmra.mxu0 %v1657
  %v1770 = vpop.f32.mrf.mxu0
  %v1771 = vadd.f32 0.0, %v1770
  %1772 = vmatmul.f32.gmra.mxu0 %v1660
  %v1773 = vpop.f32.mrf.mxu0
  %v1774 = vadd.f32 0.0, %v1773
  %1775 = vmatmul.f32.gmra.mxu0 %v1663
  %v1776 = vpop.f32.mrf.mxu0
  %v1777 = vadd.f32 0.0, %v1776
  %1778 = vmatmul.f32.gmra.mxu0 %v1666
  %v1779 = vpop.f32.mrf.mxu0
  %v1780 = vadd.f32 0.0, %v1779
  %1781 = vmatmul.f32.gmra.mxu0 %v1669
  %v1782 = vpop.f32.mrf.mxu0
  %v1783 = vadd.f32 0.0, %v1782
  %1784 = vmatmul.f32.gmra.mxu0 %v1672
  %v1785 = vpop.f32.mrf.mxu0
  %v1786 = vadd.f32 0.0, %v1785
  %1787 = vmatmul.f32.gmra.mxu0 %v1675
  %v1788 = vpop.f32.mrf.mxu0
  %v1789 = vadd.f32 0.0, %v1788
  %1790 = vmatmul.f32.gmra.mxu0 %v1678
  %v1791 = vpop.f32.mrf.mxu0
  %v1792 = vadd.f32 0.0, %v1791
  %1793 = vmatmul.f32.gmra.mxu0 %v1681
  %v1794 = vpop.f32.mrf.mxu0
  %v1795 = vadd.f32 0.0, %v1794
  %1796 = vmatmul.f32.gmra.mxu0 %v1684
  %v1797 = vpop.f32.mrf.mxu0
  %v1798 = vadd.f32 0.0, %v1797
  %1799 = vmatmul.f32.gmra.mxu0 %v1687
  %v1800 = vpop.f32.mrf.mxu0
  %v1801 = vadd.f32 0.0, %v1800
  %1802 = vmatmul.f32.gmra.mxu0 %v1690
  %v1803 = vpop.f32.mrf.mxu0
  %v1804 = vadd.f32 0.0, %v1803
  %1805 = vmatmul.f32.gmra.mxu0 %v1693
  %v1806 = vpop.f32.mrf.mxu0
  %v1807 = vadd.f32 0.0, %v1806
  %1808 = vmatmul.f32.gmra.mxu0 %v1696
  %v1809 = vpop.f32.mrf.mxu0
  %v1810 = vadd.f32 0.0, %v1809
  %1811 = vmatmul.f32.gmra.mxu0 %v1699
  %v1812 = vpop.f32.mrf.mxu0
  %v1813 = vadd.f32 0.0, %v1812
  %1814 = vmatmul.f32.gmra.mxu0 %v1702
  %v1815 = vpop.f32.mrf.mxu0
  %v1816 = vadd.f32 0.0, %v1815
  %1817 = vdwg.mxu0
  %1818 = vmatpush.msra.mxu0 0.0
  %1819 = vmatpush.msra.mxu0 0.0
  %1820 = vmatpush.msra.mxu0 0.0
  %1821 = vmatpush.msra.mxu0 0.0
  %1822 = vmatpush.msra.mxu0 0.0
  %1823 = vmatpush.msra.mxu0 0.0
  %1824 = vmatpush.msra.mxu0 0.0
  %1825 = vmatpush.msra.mxu0 0.0
  %1826 = vmatpush.msra.mxu0 0.0
  %1827 = vmatpush.msra.mxu0 0.0
  %1828 = vmatpush.msra.mxu0 0.0
  %1829 = vmatpush.msra.mxu0 0.0
  %1830 = vmatpush.msra.mxu0 0.0
  %1831 = vmatpush.msra.mxu0 0.0
  %1832 = vmatpush.msra.mxu0 0.0
  %1833 = vmatpush.msra.mxu0 %v1709
  %1834 = vmatmul.f32.gmra.mxu0 %v1657
  %v1835 = vpop.f32.mrf.mxu0
  %v1836 = vadd.f32 0.0, %v1835
  %1837 = vmatmul.f32.gmra.mxu0 %v1660
  %v1838 = vpop.f32.mrf.mxu0
  %v1839 = vadd.f32 0.0, %v1838
  %1840 = vmatmul.f32.gmra.mxu0 %v1663
  %v1841 = vpop.f32.mrf.mxu0
  %v1842 = vadd.f32 0.0, %v1841
  %1843 = vmatmul.f32.gmra.mxu0 %v1666
  %v1844 = vpop.f32.mrf.mxu0
  %v1845 = vadd.f32 0.0, %v1844
  %1846 = vmatmul.f32.gmra.mxu0 %v1669
  %v1847 = vpop.f32.mrf.mxu0
  %v1848 = vadd.f32 0.0, %v1847
  %1849 = vmatmul.f32.gmra.mxu0 %v1672
  %v1850 = vpop.f32.mrf.mxu0
  %v1851 = vadd.f32 0.0, %v1850
  %1852 = vmatmul.f32.gmra.mxu0 %v1675
  %v1853 = vpop.f32.mrf.mxu0
  %v1854 = vadd.f32 0.0, %v1853
  %1855 = vmatmul.f32.gmra.mxu0 %v1678
  %v1856 = vpop.f32.mrf.mxu0
  %v1857 = vadd.f32 0.0, %v1856
  %1858 = vmatmul.f32.gmra.mxu0 %v1681
  %v1859 = vpop.f32.mrf.mxu0
  %v1860 = vadd.f32 0.0, %v1859
  %1861 = vmatmul.f32.gmra.mxu0 %v1684
  %v1862 = vpop.f32.mrf.mxu0
  %v1863 = vadd.f32 0.0, %v1862
  %1864 = vmatmul.f32.gmra.mxu0 %v1687
  %v1865 = vpop.f32.mrf.mxu0
  %v1866 = vadd.f32 0.0, %v1865
  %1867 = vmatmul.f32.gmra.mxu0 %v1690
  %v1868 = vpop.f32.mrf.mxu0
  %v1869 = vadd.f32 0.0, %v1868
  %1870 = vmatmul.f32.gmra.mxu0 %v1693
  %v1871 = vpop.f32.mrf.mxu0
  %v1872 = vadd.f32 0.0, %v1871
  %1873 = vmatmul.f32.gmra.mxu0 %v1696
  %v1874 = vpop.f32.mrf.mxu0
  %v1875 = vadd.f32 0.0, %v1874
  %1876 = vmatmul.f32.gmra.mxu0 %v1699
  %v1877 = vpop.f32.mrf.mxu0
  %v1878 = vadd.f32 0.0, %v1877
  %1879 = vmatmul.f32.gmra.mxu0 %v1702
  %v1880 = vpop.f32.mrf.mxu0
  %v1881 = vadd.f32 0.0, %v1880
  %1882 = vdwg.mxu0
  %1883 = vmatpush.msra.mxu0 0.0
  %1884 = vmatpush.msra.mxu0 0.0
  %1885 = vmatpush.msra.mxu0 0.0
  %1886 = vmatpush.msra.mxu0 0.0
  %1887 = vmatpush.msra.mxu0 0.0
  %1888 = vmatpush.msra.mxu0 0.0
  %1889 = vmatpush.msra.mxu0 0.0
  %1890 = vmatpush.msra.mxu0 0.0
  %1891 = vmatpush.msra.mxu0 0.0
  %1892 = vmatpush.msra.mxu0 0.0
  %1893 = vmatpush.msra.mxu0 0.0
  %1894 = vmatpush.msra.mxu0 0.0
  %1895 = vmatpush.msra.mxu0 0.0
  %1896 = vmatpush.msra.mxu0 0.0
  %1897 = vmatpush.msra.mxu0 0.0
  %1898 = vmatpush.msra.mxu0 %v1712
  %1899 = vmatmul.f32.gmra.mxu0 %v1657
  %v1900 = vpop.f32.mrf.mxu0
  %v1901 = vadd.f32 0.0, %v1900
  %1902 = vmatmul.f32.gmra.mxu0 %v1660
  %v1903 = vpop.f32.mrf.mxu0
  %v1904 = vadd.f32 0.0, %v1903
  %1905 = vmatmul.f32.gmra.mxu0 %v1663
  %v1906 = vpop.f32.mrf.mxu0
  %v1907 = vadd.f32 0.0, %v1906
  %1908 = vmatmul.f32.gmra.mxu0 %v1666
  %v1909 = vpop.f32.mrf.mxu0
  %v1910 = vadd.f32 0.0, %v1909
  %1911 = vmatmul.f32.gmra.mxu0 %v1669
  %v1912 = vpop.f32.mrf.mxu0
  %v1913 = vadd.f32 0.0, %v1912
  %1914 = vmatmul.f32.gmra.mxu0 %v1672
  %v1915 = vpop.f32.mrf.mxu0
  %v1916 = vadd.f32 0.0, %v1915
  %1917 = vmatmul.f32.gmra.mxu0 %v1675
  %v1918 = vpop.f32.mrf.mxu0
  %v1919 = vadd.f32 0.0, %v1918
  %1920 = vmatmul.f32.gmra.mxu0 %v1678
  %v1921 = vpop.f32.mrf.mxu0
  %v1922 = vadd.f32 0.0, %v1921
  %1923 = vmatmul.f32.gmra.mxu0 %v1681
  %v1924 = vpop.f32.mrf.mxu0
  %v1925 = vadd.f32 0.0, %v1924
  %1926 = vmatmul.f32.gmra.mxu0 %v1684
  %v1927 = vpop.f32.mrf.mxu0
  %v1928 = vadd.f32 0.0, %v1927
  %1929 = vmatmul.f32.gmra.mxu0 %v1687
  %v1930 = vpop.f32.mrf.mxu0
  %v1931 = vadd.f32 0.0, %v1930
  %1932 = vmatmul.f32.gmra.mxu0 %v1690
  %v1933 = vpop.f32.mrf.mxu0
  %v1934 = vadd.f32 0.0, %v1933
  %1935 = vmatmul.f32.gmra.mxu0 %v1693
  %v1936 = vpop.f32.mrf.mxu0
  %v1937 = vadd.f32 0.0, %v1936
  %1938 = vmatmul.f32.gmra.mxu0 %v1696
  %v1939 = vpop.f32.mrf.mxu0
  %v1940 = vadd.f32 0.0, %v1939
  %1941 = vmatmul.f32.gmra.mxu0 %v1699
  %v1942 = vpop.f32.mrf.mxu0
  %v1943 = vadd.f32 0.0, %v1942
  %1944 = vmatmul.f32.gmra.mxu0 %v1702
  %v1945 = vpop.f32.mrf.mxu0
  %v1946 = vadd.f32 0.0, %v1945
  %1947 = vdwg.mxu0
  %1948 = vmatpush.msra.mxu0 0.0
  %1949 = vmatpush.msra.mxu0 0.0
  %1950 = vmatpush.msra.mxu0 0.0
  %1951 = vmatpush.msra.mxu0 0.0
  %1952 = vmatpush.msra.mxu0 0.0
  %1953 = vmatpush.msra.mxu0 0.0
  %1954 = vmatpush.msra.mxu0 0.0
  %1955 = vmatpush.msra.mxu0 0.0
  %1956 = vmatpush.msra.mxu0 0.0
  %1957 = vmatpush.msra.mxu0 0.0
  %1958 = vmatpush.msra.mxu0 0.0
  %1959 = vmatpush.msra.mxu0 0.0
  %1960 = vmatpush.msra.mxu0 0.0
  %1961 = vmatpush.msra.mxu0 0.0
  %1962 = vmatpush.msra.mxu0 0.0
  %1963 = vmatpush.msra.mxu0 %v1715
  %1964 = vmatmul.f32.gmra.mxu0 %v1657
  %v1965 = vpop.f32.mrf.mxu0
  %v1966 = vadd.f32 0.0, %v1965
  %1967 = vmatmul.f32.gmra.mxu0 %v1660
  %v1968 = vpop.f32.mrf.mxu0
  %v1969 = vadd.f32 0.0, %v1968
  %1970 = vmatmul.f32.gmra.mxu0 %v1663
  %v1971 = vpop.f32.mrf.mxu0
  %v1972 = vadd.f32 0.0, %v1971
  %1973 = vmatmul.f32.gmra.mxu0 %v1666
  %v1974 = vpop.f32.mrf.mxu0
  %v1975 = vadd.f32 0.0, %v1974
  %1976 = vmatmul.f32.gmra.mxu0 %v1669
  %v1977 = vpop.f32.mrf.mxu0
  %v1978 = vadd.f32 0.0, %v1977
  %1979 = vmatmul.f32.gmra.mxu0 %v1672
  %v1980 = vpop.f32.mrf.mxu0
  %v1981 = vadd.f32 0.0, %v1980
  %1982 = vmatmul.f32.gmra.mxu0 %v1675
  %v1983 = vpop.f32.mrf.mxu0
  %v1984 = vadd.f32 0.0, %v1983
  %1985 = vmatmul.f32.gmra.mxu0 %v1678
  %v1986 = vpop.f32.mrf.mxu0
  %v1987 = vadd.f32 0.0, %v1986
  %1988 = vmatmul.f32.gmra.mxu0 %v1681
  %v1989 = vpop.f32.mrf.mxu0
  %v1990 = vadd.f32 0.0, %v1989
  %1991 = vmatmul.f32.gmra.mxu0 %v1684
  %v1992 = vpop.f32.mrf.mxu0
  %v1993 = vadd.f32 0.0, %v1992
  %1994 = vmatmul.f32.gmra.mxu0 %v1687
  %v1995 = vpop.f32.mrf.mxu0
  %v1996 = vadd.f32 0.0, %v1995
  %1997 = vmatmul.f32.gmra.mxu0 %v1690
  %v1998 = vpop.f32.mrf.mxu0
  %v1999 = vadd.f32 0.0, %v1998
  %2000 = vmatmul.f32.gmra.mxu0 %v1693
  %v2001 = vpop.f32.mrf.mxu0
  %v2002 = vadd.f32 0.0, %v2001
  %2003 = vmatmul.f32.gmra.mxu0 %v1696
  %v2004 = vpop.f32.mrf.mxu0
  %v2005 = vadd.f32 0.0, %v2004
  %2006 = vmatmul.f32.gmra.mxu0 %v1699
  %v2007 = vpop.f32.mrf.mxu0
  %v2008 = vadd.f32 0.0, %v2007
  %2009 = vmatmul.f32.gmra.mxu0 %v1702
  %v2010 = vpop.f32.mrf.mxu0
  %v2011 = vadd.f32 0.0, %v2010
  %2012 = vdwg.mxu0
  %2013 = vmatpush.msra.mxu0 0.0
  %2014 = vmatpush.msra.mxu0 0.0
  %2015 = vmatpush.msra.mxu0 0.0
  %2016 = vmatpush.msra.mxu0 0.0
  %2017 = vmatpush.msra.mxu0 0.0
  %2018 = vmatpush.msra.mxu0 0.0
  %2019 = vmatpush.msra.mxu0 0.0
  %2020 = vmatpush.msra.mxu0 0.0
  %2021 = vmatpush.msra.mxu0 0.0
  %2022 = vmatpush.msra.mxu0 0.0
  %2023 = vmatpush.msra.mxu0 0.0
  %2024 = vmatpush.msra.mxu0 0.0
  %2025 = vmatpush.msra.mxu0 0.0
  %2026 = vmatpush.msra.mxu0 0.0
  %2027 = vmatpush.msra.mxu0 0.0
  %2028 = vmatpush.msra.mxu0 %v1718
  %2029 = vmatmul.f32.gmra.mxu0 %v1657
  %v2030 = vpop.f32.mrf.mxu0
  %v2031 = vadd.f32 0.0, %v2030
  %2032 = vmatmul.f32.gmra.mxu0 %v1660
  %v2033 = vpop.f32.mrf.mxu0
  %v2034 = vadd.f32 0.0, %v2033
  %2035 = vmatmul.f32.gmra.mxu0 %v1663
  %v2036 = vpop.f32.mrf.mxu0
  %v2037 = vadd.f32 0.0, %v2036
  %2038 = vmatmul.f32.gmra.mxu0 %v1666
  %v2039 = vpop.f32.mrf.mxu0
  %v2040 = vadd.f32 0.0, %v2039
  %2041 = vmatmul.f32.gmra.mxu0 %v1669
  %v2042 = vpop.f32.mrf.mxu0
  %v2043 = vadd.f32 0.0, %v2042
  %2044 = vmatmul.f32.gmra.mxu0 %v1672
  %v2045 = vpop.f32.mrf.mxu0
  %v2046 = vadd.f32 0.0, %v2045
  %2047 = vmatmul.f32.gmra.mxu0 %v1675
  %v2048 = vpop.f32.mrf.mxu0
  %v2049 = vadd.f32 0.0, %v2048
  %2050 = vmatmul.f32.gmra.mxu0 %v1678
  %v2051 = vpop.f32.mrf.mxu0
  %v2052 = vadd.f32 0.0, %v2051
  %2053 = vmatmul.f32.gmra.mxu0 %v1681
  %v2054 = vpop.f32.mrf.mxu0
  %v2055 = vadd.f32 0.0, %v2054
  %2056 = vmatmul.f32.gmra.mxu0 %v1684
  %v2057 = vpop.f32.mrf.mxu0
  %v2058 = vadd.f32 0.0, %v2057
  %2059 = vmatmul.f32.gmra.mxu0 %v1687
  %v2060 = vpop.f32.mrf.mxu0
  %v2061 = vadd.f32 0.0, %v2060
  %2062 = vmatmul.f32.gmra.mxu0 %v1690
  %v2063 = vpop.f32.mrf.mxu0
  %v2064 = vadd.f32 0.0, %v2063
  %2065 = vmatmul.f32.gmra.mxu0 %v1693
  %v2066 = vpop.f32.mrf.mxu0
  %v2067 = vadd.f32 0.0, %v2066
  %2068 = vmatmul.f32.gmra.mxu0 %v1696
  %v2069 = vpop.f32.mrf.mxu0
  %v2070 = vadd.f32 0.0, %v2069
  %2071 = vmatmul.f32.gmra.mxu0 %v1699
  %v2072 = vpop.f32.mrf.mxu0
  %v2073 = vadd.f32 0.0, %v2072
  %2074 = vmatmul.f32.gmra.mxu0 %v1702
  %v2075 = vpop.f32.mrf.mxu0
  %v2076 = vadd.f32 0.0, %v2075
  %2077 = vdwg.mxu0
  %2078 = vmatpush.msra.mxu0 0.0
  %2079 = vmatpush.msra.mxu0 0.0
  %2080 = vmatpush.msra.mxu0 0.0
  %2081 = vmatpush.msra.mxu0 0.0
  %2082 = vmatpush.msra.mxu0 0.0
  %2083 = vmatpush.msra.mxu0 0.0
  %2084 = vmatpush.msra.mxu0 0.0
  %2085 = vmatpush.msra.mxu0 0.0
  %2086 = vmatpush.msra.mxu0 0.0
  %2087 = vmatpush.msra.mxu0 0.0
  %2088 = vmatpush.msra.mxu0 0.0
  %2089 = vmatpush.msra.mxu0 0.0
  %2090 = vmatpush.msra.mxu0 0.0
  %2091 = vmatpush.msra.mxu0 0.0
  %2092 = vmatpush.msra.mxu0 0.0
  %2093 = vmatpush.msra.mxu0 %v1721
  %2094 = vmatmul.f32.gmra.mxu0 %v1657
  %v2095 = vpop.f32.mrf.mxu0
  %v2096 = vadd.f32 0.0, %v2095
  %2097 = vmatmul.f32.gmra.mxu0 %v1660
  %v2098 = vpop.f32.mrf.mxu0
  %v2099 = vadd.f32 0.0, %v2098
  %2100 = vmatmul.f32.gmra.mxu0 %v1663
  %v2101 = vpop.f32.mrf.mxu0
  %v2102 = vadd.f32 0.0, %v2101
  %2103 = vmatmul.f32.gmra.mxu0 %v1666
  %v2104 = vpop.f32.mrf.mxu0
  %v2105 = vadd.f32 0.0, %v2104
  %2106 = vmatmul.f32.gmra.mxu0 %v1669
  %v2107 = vpop.f32.mrf.mxu0
  %v2108 = vadd.f32 0.0, %v2107
  %2109 = vmatmul.f32.gmra.mxu0 %v1672
  %v2110 = vpop.f32.mrf.mxu0
  %v2111 = vadd.f32 0.0, %v2110
  %2112 = vmatmul.f32.gmra.mxu0 %v1675
  %v2113 = vpop.f32.mrf.mxu0
  %v2114 = vadd.f32 0.0, %v2113
  %2115 = vmatmul.f32.gmra.mxu0 %v1678
  %v2116 = vpop.f32.mrf.mxu0
  %v2117 = vadd.f32 0.0, %v2116
  %2118 = vmatmul.f32.gmra.mxu0 %v1681
  %v2119 = vpop.f32.mrf.mxu0
  %v2120 = vadd.f32 0.0, %v2119
  %2121 = vmatmul.f32.gmra.mxu0 %v1684
  %v2122 = vpop.f32.mrf.mxu0
  %v2123 = vadd.f32 0.0, %v2122
  %2124 = vmatmul.f32.gmra.mxu0 %v1687
  %v2125 = vpop.f32.mrf.mxu0
  %v2126 = vadd.f32 0.0, %v2125
  %2127 = vmatmul.f32.gmra.mxu0 %v1690
  %v2128 = vpop.f32.mrf.mxu0
  %v2129 = vadd.f32 0.0, %v2128
  %2130 = vmatmul.f32.gmra.mxu0 %v1693
  %v2131 = vpop.f32.mrf.mxu0
  %v2132 = vadd.f32 0.0, %v2131
  %2133 = vmatmul.f32.gmra.mxu0 %v1696
  %v2134 = vpop.f32.mrf.mxu0
  %v2135 = vadd.f32 0.0, %v2134
  %2136 = vmatmul.f32.gmra.mxu0 %v1699
  %v2137 = vpop.f32.mrf.mxu0
  %v2138 = vadd.f32 0.0, %v2137
  %2139 = vmatmul.f32.gmra.mxu0 %v1702
  %v2140 = vpop.f32.mrf.mxu0
  %v2141 = vadd.f32 0.0, %v2140
  %2142 = vdwg.mxu0
  %2143 = vmatpush.msra.mxu0 0.0
  %2144 = vmatpush.msra.mxu0 0.0
  %2145 = vmatpush.msra.mxu0 0.0
  %2146 = vmatpush.msra.mxu0 0.0
  %2147 = vmatpush.msra.mxu0 0.0
  %2148 = vmatpush.msra.mxu0 0.0
  %2149 = vmatpush.msra.mxu0 0.0
  %2150 = vmatpush.msra.mxu0 0.0
  %2151 = vmatpush.msra.mxu0 0.0
  %2152 = vmatpush.msra.mxu0 0.0
  %2153 = vmatpush.msra.mxu0 0.0
  %2154 = vmatpush.msra.mxu0 0.0
  %2155 = vmatpush.msra.mxu0 0.0
  %2156 = vmatpush.msra.mxu0 0.0
  %2157 = vmatpush.msra.mxu0 0.0
  %2158 = vmatpush.msra.mxu0 %v1724
  %2159 = vmatmul.f32.gmra.mxu0 %v1657
  %v2160 = vpop.f32.mrf.mxu0
  %v2161 = vadd.f32 0.0, %v2160
  %2162 = vmatmul.f32.gmra.mxu0 %v1660
  %v2163 = vpop.f32.mrf.mxu0
  %v2164 = vadd.f32 0.0, %v2163
  %2165 = vmatmul.f32.gmra.mxu0 %v1663
  %v2166 = vpop.f32.mrf.mxu0
  %v2167 = vadd.f32 0.0, %v2166
  %2168 = vmatmul.f32.gmra.mxu0 %v1666
  %v2169 = vpop.f32.mrf.mxu0
  %v2170 = vadd.f32 0.0, %v2169
  %2171 = vmatmul.f32.gmra.mxu0 %v1669
  %v2172 = vpop.f32.mrf.mxu0
  %v2173 = vadd.f32 0.0, %v2172
  %2174 = vmatmul.f32.gmra.mxu0 %v1672
  %v2175 = vpop.f32.mrf.mxu0
  %v2176 = vadd.f32 0.0, %v2175
  %2177 = vmatmul.f32.gmra.mxu0 %v1675
  %v2178 = vpop.f32.mrf.mxu0
  %v2179 = vadd.f32 0.0, %v2178
  %2180 = vmatmul.f32.gmra.mxu0 %v1678
  %v2181 = vpop.f32.mrf.mxu0
  %v2182 = vadd.f32 0.0, %v2181
  %2183 = vmatmul.f32.gmra.mxu0 %v1681
  %v2184 = vpop.f32.mrf.mxu0
  %v2185 = vadd.f32 0.0, %v2184
  %2186 = vmatmul.f32.gmra.mxu0 %v1684
  %v2187 = vpop.f32.mrf.mxu0
  %v2188 = vadd.f32 0.0, %v2187
  %2189 = vmatmul.f32.gmra.mxu0 %v1687
  %v2190 = vpop.f32.mrf.mxu0
  %v2191 = vadd.f32 0.0, %v2190
  %2192 = vmatmul.f32.gmra.mxu0 %v1690
  %v2193 = vpop.f32.mrf.mxu0
  %v2194 = vadd.f32 0.0, %v2193
  %2195 = vmatmul.f32.gmra.mxu0 %v1693
  %v2196 = vpop.f32.mrf.mxu0
  %v2197 = vadd.f32 0.0, %v2196
  %2198 = vmatmul.f32.gmra.mxu0 %v1696
  %v2199 = vpop.f32.mrf.mxu0
  %v2200 = vadd.f32 0.0, %v2199
  %2201 = vmatmul.f32.gmra.mxu0 %v1699
  %v2202 = vpop.f32.mrf.mxu0
  %v2203 = vadd.f32 0.0, %v2202
  %2204 = vmatmul.f32.gmra.mxu0 %v1702
  %v2205 = vpop.f32.mrf.mxu0
  %v2206 = vadd.f32 0.0, %v2205
  %2207 = vdwg.mxu0
  %2208 = vmatpush.msra.mxu0 0.0
  %2209 = vmatpush.msra.mxu0 0.0
  %2210 = vmatpush.msra.mxu0 0.0
  %2211 = vmatpush.msra.mxu0 0.0
  %2212 = vmatpush.msra.mxu0 0.0
  %2213 = vmatpush.msra.mxu0 0.0
  %2214 = vmatpush.msra.mxu0 0.0
  %2215 = vmatpush.msra.mxu0 0.0
  %2216 = vmatpush.msra.mxu0 0.0
  %2217 = vmatpush.msra.mxu0 0.0
  %2218 = vmatpush.msra.mxu0 0.0
  %2219 = vmatpush.msra.mxu0 0.0
  %2220 = vmatpush.msra.mxu0 0.0
  %2221 = vmatpush.msra.mxu0 0.0
  %2222 = vmatpush.msra.mxu0 0.0
  %2223 = vmatpush.msra.mxu0 %v1727
  %2224 = vmatmul.f32.gmra.mxu0 %v1657
  %v2225 = vpop.f32.mrf.mxu0
  %v2226 = vadd.f32 0.0, %v2225
  %2227 = vmatmul.f32.gmra.mxu0 %v1660
  %v2228 = vpop.f32.mrf.mxu0
  %v2229 = vadd.f32 0.0, %v2228
  %2230 = vmatmul.f32.gmra.mxu0 %v1663
  %v2231 = vpop.f32.mrf.mxu0
  %v2232 = vadd.f32 0.0, %v2231
  %2233 = vmatmul.f32.gmra.mxu0 %v1666
  %v2234 = vpop.f32.mrf.mxu0
  %v2235 = vadd.f32 0.0, %v2234
  %2236 = vmatmul.f32.gmra.mxu0 %v1669
  %v2237 = vpop.f32.mrf.mxu0
  %v2238 = vadd.f32 0.0, %v2237
  %2239 = vmatmul.f32.gmra.mxu0 %v1672
  %v2240 = vpop.f32.mrf.mxu0
  %v2241 = vadd.f32 0.0, %v2240
  %2242 = vmatmul.f32.gmra.mxu0 %v1675
  %v2243 = vpop.f32.mrf.mxu0
  %v2244 = vadd.f32 0.0, %v2243
  %2245 = vmatmul.f32.gmra.mxu0 %v1678
  %v2246 = vpop.f32.mrf.mxu0
  %v2247 = vadd.f32 0.0, %v2246
  %2248 = vmatmul.f32.gmra.mxu0 %v1681
  %v2249 = vpop.f32.mrf.mxu0
  %v2250 = vadd.f32 0.0, %v2249
  %2251 = vmatmul.f32.gmra.mxu0 %v1684
  %v2252 = vpop.f32.mrf.mxu0
  %v2253 = vadd.f32 0.0, %v2252
  %2254 = vmatmul.f32.gmra.mxu0 %v1687
  %v2255 = vpop.f32.mrf.mxu0
  %v2256 = vadd.f32 0.0, %v2255
  %2257 = vmatmul.f32.gmra.mxu0 %v1690
  %v2258 = vpop.f32.mrf.mxu0
  %v2259 = vadd.f32 0.0, %v2258
  %2260 = vmatmul.f32.gmra.mxu0 %v1693
  %v2261 = vpop.f32.mrf.mxu0
  %v2262 = vadd.f32 0.0, %v2261
  %2263 = vmatmul.f32.gmra.mxu0 %v1696
  %v2264 = vpop.f32.mrf.mxu0
  %v2265 = vadd.f32 0.0, %v2264
  %2266 = vmatmul.f32.gmra.mxu0 %v1699
  %v2267 = vpop.f32.mrf.mxu0
  %v2268 = vadd.f32 0.0, %v2267
  %2269 = vmatmul.f32.gmra.mxu0 %v1702
  %v2270 = vpop.f32.mrf.mxu0
  %v2271 = vadd.f32 0.0, %v2270
  %2272 = vdwg.mxu0
  %2273 = vmatpush.msra.mxu0 0.0
  %2274 = vmatpush.msra.mxu0 0.0
  %2275 = vmatpush.msra.mxu0 0.0
  %2276 = vmatpush.msra.mxu0 0.0
  %2277 = vmatpush.msra.mxu0 0.0
  %2278 = vmatpush.msra.mxu0 0.0
  %2279 = vmatpush.msra.mxu0 0.0
  %2280 = vmatpush.msra.mxu0 0.0
  %2281 = vmatpush.msra.mxu0 0.0
  %2282 = vmatpush.msra.mxu0 0.0
  %2283 = vmatpush.msra.mxu0 0.0
  %2284 = vmatpush.msra.mxu0 0.0
  %2285 = vmatpush.msra.mxu0 0.0
  %2286 = vmatpush.msra.mxu0 0.0
  %2287 = vmatpush.msra.mxu0 0.0
  %2288 = vmatpush.msra.mxu0 %v1730
  %2289 = vmatmul.f32.gmra.mxu0 %v1657
  %v2290 = vpop.f32.mrf.mxu0
  %v2291 = vadd.f32 0.0, %v2290
  %2292 = vmatmul.f32.gmra.mxu0 %v1660
  %v2293 = vpop.f32.mrf.mxu0
  %v2294 = vadd.f32 0.0, %v2293
  %2295 = vmatmul.f32.gmra.mxu0 %v1663
  %v2296 = vpop.f32.mrf.mxu0
  %v2297 = vadd.f32 0.0, %v2296
  %2298 = vmatmul.f32.gmra.mxu0 %v1666
  %v2299 = vpop.f32.mrf.mxu0
  %v2300 = vadd.f32 0.0, %v2299
  %2301 = vmatmul.f32.gmra.mxu0 %v1669
  %v2302 = vpop.f32.mrf.mxu0
  %v2303 = vadd.f32 0.0, %v2302
  %2304 = vmatmul.f32.gmra.mxu0 %v1672
  %v2305 = vpop.f32.mrf.mxu0
  %v2306 = vadd.f32 0.0, %v2305
  %2307 = vmatmul.f32.gmra.mxu0 %v1675
  %v2308 = vpop.f32.mrf.mxu0
  %v2309 = vadd.f32 0.0, %v2308
  %2310 = vmatmul.f32.gmra.mxu0 %v1678
  %v2311 = vpop.f32.mrf.mxu0
  %v2312 = vadd.f32 0.0, %v2311
  %2313 = vmatmul.f32.gmra.mxu0 %v1681
  %v2314 = vpop.f32.mrf.mxu0
  %v2315 = vadd.f32 0.0, %v2314
  %2316 = vmatmul.f32.gmra.mxu0 %v1684
  %v2317 = vpop.f32.mrf.mxu0
  %v2318 = vadd.f32 0.0, %v2317
  %2319 = vmatmul.f32.gmra.mxu0 %v1687
  %v2320 = vpop.f32.mrf.mxu0
  %v2321 = vadd.f32 0.0, %v2320
  %2322 = vmatmul.f32.gmra.mxu0 %v1690
  %v2323 = vpop.f32.mrf.mxu0
  %v2324 = vadd.f32 0.0, %v2323
  %2325 = vmatmul.f32.gmra.mxu0 %v1693
  %v2326 = vpop.f32.mrf.mxu0
  %v2327 = vadd.f32 0.0, %v2326
  %2328 = vmatmul.f32.gmra.mxu0 %v1696
  %v2329 = vpop.f32.mrf.mxu0
  %v2330 = vadd.f32 0.0, %v2329
  %2331 = vmatmul.f32.gmra.mxu0 %v1699
  %v2332 = vpop.f32.mrf.mxu0
  %v2333 = vadd.f32 0.0, %v2332
  %2334 = vmatmul.f32.gmra.mxu0 %v1702
  %v2335 = vpop.f32.mrf.mxu0
  %v2336 = vadd.f32 0.0, %v2335
  %2337 = vdwg.mxu0
  %2338 = vmatpush.msra.mxu0 0.0
  %2339 = vmatpush.msra.mxu0 0.0
  %2340 = vmatpush.msra.mxu0 0.0
  %2341 = vmatpush.msra.mxu0 0.0
  %2342 = vmatpush.msra.mxu0 0.0
  %2343 = vmatpush.msra.mxu0 0.0
  %2344 = vmatpush.msra.mxu0 0.0
  %2345 = vmatpush.msra.mxu0 0.0
  %2346 = vmatpush.msra.mxu0 0.0
  %2347 = vmatpush.msra.mxu0 0.0
  %2348 = vmatpush.msra.mxu0 0.0
  %2349 = vmatpush.msra.mxu0 0.0
  %2350 = vmatpush.msra.mxu0 0.0
  %2351 = vmatpush.msra.mxu0 0.0
  %2352 = vmatpush.msra.mxu0 0.0
  %2353 = vmatpush.msra.mxu0 %v1733
  %2354 = vmatmul.f32.gmra.mxu0 %v1657
  %v2355 = vpop.f32.mrf.mxu0
  %v2356 = vadd.f32 0.0, %v2355
  %2357 = vmatmul.f32.gmra.mxu0 %v1660
  %v2358 = vpop.f32.mrf.mxu0
  %v2359 = vadd.f32 0.0, %v2358
  %2360 = vmatmul.f32.gmra.mxu0 %v1663
  %v2361 = vpop.f32.mrf.mxu0
  %v2362 = vadd.f32 0.0, %v2361
  %2363 = vmatmul.f32.gmra.mxu0 %v1666
  %v2364 = vpop.f32.mrf.mxu0
  %v2365 = vadd.f32 0.0, %v2364
  %2366 = vmatmul.f32.gmra.mxu0 %v1669
  %v2367 = vpop.f32.mrf.mxu0
  %v2368 = vadd.f32 0.0, %v2367
  %2369 = vmatmul.f32.gmra.mxu0 %v1672
  %v2370 = vpop.f32.mrf.mxu0
  %v2371 = vadd.f32 0.0, %v2370
  %2372 = vmatmul.f32.gmra.mxu0 %v1675
  %v2373 = vpop.f32.mrf.mxu0
  %v2374 = vadd.f32 0.0, %v2373
  %2375 = vmatmul.f32.gmra.mxu0 %v1678
  %v2376 = vpop.f32.mrf.mxu0
  %v2377 = vadd.f32 0.0, %v2376
  %2378 = vmatmul.f32.gmra.mxu0 %v1681
  %v2379 = vpop.f32.mrf.mxu0
  %v2380 = vadd.f32 0.0, %v2379
  %2381 = vmatmul.f32.gmra.mxu0 %v1684
  %v2382 = vpop.f32.mrf.mxu0
  %v2383 = vadd.f32 0.0, %v2382
  %2384 = vmatmul.f32.gmra.mxu0 %v1687
  %v2385 = vpop.f32.mrf.mxu0
  %v2386 = vadd.f32 0.0, %v2385
  %2387 = vmatmul.f32.gmra.mxu0 %v1690
  %v2388 = vpop.f32.mrf.mxu0
  %v2389 = vadd.f32 0.0, %v2388
  %2390 = vmatmul.f32.gmra.mxu0 %v1693
  %v2391 = vpop.f32.mrf.mxu0
  %v2392 = vadd.f32 0.0, %v2391
  %2393 = vmatmul.f32.gmra.mxu0 %v1696
  %v2394 = vpop.f32.mrf.mxu0
  %v2395 = vadd.f32 0.0, %v2394
  %2396 = vmatmul.f32.gmra.mxu0 %v1699
  %v2397 = vpop.f32.mrf.mxu0
  %v2398 = vadd.f32 0.0, %v2397
  %2399 = vmatmul.f32.gmra.mxu0 %v1702
  %v2400 = vpop.f32.mrf.mxu0
  %v2401 = vadd.f32 0.0, %v2400
  %2402 = vdwg.mxu0
  %2403 = vmatpush.msra.mxu0 0.0
  %2404 = vmatpush.msra.mxu0 0.0
  %2405 = vmatpush.msra.mxu0 0.0
  %2406 = vmatpush.msra.mxu0 0.0
  %2407 = vmatpush.msra.mxu0 0.0
  %2408 = vmatpush.msra.mxu0 0.0
  %2409 = vmatpush.msra.mxu0 0.0
  %2410 = vmatpush.msra.mxu0 0.0
  %2411 = vmatpush.msra.mxu0 0.0
  %2412 = vmatpush.msra.mxu0 0.0
  %2413 = vmatpush.msra.mxu0 0.0
  %2414 = vmatpush.msra.mxu0 0.0
  %2415 = vmatpush.msra.mxu0 0.0
  %2416 = vmatpush.msra.mxu0 0.0
  %2417 = vmatpush.msra.mxu0 0.0
  %2418 = vmatpush.msra.mxu0 %v1736
  %2419 = vmatmul.f32.gmra.mxu0 %v1657
  %v2420 = vpop.f32.mrf.mxu0
  %v2421 = vadd.f32 0.0, %v2420
  %2422 = vmatmul.f32.gmra.mxu0 %v1660
  %v2423 = vpop.f32.mrf.mxu0
  %v2424 = vadd.f32 0.0, %v2423
  %2425 = vmatmul.f32.gmra.mxu0 %v1663
  %v2426 = vpop.f32.mrf.mxu0
  %v2427 = vadd.f32 0.0, %v2426
  %2428 = vmatmul.f32.gmra.mxu0 %v1666
  %v2429 = vpop.f32.mrf.mxu0
  %v2430 = vadd.f32 0.0, %v2429
  %2431 = vmatmul.f32.gmra.mxu0 %v1669
  %v2432 = vpop.f32.mrf.mxu0
  %v2433 = vadd.f32 0.0, %v2432
  %2434 = vmatmul.f32.gmra.mxu0 %v1672
  %v2435 = vpop.f32.mrf.mxu0
  %v2436 = vadd.f32 0.0, %v2435
  %2437 = vmatmul.f32.gmra.mxu0 %v1675
  %v2438 = vpop.f32.mrf.mxu0
  %v2439 = vadd.f32 0.0, %v2438
  %2440 = vmatmul.f32.gmra.mxu0 %v1678
  %v2441 = vpop.f32.mrf.mxu0
  %v2442 = vadd.f32 0.0, %v2441
  %2443 = vmatmul.f32.gmra.mxu0 %v1681
  %v2444 = vpop.f32.mrf.mxu0
  %v2445 = vadd.f32 0.0, %v2444
  %2446 = vmatmul.f32.gmra.mxu0 %v1684
  %v2447 = vpop.f32.mrf.mxu0
  %v2448 = vadd.f32 0.0, %v2447
  %2449 = vmatmul.f32.gmra.mxu0 %v1687
  %v2450 = vpop.f32.mrf.mxu0
  %v2451 = vadd.f32 0.0, %v2450
  %2452 = vmatmul.f32.gmra.mxu0 %v1690
  %v2453 = vpop.f32.mrf.mxu0
  %v2454 = vadd.f32 0.0, %v2453
  %2455 = vmatmul.f32.gmra.mxu0 %v1693
  %v2456 = vpop.f32.mrf.mxu0
  %v2457 = vadd.f32 0.0, %v2456
  %2458 = vmatmul.f32.gmra.mxu0 %v1696
  %v2459 = vpop.f32.mrf.mxu0
  %v2460 = vadd.f32 0.0, %v2459
  %2461 = vmatmul.f32.gmra.mxu0 %v1699
  %v2462 = vpop.f32.mrf.mxu0
  %v2463 = vadd.f32 0.0, %v2462
  %2464 = vmatmul.f32.gmra.mxu0 %v1702
  %v2465 = vpop.f32.mrf.mxu0
  %v2466 = vadd.f32 0.0, %v2465
  %2467 = vdwg.mxu0
  %2468 = vmatpush.msra.mxu0 0.0
  %2469 = vmatpush.msra.mxu0 0.0
  %2470 = vmatpush.msra.mxu0 0.0
  %2471 = vmatpush.msra.mxu0 0.0
  %2472 = vmatpush.msra.mxu0 0.0
  %2473 = vmatpush.msra.mxu0 0.0
  %2474 = vmatpush.msra.mxu0 0.0
  %2475 = vmatpush.msra.mxu0 0.0
  %2476 = vmatpush.msra.mxu0 0.0
  %2477 = vmatpush.msra.mxu0 0.0
  %2478 = vmatpush.msra.mxu0 0.0
  %2479 = vmatpush.msra.mxu0 0.0
  %2480 = vmatpush.msra.mxu0 0.0
  %2481 = vmatpush.msra.mxu0 0.0
  %2482 = vmatpush.msra.mxu0 0.0
  %2483 = vmatpush.msra.mxu0 %v1739
  %2484 = vmatmul.f32.gmra.mxu0 %v1657
  %v2485 = vpop.f32.mrf.mxu0
  %v2486 = vadd.f32 0.0, %v2485
  %2487 = vmatmul.f32.gmra.mxu0 %v1660
  %v2488 = vpop.f32.mrf.mxu0
  %v2489 = vadd.f32 0.0, %v2488
  %2490 = vmatmul.f32.gmra.mxu0 %v1663
  %v2491 = vpop.f32.mrf.mxu0
  %v2492 = vadd.f32 0.0, %v2491
  %2493 = vmatmul.f32.gmra.mxu0 %v1666
  %v2494 = vpop.f32.mrf.mxu0
  %v2495 = vadd.f32 0.0, %v2494
  %2496 = vmatmul.f32.gmra.mxu0 %v1669
  %v2497 = vpop.f32.mrf.mxu0
  %v2498 = vadd.f32 0.0, %v2497
  %2499 = vmatmul.f32.gmra.mxu0 %v1672
  %v2500 = vpop.f32.mrf.mxu0
  %v2501 = vadd.f32 0.0, %v2500
  %2502 = vmatmul.f32.gmra.mxu0 %v1675
  %v2503 = vpop.f32.mrf.mxu0
  %v2504 = vadd.f32 0.0, %v2503
  %2505 = vmatmul.f32.gmra.mxu0 %v1678
  %v2506 = vpop.f32.mrf.mxu0
  %v2507 = vadd.f32 0.0, %v2506
  %2508 = vmatmul.f32.gmra.mxu0 %v1681
  %v2509 = vpop.f32.mrf.mxu0
  %v2510 = vadd.f32 0.0, %v2509
  %2511 = vmatmul.f32.gmra.mxu0 %v1684
  %v2512 = vpop.f32.mrf.mxu0
  %v2513 = vadd.f32 0.0, %v2512
  %2514 = vmatmul.f32.gmra.mxu0 %v1687
  %v2515 = vpop.f32.mrf.mxu0
  %v2516 = vadd.f32 0.0, %v2515
  %2517 = vmatmul.f32.gmra.mxu0 %v1690
  %v2518 = vpop.f32.mrf.mxu0
  %v2519 = vadd.f32 0.0, %v2518
  %2520 = vmatmul.f32.gmra.mxu0 %v1693
  %v2521 = vpop.f32.mrf.mxu0
  %v2522 = vadd.f32 0.0, %v2521
  %2523 = vmatmul.f32.gmra.mxu0 %v1696
  %v2524 = vpop.f32.mrf.mxu0
  %v2525 = vadd.f32 0.0, %v2524
  %2526 = vmatmul.f32.gmra.mxu0 %v1699
  %v2527 = vpop.f32.mrf.mxu0
  %v2528 = vadd.f32 0.0, %v2527
  %2529 = vmatmul.f32.gmra.mxu0 %v1702
  %v2530 = vpop.f32.mrf.mxu0
  %v2531 = vadd.f32 0.0, %v2530
  %2532 = vdwg.mxu0
  %2533 = vmatpush.msra.mxu0 0.0
  %2534 = vmatpush.msra.mxu0 0.0
  %2535 = vmatpush.msra.mxu0 0.0
  %2536 = vmatpush.msra.mxu0 0.0
  %2537 = vmatpush.msra.mxu0 0.0
  %2538 = vmatpush.msra.mxu0 0.0
  %2539 = vmatpush.msra.mxu0 0.0
  %2540 = vmatpush.msra.mxu0 0.0
  %2541 = vmatpush.msra.mxu0 0.0
  %2542 = vmatpush.msra.mxu0 0.0
  %2543 = vmatpush.msra.mxu0 0.0
  %2544 = vmatpush.msra.mxu0 0.0
  %2545 = vmatpush.msra.mxu0 0.0
  %2546 = vmatpush.msra.mxu0 0.0
  %2547 = vmatpush.msra.mxu0 0.0
  %2548 = vmatpush.msra.mxu0 %v1742
  %2549 = vmatmul.f32.gmra.mxu0 %v1657
  %v2550 = vpop.f32.mrf.mxu0
  %v2551 = vadd.f32 0.0, %v2550
  %2552 = vmatmul.f32.gmra.mxu0 %v1660
  %v2553 = vpop.f32.mrf.mxu0
  %v2554 = vadd.f32 0.0, %v2553
  %2555 = vmatmul.f32.gmra.mxu0 %v1663
  %v2556 = vpop.f32.mrf.mxu0
  %v2557 = vadd.f32 0.0, %v2556
  %2558 = vmatmul.f32.gmra.mxu0 %v1666
  %v2559 = vpop.f32.mrf.mxu0
  %v2560 = vadd.f32 0.0, %v2559
  %2561 = vmatmul.f32.gmra.mxu0 %v1669
  %v2562 = vpop.f32.mrf.mxu0
  %v2563 = vadd.f32 0.0, %v2562
  %2564 = vmatmul.f32.gmra.mxu0 %v1672
  %v2565 = vpop.f32.mrf.mxu0
  %v2566 = vadd.f32 0.0, %v2565
  %2567 = vmatmul.f32.gmra.mxu0 %v1675
  %v2568 = vpop.f32.mrf.mxu0
  %v2569 = vadd.f32 0.0, %v2568
  %2570 = vmatmul.f32.gmra.mxu0 %v1678
  %v2571 = vpop.f32.mrf.mxu0
  %v2572 = vadd.f32 0.0, %v2571
  %2573 = vmatmul.f32.gmra.mxu0 %v1681
  %v2574 = vpop.f32.mrf.mxu0
  %v2575 = vadd.f32 0.0, %v2574
  %2576 = vmatmul.f32.gmra.mxu0 %v1684
  %v2577 = vpop.f32.mrf.mxu0
  %v2578 = vadd.f32 0.0, %v2577
  %2579 = vmatmul.f32.gmra.mxu0 %v1687
  %v2580 = vpop.f32.mrf.mxu0
  %v2581 = vadd.f32 0.0, %v2580
  %2582 = vmatmul.f32.gmra.mxu0 %v1690
  %v2583 = vpop.f32.mrf.mxu0
  %v2584 = vadd.f32 0.0, %v2583
  %2585 = vmatmul.f32.gmra.mxu0 %v1693
  %v2586 = vpop.f32.mrf.mxu0
  %v2587 = vadd.f32 0.0, %v2586
  %2588 = vmatmul.f32.gmra.mxu0 %v1696
  %v2589 = vpop.f32.mrf.mxu0
  %v2590 = vadd.f32 0.0, %v2589
  %2591 = vmatmul.f32.gmra.mxu0 %v1699
  %v2592 = vpop.f32.mrf.mxu0
  %v2593 = vadd.f32 0.0, %v2592
  %2594 = vmatmul.f32.gmra.mxu0 %v1702
  %v2595 = vpop.f32.mrf.mxu0
  %v2596 = vadd.f32 0.0, %v2595
  %2597 = vdwg.mxu0
  %2598 = vmatpush.msra.mxu0 0.0
  %2599 = vmatpush.msra.mxu0 0.0
  %2600 = vmatpush.msra.mxu0 0.0
  %2601 = vmatpush.msra.mxu0 0.0
  %2602 = vmatpush.msra.mxu0 0.0
  %2603 = vmatpush.msra.mxu0 0.0
  %2604 = vmatpush.msra.mxu0 0.0
  %2605 = vmatpush.msra.mxu0 0.0
  %2606 = vmatpush.msra.mxu0 0.0
  %2607 = vmatpush.msra.mxu0 0.0
  %2608 = vmatpush.msra.mxu0 0.0
  %2609 = vmatpush.msra.mxu0 0.0
  %2610 = vmatpush.msra.mxu0 0.0
  %2611 = vmatpush.msra.mxu0 0.0
  %2612 = vmatpush.msra.mxu0 0.0
  %2613 = vmatpush.msra.mxu0 %v1745
  %2614 = vmatmul.f32.gmra.mxu0 %v1657
  %v2615 = vpop.f32.mrf.mxu0
  %v2616 = vadd.f32 0.0, %v2615
  %2617 = vmatmul.f32.gmra.mxu0 %v1660
  %v2618 = vpop.f32.mrf.mxu0
  %v2619 = vadd.f32 0.0, %v2618
  %2620 = vmatmul.f32.gmra.mxu0 %v1663
  %v2621 = vpop.f32.mrf.mxu0
  %v2622 = vadd.f32 0.0, %v2621
  %2623 = vmatmul.f32.gmra.mxu0 %v1666
  %v2624 = vpop.f32.mrf.mxu0
  %v2625 = vadd.f32 0.0, %v2624
  %2626 = vmatmul.f32.gmra.mxu0 %v1669
  %v2627 = vpop.f32.mrf.mxu0
  %v2628 = vadd.f32 0.0, %v2627
  %2629 = vmatmul.f32.gmra.mxu0 %v1672
  %v2630 = vpop.f32.mrf.mxu0
  %v2631 = vadd.f32 0.0, %v2630
  %2632 = vmatmul.f32.gmra.mxu0 %v1675
  %v2633 = vpop.f32.mrf.mxu0
  %v2634 = vadd.f32 0.0, %v2633
  %2635 = vmatmul.f32.gmra.mxu0 %v1678
  %v2636 = vpop.f32.mrf.mxu0
  %v2637 = vadd.f32 0.0, %v2636
  %2638 = vmatmul.f32.gmra.mxu0 %v1681
  %v2639 = vpop.f32.mrf.mxu0
  %v2640 = vadd.f32 0.0, %v2639
  %2641 = vmatmul.f32.gmra.mxu0 %v1684
  %v2642 = vpop.f32.mrf.mxu0
  %v2643 = vadd.f32 0.0, %v2642
  %2644 = vmatmul.f32.gmra.mxu0 %v1687
  %v2645 = vpop.f32.mrf.mxu0
  %v2646 = vadd.f32 0.0, %v2645
  %2647 = vmatmul.f32.gmra.mxu0 %v1690
  %v2648 = vpop.f32.mrf.mxu0
  %v2649 = vadd.f32 0.0, %v2648
  %2650 = vmatmul.f32.gmra.mxu0 %v1693
  %v2651 = vpop.f32.mrf.mxu0
  %v2652 = vadd.f32 0.0, %v2651
  %2653 = vmatmul.f32.gmra.mxu0 %v1696
  %v2654 = vpop.f32.mrf.mxu0
  %v2655 = vadd.f32 0.0, %v2654
  %2656 = vmatmul.f32.gmra.mxu0 %v1699
  %v2657 = vpop.f32.mrf.mxu0
  %v2658 = vadd.f32 0.0, %v2657
  %2659 = vmatmul.f32.gmra.mxu0 %v1702
  %v2660 = vpop.f32.mrf.mxu0
  %v2661 = vadd.f32 0.0, %v2660
  %2662 = vdwg.mxu0
  %2663 = vmatpush.msra.mxu0 0.0
  %2664 = vmatpush.msra.mxu0 0.0
  %2665 = vmatpush.msra.mxu0 0.0
  %2666 = vmatpush.msra.mxu0 0.0
  %2667 = vmatpush.msra.mxu0 0.0
  %2668 = vmatpush.msra.mxu0 0.0
  %2669 = vmatpush.msra.mxu0 0.0
  %2670 = vmatpush.msra.mxu0 0.0
  %2671 = vmatpush.msra.mxu0 0.0
  %2672 = vmatpush.msra.mxu0 0.0
  %2673 = vmatpush.msra.mxu0 0.0
  %2674 = vmatpush.msra.mxu0 0.0
  %2675 = vmatpush.msra.mxu0 0.0
  %2676 = vmatpush.msra.mxu0 0.0
  %2677 = vmatpush.msra.mxu0 0.0
  %2678 = vmatpush.msra.mxu0 %v1748
  %2679 = vmatmul.f32.gmra.mxu0 %v1657
  %v2680 = vpop.f32.mrf.mxu0
  %v2681 = vadd.f32 0.0, %v2680
  %2682 = vmatmul.f32.gmra.mxu0 %v1660
  %v2683 = vpop.f32.mrf.mxu0
  %v2684 = vadd.f32 0.0, %v2683
  %2685 = vmatmul.f32.gmra.mxu0 %v1663
  %v2686 = vpop.f32.mrf.mxu0
  %v2687 = vadd.f32 0.0, %v2686
  %2688 = vmatmul.f32.gmra.mxu0 %v1666
  %v2689 = vpop.f32.mrf.mxu0
  %v2690 = vadd.f32 0.0, %v2689
  %2691 = vmatmul.f32.gmra.mxu0 %v1669
  %v2692 = vpop.f32.mrf.mxu0
  %v2693 = vadd.f32 0.0, %v2692
  %2694 = vmatmul.f32.gmra.mxu0 %v1672
  %v2695 = vpop.f32.mrf.mxu0
  %v2696 = vadd.f32 0.0, %v2695
  %2697 = vmatmul.f32.gmra.mxu0 %v1675
  %v2698 = vpop.f32.mrf.mxu0
  %v2699 = vadd.f32 0.0, %v2698
  %2700 = vmatmul.f32.gmra.mxu0 %v1678
  %v2701 = vpop.f32.mrf.mxu0
  %v2702 = vadd.f32 0.0, %v2701
  %2703 = vmatmul.f32.gmra.mxu0 %v1681
  %v2704 = vpop.f32.mrf.mxu0
  %v2705 = vadd.f32 0.0, %v2704
  %2706 = vmatmul.f32.gmra.mxu0 %v1684
  %v2707 = vpop.f32.mrf.mxu0
  %v2708 = vadd.f32 0.0, %v2707
  %2709 = vmatmul.f32.gmra.mxu0 %v1687
  %v2710 = vpop.f32.mrf.mxu0
  %v2711 = vadd.f32 0.0, %v2710
  %2712 = vmatmul.f32.gmra.mxu0 %v1690
  %v2713 = vpop.f32.mrf.mxu0
  %v2714 = vadd.f32 0.0, %v2713
  %2715 = vmatmul.f32.gmra.mxu0 %v1693
  %v2716 = vpop.f32.mrf.mxu0
  %v2717 = vadd.f32 0.0, %v2716
  %2718 = vmatmul.f32.gmra.mxu0 %v1696
  %v2719 = vpop.f32.mrf.mxu0
  %v2720 = vadd.f32 0.0, %v2719
  %2721 = vmatmul.f32.gmra.mxu0 %v1699
  %v2722 = vpop.f32.mrf.mxu0
  %v2723 = vadd.f32 0.0, %v2722
  %2724 = vmatmul.f32.gmra.mxu0 %v1702
  %v2725 = vpop.f32.mrf.mxu0
  %v2726 = vadd.f32 0.0, %v2725
  %2727 = vdwg.mxu0
  %2728 = vmatpush.msra.mxu0 0.0
  %2729 = vmatpush.msra.mxu0 0.0
  %2730 = vmatpush.msra.mxu0 0.0
  %2731 = vmatpush.msra.mxu0 0.0
  %2732 = vmatpush.msra.mxu0 0.0
  %2733 = vmatpush.msra.mxu0 0.0
  %2734 = vmatpush.msra.mxu0 0.0
  %2735 = vmatpush.msra.mxu0 0.0
  %2736 = vmatpush.msra.mxu0 0.0
  %2737 = vmatpush.msra.mxu0 0.0
  %2738 = vmatpush.msra.mxu0 0.0
  %2739 = vmatpush.msra.mxu0 0.0
  %2740 = vmatpush.msra.mxu0 0.0
  %2741 = vmatpush.msra.mxu0 0.0
  %2742 = vmatpush.msra.mxu0 0.0
  %2743 = vmatpush.msra.mxu0 %v1751
  %2744 = vmatmul.f32.gmra.mxu0 %v1657
  %v2745 = vpop.f32.mrf.mxu0
  %v2746 = vadd.f32 0.0, %v2745
  %2747 = vmatmul.f32.gmra.mxu0 %v1660
  %v2748 = vpop.f32.mrf.mxu0
  %v2749 = vadd.f32 0.0, %v2748
  %2750 = vmatmul.f32.gmra.mxu0 %v1663
  %v2751 = vpop.f32.mrf.mxu0
  %v2752 = vadd.f32 0.0, %v2751
  %2753 = vmatmul.f32.gmra.mxu0 %v1666
  %v2754 = vpop.f32.mrf.mxu0
  %v2755 = vadd.f32 0.0, %v2754
  %2756 = vmatmul.f32.gmra.mxu0 %v1669
  %v2757 = vpop.f32.mrf.mxu0
  %v2758 = vadd.f32 0.0, %v2757
  %2759 = vmatmul.f32.gmra.mxu0 %v1672
  %v2760 = vpop.f32.mrf.mxu0
  %v2761 = vadd.f32 0.0, %v2760
  %2762 = vmatmul.f32.gmra.mxu0 %v1675
  %v2763 = vpop.f32.mrf.mxu0
  %v2764 = vadd.f32 0.0, %v2763
  %2765 = vmatmul.f32.gmra.mxu0 %v1678
  %v2766 = vpop.f32.mrf.mxu0
  %v2767 = vadd.f32 0.0, %v2766
  %2768 = vmatmul.f32.gmra.mxu0 %v1681
  %v2769 = vpop.f32.mrf.mxu0
  %v2770 = vadd.f32 0.0, %v2769
  %2771 = vmatmul.f32.gmra.mxu0 %v1684
  %v2772 = vpop.f32.mrf.mxu0
  %v2773 = vadd.f32 0.0, %v2772
  %2774 = vmatmul.f32.gmra.mxu0 %v1687
  %v2775 = vpop.f32.mrf.mxu0
  %v2776 = vadd.f32 0.0, %v2775
  %2777 = vmatmul.f32.gmra.mxu0 %v1690
  %v2778 = vpop.f32.mrf.mxu0
  %v2779 = vadd.f32 0.0, %v2778
  %2780 = vmatmul.f32.gmra.mxu0 %v1693
  %v2781 = vpop.f32.mrf.mxu0
  %v2782 = vadd.f32 0.0, %v2781
  %2783 = vmatmul.f32.gmra.mxu0 %v1696
  %v2784 = vpop.f32.mrf.mxu0
  %v2785 = vadd.f32 0.0, %v2784
  %2786 = vmatmul.f32.gmra.mxu0 %v1699
  %v2787 = vpop.f32.mrf.mxu0
  %v2788 = vadd.f32 0.0, %v2787
  %2789 = vmatmul.f32.gmra.mxu0 %v1702
  %v2790 = vpop.f32.mrf.mxu0
  %v2791 = vadd.f32 0.0, %v2790
  %2792 = vdwg.mxu0
  %v2793 = vmax.f32 %v1771, 0.0
  %v2794 = vmax.f32 %v1836, 0.0
  %v2795 = vmax.f32 %v1901, 0.0
  %v2796 = vmax.f32 %v1966, 0.0
  %v2797 = vmax.f32 %v2031, 0.0
  %v2798 = vmax.f32 %v2096, 0.0
  %v2799 = vmax.f32 %v2161, 0.0
  %v2800 = vmax.f32 %v2226, 0.0
  %v2801 = vmax.f32 %v2291, 0.0
  %v2802 = vmax.f32 %v2356, 0.0
  %v2803 = vmax.f32 %v2421, 0.0
  %v2804 = vmax.f32 %v2486, 0.0
  %v2805 = vmax.f32 %v2551, 0.0
  %v2806 = vmax.f32 %v2616, 0.0
  %v2807 = vmax.f32 %v2681, 0.0
  %v2808 = vmax.f32 %v2746, 0.0
  %v2809 = vmax.f32 %v1774, 0.0
  %v2810 = vmax.f32 %v1839, 0.0
  %v2811 = vmax.f32 %v1904, 0.0
  %v2812 = vmax.f32 %v1969, 0.0
  %v2813 = vmax.f32 %v2034, 0.0
  %v2814 = vmax.f32 %v2099, 0.0
  %v2815 = vmax.f32 %v2164, 0.0
  %v2816 = vmax.f32 %v2229, 0.0
  %v2817 = vmax.f32 %v2294, 0.0
  %v2818 = vmax.f32 %v2359, 0.0
  %v2819 = vmax.f32 %v2424, 0.0
  %v2820 = vmax.f32 %v2489, 0.0
  %v2821 = vmax.f32 %v2554, 0.0
  %v2822 = vmax.f32 %v2619, 0.0
  %v2823 = vmax.f32 %v2684, 0.0
  %v2824 = vmax.f32 %v2749, 0.0
  %v2825 = vmax.f32 %v1777, 0.0
  %v2826 = vmax.f32 %v1842, 0.0
  %v2827 = vmax.f32 %v1907, 0.0
  %v2828 = vmax.f32 %v1972, 0.0
  %v2829 = vmax.f32 %v2037, 0.0
  %v2830 = vmax.f32 %v2102, 0.0
  %v2831 = vmax.f32 %v2167, 0.0
  %v2832 = vmax.f32 %v2232, 0.0
  %v2833 = vmax.f32 %v2297, 0.0
  %v2834 = vmax.f32 %v2362, 0.0
  %v2835 = vmax.f32 %v2427, 0.0
  %v2836 = vmax.f32 %v2492, 0.0
  %v2837 = vmax.f32 %v2557, 0.0
  %v2838 = vmax.f32 %v2622, 0.0
  %v2839 = vmax.f32 %v2687, 0.0
  %v2840 = vmax.f32 %v2752, 0.0
  %v2841 = vmax.f32 %v1780, 0.0
  %v2842 = vmax.f32 %v1845, 0.0
  %v2843 = vmax.f32 %v1910, 0.0
  %v2844 = vmax.f32 %v1975, 0.0
  %v2845 = vmax.f32 %v2040, 0.0
  %v2846 = vmax.f32 %v2105, 0.0
  %v2847 = vmax.f32 %v2170, 0.0
  %v2848 = vmax.f32 %v2235, 0.0
  %v2849 = vmax.f32 %v2300, 0.0
  %v2850 = vmax.f32 %v2365, 0.0
  %v2851 = vmax.f32 %v2430, 0.0
  %v2852 = vmax.f32 %v2495, 0.0
  %v2853 = vmax.f32 %v2560, 0.0
  %v2854 = vmax.f32 %v2625, 0.0
  %v2855 = vmax.f32 %v2690, 0.0
  %v2856 = vmax.f32 %v2755, 0.0
  %v2857 = vmax.f32 %v1783, 0.0
  %v2858 = vmax.f32 %v1848, 0.0
  %v2859 = vmax.f32 %v1913, 0.0
  %v2860 = vmax.f32 %v1978, 0.0
  %v2861 = vmax.f32 %v2043, 0.0
  %v2862 = vmax.f32 %v2108, 0.0
  %v2863 = vmax.f32 %v2173, 0.0
  %v2864 = vmax.f32 %v2238, 0.0
  %v2865 = vmax.f32 %v2303, 0.0
  %v2866 = vmax.f32 %v2368, 0.0
  %v2867 = vmax.f32 %v2433, 0.0
  %v2868 = vmax.f32 %v2498, 0.0
  %v2869 = vmax.f32 %v2563, 0.0
  %v2870 = vmax.f32 %v2628, 0.0
  %v2871 = vmax.f32 %v2693, 0.0
  %v2872 = vmax.f32 %v2758, 0.0
  %v2873 = vmax.f32 %v1786, 0.0
  %v2874 = vmax.f32 %v1851, 0.0
  %v2875 = vmax.f32 %v1916, 0.0
  %v2876 = vmax.f32 %v1981, 0.0
  %v2877 = vmax.f32 %v2046, 0.0
  %v2878 = vmax.f32 %v2111, 0.0
  %v2879 = vmax.f32 %v2176, 0.0
  %v2880 = vmax.f32 %v2241, 0.0
  %v2881 = vmax.f32 %v2306, 0.0
  %v2882 = vmax.f32 %v2371, 0.0
  %v2883 = vmax.f32 %v2436, 0.0
  %v2884 = vmax.f32 %v2501, 0.0
  %v2885 = vmax.f32 %v2566, 0.0
  %v2886 = vmax.f32 %v2631, 0.0
  %v2887 = vmax.f32 %v2696, 0.0
  %v2888 = vmax.f32 %v2761, 0.0
  %v2889 = vmax.f32 %v1789, 0.0
  %v2890 = vmax.f32 %v1854, 0.0
  %v2891 = vmax.f32 %v1919, 0.0
  %v2892 = vmax.f32 %v1984, 0.0
  %v2893 = vmax.f32 %v2049, 0.0
  %v2894 = vmax.f32 %v2114, 0.0
  %v2895 = vmax.f32 %v2179, 0.0
  %v2896 = vmax.f32 %v2244, 0.0
  %v2897 = vmax.f32 %v2309, 0.0
  %v2898 = vmax.f32 %v2374, 0.0
  %v2899 = vmax.f32 %v2439, 0.0
  %v2900 = vmax.f32 %v2504, 0.0
  %v2901 = vmax.f32 %v2569, 0.0
  %v2902 = vmax.f32 %v2634, 0.0
  %v2903 = vmax.f32 %v2699, 0.0
  %v2904 = vmax.f32 %v2764, 0.0
  %v2905 = vmax.f32 %v1792, 0.0
  %v2906 = vmax.f32 %v1857, 0.0
  %v2907 = vmax.f32 %v1922, 0.0
  %v2908 = vmax.f32 %v1987, 0.0
  %v2909 = vmax.f32 %v2052, 0.0
  %v2910 = vmax.f32 %v2117, 0.0
  %v2911 = vmax.f32 %v2182, 0.0
  %v2912 = vmax.f32 %v2247, 0.0
  %v2913 = vmax.f32 %v2312, 0.0
  %v2914 = vmax.f32 %v2377, 0.0
  %v2915 = vmax.f32 %v2442, 0.0
  %v2916 = vmax.f32 %v2507, 0.0
  %v2917 = vmax.f32 %v2572, 0.0
  %v2918 = vmax.f32 %v2637, 0.0
  %v2919 = vmax.f32 %v2702, 0.0
  %v2920 = vmax.f32 %v2767, 0.0
  %v2921 = vmax.f32 %v1795, 0.0
  %v2922 = vmax.f32 %v1860, 0.0
  %v2923 = vmax.f32 %v1925, 0.0
  %v2924 = vmax.f32 %v1990, 0.0
  %v2925 = vmax.f32 %v2055, 0.0
  %v2926 = vmax.f32 %v2120, 0.0
  %v2927 = vmax.f32 %v2185, 0.0
  %v2928 = vmax.f32 %v2250, 0.0
  %v2929 = vmax.f32 %v2315, 0.0
  %v2930 = vmax.f32 %v2380, 0.0
  %v2931 = vmax.f32 %v2445, 0.0
  %v2932 = vmax.f32 %v2510, 0.0
  %v2933 = vmax.f32 %v2575, 0.0
  %v2934 = vmax.f32 %v2640, 0.0
  %v2935 = vmax.f32 %v2705, 0.0
  %v2936 = vmax.f32 %v2770, 0.0
  %v2937 = vmax.f32 %v1798, 0.0
  %v2938 = vmax.f32 %v1863, 0.0
  %v2939 = vmax.f32 %v1928, 0.0
  %v2940 = vmax.f32 %v1993, 0.0
  %v2941 = vmax.f32 %v2058, 0.0
  %v2942 = vmax.f32 %v2123, 0.0
  %v2943 = vmax.f32 %v2188, 0.0
  %v2944 = vmax.f32 %v2253, 0.0
  %v2945 = vmax.f32 %v2318, 0.0
  %v2946 = vmax.f32 %v2383, 0.0
  %v2947 = vmax.f32 %v2448, 0.0
  %v2948 = vmax.f32 %v2513, 0.0
  %v2949 = vmax.f32 %v2578, 0.0
  %v2950 = vmax.f32 %v2643, 0.0
  %v2951 = vmax.f32 %v2708, 0.0
  %v2952 = vmax.f32 %v2773, 0.0
  %v2953 = vmax.f32 %v1801, 0.0
  %v2954 = vmax.f32 %v1866, 0.0
  %v2955 = vmax.f32 %v1931, 0.0
  %v2956 = vmax.f32 %v1996, 0.0
  %v2957 = vmax.f32 %v2061, 0.0
  %v2958 = vmax.f32 %v2126, 0.0
  %v2959 = vmax.f32 %v2191, 0.0
  %v2960 = vmax.f32 %v2256, 0.0
  %v2961 = vmax.f32 %v2321, 0.0
  %v2962 = vmax.f32 %v2386, 0.0
  %v2963 = vmax.f32 %v2451, 0.0
  %v2964 = vmax.f32 %v2516, 0.0
  %v2965 = vmax.f32 %v2581, 0.0
  %v2966 = vmax.f32 %v2646, 0.0
  %v2967 = vmax.f32 %v2711, 0.0
  %v2968 = vmax.f32 %v2776, 0.0
  %v2969 = vmax.f32 %v1804, 0.0
  %v2970 = vmax.f32 %v1869, 0.0
  %v2971 = vmax.f32 %v1934, 0.0
  %v2972 = vmax.f32 %v1999, 0.0
  %v2973 = vmax.f32 %v2064, 0.0
  %v2974 = vmax.f32 %v2129, 0.0
  %v2975 = vmax.f32 %v2194, 0.0
  %v2976 = vmax.f32 %v2259, 0.0
  %v2977 = vmax.f32 %v2324, 0.0
  %v2978 = vmax.f32 %v2389, 0.0
  %v2979 = vmax.f32 %v2454, 0.0
  %v2980 = vmax.f32 %v2519, 0.0
  %v2981 = vmax.f32 %v2584, 0.0
  %v2982 = vmax.f32 %v2649, 0.0
  %v2983 = vmax.f32 %v2714, 0.0
  %v2984 = vmax.f32 %v2779, 0.0
  %v2985 = vmax.f32 %v1807, 0.0
  %v2986 = vmax.f32 %v1872, 0.0
  %v2987 = vmax.f32 %v1937, 0.0
  %v2988 = vmax.f32 %v2002, 0.0
  %v2989 = vmax.f32 %v2067, 0.0
  %v2990 = vmax.f32 %v2132, 0.0
  %v2991 = vmax.f32 %v2197, 0.0
  %v2992 = vmax.f32 %v2262, 0.0
  %v2993 = vmax.f32 %v2327, 0.0
  %v2994 = vmax.f32 %v2392, 0.0
  %v2995 = vmax.f32 %v2457, 0.0
  %v2996 = vmax.f32 %v2522, 0.0
  %v2997 = vmax.f32 %v2587, 0.0
  %v2998 = vmax.f32 %v2652, 0.0
  %v2999 = vmax.f32 %v2717, 0.0
  %v3000 = vmax.f32 %v2782, 0.0
  %v3001 = vmax.f32 %v1810, 0.0
  %v3002 = vmax.f32 %v1875, 0.0
  %v3003 = vmax.f32 %v1940, 0.0
  %v3004 = vmax.f32 %v2005, 0.0
  %v3005 = vmax.f32 %v2070, 0.0
  %v3006 = vmax.f32 %v2135, 0.0
  %v3007 = vmax.f32 %v2200, 0.0
  %v3008 = vmax.f32 %v2265, 0.0
  %v3009 = vmax.f32 %v2330, 0.0
  %v3010 = vmax.f32 %v2395, 0.0
  %v3011 = vmax.f32 %v2460, 0.0
  %v3012 = vmax.f32 %v2525, 0.0
  %v3013 = vmax.f32 %v2590, 0.0
  %v3014 = vmax.f32 %v2655, 0.0
  %v3015 = vmax.f32 %v2720, 0.0
  %v3016 = vmax.f32 %v2785, 0.0
  %v3017 = vmax.f32 %v1813, 0.0
  %v3018 = vmax.f32 %v1878, 0.0
  %v3019 = vmax.f32 %v1943, 0.0
  %v3020 = vmax.f32 %v2008, 0.0
  %v3021 = vmax.f32 %v2073, 0.0
  %v3022 = vmax.f32 %v2138, 0.0
  %v3023 = vmax.f32 %v2203, 0.0
  %v3024 = vmax.f32 %v2268, 0.0
  %v3025 = vmax.f32 %v2333, 0.0
  %v3026 = vmax.f32 %v2398, 0.0
  %v3027 = vmax.f32 %v2463, 0.0
  %v3028 = vmax.f32 %v2528, 0.0
  %v3029 = vmax.f32 %v2593, 0.0
  %v3030 = vmax.f32 %v2658, 0.0
  %v3031 = vmax.f32 %v2723, 0.0
  %v3032 = vmax.f32 %v2788, 0.0
  %v3033 = vmax.f32 %v1816, 0.0
  %v3034 = vmax.f32 %v1881, 0.0
  %v3035 = vmax.f32 %v1946, 0.0
  %v3036 = vmax.f32 %v2011, 0.0
  %v3037 = vmax.f32 %v2076, 0.0
  %v3038 = vmax.f32 %v2141, 0.0
  %v3039 = vmax.f32 %v2206, 0.0
  %v3040 = vmax.f32 %v2271, 0.0
  %v3041 = vmax.f32 %v2336, 0.0
  %v3042 = vmax.f32 %v2401, 0.0
  %v3043 = vmax.f32 %v2466, 0.0
  %v3044 = vmax.f32 %v2531, 0.0
  %v3045 = vmax.f32 %v2596, 0.0
  %v3046 = vmax.f32 %v2661, 0.0
  %v3047 = vmax.f32 %v2726, 0.0
  %v3048 = vmax.f32 %v2791, 0.0
  %v3065 = vrot.slane %v1428, 7
  %v3066 = vrot.slane %v1443, 6
  %v3067 = vrot.slane %v1458, 5
  %v3068 = vrot.slane %v1473, 4
  %v3069 = vrot.slane %v1488, 3
  %v3070 = vrot.slane %v1503, 2
  %v3071 = vrot.slane %v1518, 1
  %v3072 = vrot.slane %v1548, 7
  %v3073 = vrot.slane %v1563, 6
  %v3074 = vrot.slane %v1578, 5
  %v3075 = vrot.slane %v1593, 4
  %v3076 = vrot.slane %v1608, 3
  %v3077 = vrot.slane %v1623, 2
  %v3078 = vrot.slane %v1638, 1
  %v3079 = vsel %vm628, %v1413, %v3065
  %vm3080 = vcmask 1042434
  %v3081 = vsel %vm3080, %v3066, %v3067
  %v3082 = vsel %vm645, %v3079, %v3081
  %vm3083 = vcmask 1044484
  %v3084 = vsel %vm3083, %v3068, %v3069
  %vm3085 = vcmask 1046534
  %v3086 = vsel %vm3085, %v3070, %v3071
  %vm3087 = vcmask 1045508
  %v3088 = vsel %vm3087, %v3084, %v3086
  %v3089 = vsel %vm1126, %v3082, %v3088
  %v3090 = vsel %vm628, %v1533, %v3072
  %v3091 = vsel %vm3080, %v3073, %v3074
  %v3092 = vsel %vm645, %v3090, %v3091
  %v3093 = vsel %vm3083, %v3075, %v3076
  %v3094 = vsel %vm3085, %v3077, %v3078
  %v3095 = vsel %vm3087, %v3093, %v3094
  %v3096 = vsel %vm1126, %v3092, %v3095
  %vm3097 = vcmask 1041409
  %v3098 = vsel %vm3097, %v1413, %v3065
  %vm3099 = vcmask 1043459
  %v3100 = vsel %vm3099, %v3066, %v3067
  %vm3101 = vcmask 1042433
  %v3102 = vsel %vm3101, %v3098, %v3100
  %vm3103 = vcmask 1045509
  %v3104 = vsel %vm3103, %v3068, %v3069
  %v3105 = vsel %vm1704, %v3071, %v3070
  %vm3106 = vcmask 1046533
  %v3107 = vsel %vm3106, %v3104, %v3105
  %vm3108 = vcmask 1044481
  %v3109 = vsel %vm3108, %v3102, %v3107
  %v3110 = vrot.slane %v3109, 1
  %v3111 = vsel %vm3097, %v1533, %v3072
  %v3112 = vsel %vm3099, %v3073, %v3074
  %v3113 = vsel %vm3101, %v3111, %v3112
  %v3114 = vsel %vm3103, %v3075, %v3076
  %v3115 = vsel %vm1704, %v3078, %v3077
  %v3116 = vsel %vm3106, %v3114, %v3115
  %v3117 = vsel %vm3108, %v3113, %v3116
  %v3118 = vrot.slane %v3117, 1
  %v3119 = vsel %vm3080, %v1413, %v3065
  %v3120 = vsel %vm3083, %v3066, %v3067
  %vm3121 = vcmask 1043458
  %v3122 = vsel %vm3121, %v3119, %v3120
  %v3123 = vsel %vm3085, %v3068, %v3069
  %v3124 = vsel %vm628, %v3070, %v3071
  %vm3125 = vcmask 1045504
  %v3126 = vsel %vm3125, %v3124, %v3123
  %vm3127 = vcmask 1045506
  %v3128 = vsel %vm3127, %v3122, %v3126
  %v3129 = vrot.slane %v3128, 2
  %v3130 = vsel %vm3080, %v1533, %v3072
  %v3131 = vsel %vm3083, %v3073, %v3074
  %v3132 = vsel %vm3121, %v3130, %v3131
  %v3133 = vsel %vm3085, %v3075, %v3076
  %v3134 = vsel %vm628, %v3077, %v3078
  %v3135 = vsel %vm3125, %v3134, %v3133
  %v3136 = vsel %vm3127, %v3132, %v3135
  %v3137 = vrot.slane %v3136, 2
  %v3138 = vsel %vm3099, %v1413, %v3065
  %v3139 = vsel %vm3103, %v3066, %v3067
  %vm3140 = vcmask 1044483
  %v3141 = vsel %vm3140, %v3138, %v3139
  %v3142 = vsel %vm1704, %v3069, %v3068
  %v3143 = vsel %vm3097, %v3070, %v3071
  %vm3144 = vcmask 1046529
  %v3145 = vsel %vm3144, %v3143, %v3142
  %vm3146 = vcmask 1046531
  %v3147 = vsel %vm3146, %v3141, %v3145
  %v3148 = vrot.slane %v3147, 3
  %v3149 = vsel %vm3099, %v1533, %v3072
  %v3150 = vsel %vm3103, %v3073, %v3074
  %v3151 = vsel %vm3140, %v3149, %v3150
  %v3152 = vsel %vm1704, %v3076, %v3075
  %v3153 = vsel %vm3097, %v3077, %v3078
  %v3154 = vsel %vm3144, %v3153, %v3152
  %v3155 = vsel %vm3146, %v3151, %v3154
  %v3156 = vrot.slane %v3155, 3
  %v3157 = vperm.slane %v3089, 0
  %v3158 = vperm.slane %v3089, 1
  %v3159 = vperm.slane %v3089, 2
  %v3160 = vperm.slane %v3089, 3
  %v3161 = vperm.slane %v3089, 4
  %v3162 = vperm.slane %v3089, 5
  %v3163 = vperm.slane %v3089, 6
  %v3164 = vperm.slane %v3089, 7
  %v3165 = vperm.slane %v3096, 0
  %v3166 = vperm.slane %v3096, 1
  %v3167 = vperm.slane %v3096, 2
  %v3168 = vperm.slane %v3096, 3
  %v3169 = vperm.slane %v3096, 4
  %v3170 = vperm.slane %v3096, 5
  %v3171 = vperm.slane %v3096, 6
  %v3172 = vperm.slane %v3096, 7
  %v3173 = vperm.slane %v3110, 0
  %v3174 = vperm.slane %v3110, 1
  %v3175 = vperm.slane %v3110, 2
  %v3176 = vperm.slane %v3110, 3
  %v3177 = vperm.slane %v3110, 4
  %v3178 = vperm.slane %v3110, 5
  %v3179 = vperm.slane %v3110, 6
  %v3180 = vperm.slane %v3110, 7
  %v3181 = vperm.slane %v3118, 0
  %v3182 = vperm.slane %v3118, 1
  %v3183 = vperm.slane %v3118, 2
  %v3184 = vperm.slane %v3118, 3
  %v3185 = vperm.slane %v3118, 4
  %v3186 = vperm.slane %v3118, 5
  %v3187 = vperm.slane %v3118, 6
  %v3188 = vperm.slane %v3118, 7
  %v3189 = vperm.slane %v3129, 0
  %v3190 = vperm.slane %v3129, 1
  %v3191 = vperm.slane %v3129, 2
  %v3192 = vperm.slane %v3129, 3
  %v3193 = vperm.slane %v3129, 4
  %v3194 = vperm.slane %v3129, 5
  %v3195 = vperm.slane %v3129, 6
  %v3196 = vperm.slane %v3129, 7
  %v3197 = vperm.slane %v3137, 0
  %v3198 = vperm.slane %v3137, 1
  %v3199 = vperm.slane %v3137, 2
  %v3200 = vperm.slane %v3137, 3
  %v3201 = vperm.slane %v3137, 4
  %v3202 = vperm.slane %v3137, 5
  %v3203 = vperm.slane %v3137, 6
  %v3204 = vperm.slane %v3137, 7
  %v3205 = vperm.slane %v3148, 0
  %v3206 = vperm.slane %v3148, 1
  %v3207 = vperm.slane %v3148, 2
  %v3208 = vperm.slane %v3148, 3
  %v3209 = vperm.slane %v3148, 4
  %v3210 = vperm.slane %v3148, 5
  %v3211 = vperm.slane %v3148, 6
  %v3212 = vperm.slane %v3148, 7
  %v3213 = vperm.slane %v3156, 0
  %v3214 = vperm.slane %v3156, 1
  %v3215 = vperm.slane %v3156, 2
  %v3216 = vperm.slane %v3156, 3
  %v3217 = vperm.slane %v3156, 4
  %v3218 = vperm.slane %v3156, 5
  %v3219 = vperm.slane %v3156, 6
  %v3220 = vperm.slane %v3156, 7
  %v3285 = vmul.f32 %v2793, %v3157
  %v3286 = vmul.f32 %v2794, %v3158
  %v3287 = vmul.f32 %v2795, %v3159
  %v3288 = vmul.f32 %v2796, %v3160
  %v3289 = vmul.f32 %v2797, %v3161
  %v3290 = vmul.f32 %v2798, %v3162
  %v3291 = vmul.f32 %v2799, %v3163
  %v3292 = vmul.f32 %v2800, %v3164
  %v3293 = vmul.f32 %v2801, %v3165
  %v3294 = vmul.f32 %v2802, %v3166
  %v3295 = vmul.f32 %v2803, %v3167
  %v3296 = vmul.f32 %v2804, %v3168
  %v3297 = vmul.f32 %v2805, %v3169
  %v3298 = vmul.f32 %v2806, %v3170
  %v3299 = vmul.f32 %v2807, %v3171
  %v3300 = vmul.f32 %v2808, %v3172
  %v3301 = vmul.f32 %v2809, %v3157
  %v3302 = vmul.f32 %v2810, %v3158
  %v3303 = vmul.f32 %v2811, %v3159
  %v3304 = vmul.f32 %v2812, %v3160
  %v3305 = vmul.f32 %v2813, %v3161
  %v3306 = vmul.f32 %v2814, %v3162
  %v3307 = vmul.f32 %v2815, %v3163
  %v3308 = vmul.f32 %v2816, %v3164
  %v3309 = vmul.f32 %v2817, %v3165
  %v3310 = vmul.f32 %v2818, %v3166
  %v3311 = vmul.f32 %v2819, %v3167
  %v3312 = vmul.f32 %v2820, %v3168
  %v3313 = vmul.f32 %v2821, %v3169
  %v3314 = vmul.f32 %v2822, %v3170
  %v3315 = vmul.f32 %v2823, %v3171
  %v3316 = vmul.f32 %v2824, %v3172
  %v3317 = vmul.f32 %v2825, %v3157
  %v3318 = vmul.f32 %v2826, %v3158
  %v3319 = vmul.f32 %v2827, %v3159
  %v3320 = vmul.f32 %v2828, %v3160
  %v3321 = vmul.f32 %v2829, %v3161
  %v3322 = vmul.f32 %v2830, %v3162
  %v3323 = vmul.f32 %v2831, %v3163
  %v3324 = vmul.f32 %v2832, %v3164
  %v3325 = vmul.f32 %v2833, %v3165
  %v3326 = vmul.f32 %v2834, %v3166
  %v3327 = vmul.f32 %v2835, %v3167
  %v3328 = vmul.f32 %v2836, %v3168
  %v3329 = vmul.f32 %v2837, %v3169
  %v3330 = vmul.f32 %v2838, %v3170
  %v3331 = vmul.f32 %v2839, %v3171
  %v3332 = vmul.f32 %v2840, %v3172
  %v3333 = vmul.f32 %v2841, %v3157
  %v3334 = vmul.f32 %v2842, %v3158
  %v3335 = vmul.f32 %v2843, %v3159
  %v3336 = vmul.f32 %v2844, %v3160
  %v3337 = vmul.f32 %v2845, %v3161
  %v3338 = vmul.f32 %v2846, %v3162
  %v3339 = vmul.f32 %v2847, %v3163
  %v3340 = vmul.f32 %v2848, %v3164
  %v3341 = vmul.f32 %v2849, %v3165
  %v3342 = vmul.f32 %v2850, %v3166
  %v3343 = vmul.f32 %v2851, %v3167
  %v3344 = vmul.f32 %v2852, %v3168
  %v3345 = vmul.f32 %v2853, %v3169
  %v3346 = vmul.f32 %v2854, %v3170
  %v3347 = vmul.f32 %v2855, %v3171
  %v3348 = vmul.f32 %v2856, %v3172
  %v3349 = vmul.f32 %v2857, %v3173
  %v3350 = vmul.f32 %v2858, %v3174
  %v3351 = vmul.f32 %v2859, %v3175
  %v3352 = vmul.f32 %v2860, %v3176
  %v3353 = vmul.f32 %v2861, %v3177
  %v3354 = vmul.f32 %v2862, %v3178
  %v3355 = vmul.f32 %v2863, %v3179
  %v3356 = vmul.f32 %v2864, %v3180
  %v3357 = vmul.f32 %v2865, %v3181
  %v3358 = vmul.f32 %v2866, %v3182
  %v3359 = vmul.f32 %v2867, %v3183
  %v3360 = vmul.f32 %v2868, %v3184
  %v3361 = vmul.f32 %v2869, %v3185
  %v3362 = vmul.f32 %v2870, %v3186
  %v3363 = vmul.f32 %v2871, %v3187
  %v3364 = vmul.f32 %v2872, %v3188
  %v3365 = vmul.f32 %v2873, %v3173
  %v3366 = vmul.f32 %v2874, %v3174
  %v3367 = vmul.f32 %v2875, %v3175
  %v3368 = vmul.f32 %v2876, %v3176
  %v3369 = vmul.f32 %v2877, %v3177
  %v3370 = vmul.f32 %v2878, %v3178
  %v3371 = vmul.f32 %v2879, %v3179
  %v3372 = vmul.f32 %v2880, %v3180
  %v3373 = vmul.f32 %v2881, %v3181
  %v3374 = vmul.f32 %v2882, %v3182
  %v3375 = vmul.f32 %v2883, %v3183
  %v3376 = vmul.f32 %v2884, %v3184
  %v3377 = vmul.f32 %v2885, %v3185
  %v3378 = vmul.f32 %v2886, %v3186
  %v3379 = vmul.f32 %v2887, %v3187
  %v3380 = vmul.f32 %v2888, %v3188
  %v3381 = vmul.f32 %v2889, %v3173
  %v3382 = vmul.f32 %v2890, %v3174
  %v3383 = vmul.f32 %v2891, %v3175
  %v3384 = vmul.f32 %v2892, %v3176
  %v3385 = vmul.f32 %v2893, %v3177
  %v3386 = vmul.f32 %v2894, %v3178
  %v3387 = vmul.f32 %v2895, %v3179
  %v3388 = vmul.f32 %v2896, %v3180
  %v3389 = vmul.f32 %v2897, %v3181
  %v3390 = vmul.f32 %v2898, %v3182
  %v3391 = vmul.f32 %v2899, %v3183
  %v3392 = vmul.f32 %v2900, %v3184
  %v3393 = vmul.f32 %v2901, %v3185
  %v3394 = vmul.f32 %v2902, %v3186
  %v3395 = vmul.f32 %v2903, %v3187
  %v3396 = vmul.f32 %v2904, %v3188
  %v3397 = vmul.f32 %v2905, %v3173
  %v3398 = vmul.f32 %v2906, %v3174
  %v3399 = vmul.f32 %v2907, %v3175
  %v3400 = vmul.f32 %v2908, %v3176
  %v3401 = vmul.f32 %v2909, %v3177
  %v3402 = vmul.f32 %v2910, %v3178
  %v3403 = vmul.f32 %v2911, %v3179
  %v3404 = vmul.f32 %v2912, %v3180
  %v3405 = vmul.f32 %v2913, %v3181
  %v3406 = vmul.f32 %v2914, %v3182
  %v3407 = vmul.f32 %v2915, %v3183
  %v3408 = vmul.f32 %v2916, %v3184
  %v3409 = vmul.f32 %v2917, %v3185
  %v3410 = vmul.f32 %v2918, %v3186
  %v3411 = vmul.f32 %v2919, %v3187
  %v3412 = vmul.f32 %v2920, %v3188
  %v3413 = vmul.f32 %v2921, %v3189
  %v3414 = vmul.f32 %v2922, %v3190
  %v3415 = vmul.f32 %v2923, %v3191
  %v3416 = vmul.f32 %v2924, %v3192
  %v3417 = vmul.f32 %v2925, %v3193
  %v3418 = vmul.f32 %v2926, %v3194
  %v3419 = vmul.f32 %v2927, %v3195
  %v3420 = vmul.f32 %v2928, %v3196
  %v3421 = vmul.f32 %v2929, %v3197
  %v3422 = vmul.f32 %v2930, %v3198
  %v3423 = vmul.f32 %v2931, %v3199
  %v3424 = vmul.f32 %v2932, %v3200
  %v3425 = vmul.f32 %v2933, %v3201
  %v3426 = vmul.f32 %v2934, %v3202
  %v3427 = vmul.f32 %v2935, %v3203
  %v3428 = vmul.f32 %v2936, %v3204
  %v3429 = vmul.f32 %v2937, %v3189
  %v3430 = vmul.f32 %v2938, %v3190
  %v3431 = vmul.f32 %v2939, %v3191
  %v3432 = vmul.f32 %v2940, %v3192
  %v3433 = vmul.f32 %v2941, %v3193
  %v3434 = vmul.f32 %v2942, %v3194
  %v3435 = vmul.f32 %v2943, %v3195
  %v3436 = vmul.f32 %v2944, %v3196
  %v3437 = vmul.f32 %v2945, %v3197
  %v3438 = vmul.f32 %v2946, %v3198
  %v3439 = vmul.f32 %v2947, %v3199
  %v3440 = vmul.f32 %v2948, %v3200
  %v3441 = vmul.f32 %v2949, %v3201
  %v3442 = vmul.f32 %v2950, %v3202
  %v3443 = vmul.f32 %v2951, %v3203
  %v3444 = vmul.f32 %v2952, %v3204
  %v3445 = vmul.f32 %v2953, %v3189
  %v3446 = vmul.f32 %v2954, %v3190
  %v3447 = vmul.f32 %v2955, %v3191
  %v3448 = vmul.f32 %v2956, %v3192
  %v3449 = vmul.f32 %v2957, %v3193
  %v3450 = vmul.f32 %v2958, %v3194
  %v3451 = vmul.f32 %v2959, %v3195
  %v3452 = vmul.f32 %v2960, %v3196
  %v3453 = vmul.f32 %v2961, %v3197
  %v3454 = vmul.f32 %v2962, %v3198
  %v3455 = vmul.f32 %v2963, %v3199
  %v3456 = vmul.f32 %v2964, %v3200
  %v3457 = vmul.f32 %v2965, %v3201
  %v3458 = vmul.f32 %v2966, %v3202
  %v3459 = vmul.f32 %v2967, %v3203
  %v3460 = vmul.f32 %v2968, %v3204
  %v3461 = vmul.f32 %v2969, %v3189
  %v3462 = vmul.f32 %v2970, %v3190
  %v3463 = vmul.f32 %v2971, %v3191
  %v3464 = vmul.f32 %v2972, %v3192
  %v3465 = vmul.f32 %v2973, %v3193
  %v3466 = vmul.f32 %v2974, %v3194
  %v3467 = vmul.f32 %v2975, %v3195
  %v3468 = vmul.f32 %v2976, %v3196
  %v3469 = vmul.f32 %v2977, %v3197
  %v3470 = vmul.f32 %v2978, %v3198
  %v3471 = vmul.f32 %v2979, %v3199
  %v3472 = vmul.f32 %v2980, %v3200
  %v3473 = vmul.f32 %v2981, %v3201
  %v3474 = vmul.f32 %v2982, %v3202
  %v3475 = vmul.f32 %v2983, %v3203
  %v3476 = vmul.f32 %v2984, %v3204
  %v3477 = vmul.f32 %v2985, %v3205
  %v3478 = vmul.f32 %v2986, %v3206
  %v3479 = vmul.f32 %v2987, %v3207
  %v3480 = vmul.f32 %v2988, %v3208
  %v3481 = vmul.f32 %v2989, %v3209
  %v3482 = vmul.f32 %v2990, %v3210
  %v3483 = vmul.f32 %v2991, %v3211
  %v3484 = vmul.f32 %v2992, %v3212
  %v3485 = vmul.f32 %v2993, %v3213
  %v3486 = vmul.f32 %v2994, %v3214
  %v3487 = vmul.f32 %v2995, %v3215
  %v3488 = vmul.f32 %v2996, %v3216
  %v3489 = vmul.f32 %v2997, %v3217
  %v3490 = vmul.f32 %v2998, %v3218
  %v3491 = vmul.f32 %v2999, %v3219
  %v3492 = vmul.f32 %v3000, %v3220
  %v3493 = vmul.f32 %v3001, %v3205
  %v3494 = vmul.f32 %v3002, %v3206
  %v3495 = vmul.f32 %v3003, %v3207
  %v3496 = vmul.f32 %v3004, %v3208
  %v3497 = vmul.f32 %v3005, %v3209
  %v3498 = vmul.f32 %v3006, %v3210
  %v3499 = vmul.f32 %v3007, %v3211
  %v3500 = vmul.f32 %v3008, %v3212
  %v3501 = vmul.f32 %v3009, %v3213
  %v3502 = vmul.f32 %v3010, %v3214
  %v3503 = vmul.f32 %v3011, %v3215
  %v3504 = vmul.f32 %v3012, %v3216
  %v3505 = vmul.f32 %v3013, %v3217
  %v3506 = vmul.f32 %v3014, %v3218
  %v3507 = vmul.f32 %v3015, %v3219
  %v3508 = vmul.f32 %v3016, %v3220
  %v3509 = vmul.f32 %v3017, %v3205
  %v3510 = vmul.f32 %v3018, %v3206
  %v3511 = vmul.f32 %v3019, %v3207
  %v3512 = vmul.f32 %v3020, %v3208
  %v3513 = vmul.f32 %v3021, %v3209
  %v3514 = vmul.f32 %v3022, %v3210
  %v3515 = vmul.f32 %v3023, %v3211
  %v3516 = vmul.f32 %v3024, %v3212
  %v3517 = vmul.f32 %v3025, %v3213
  %v3518 = vmul.f32 %v3026, %v3214
  %v3519 = vmul.f32 %v3027, %v3215
  %v3520 = vmul.f32 %v3028, %v3216
  %v3521 = vmul.f32 %v3029, %v3217
  %v3522 = vmul.f32 %v3030, %v3218
  %v3523 = vmul.f32 %v3031, %v3219
  %v3524 = vmul.f32 %v3032, %v3220
  %v3525 = vmul.f32 %v3033, %v3205
  %v3526 = vmul.f32 %v3034, %v3206
  %v3527 = vmul.f32 %v3035, %v3207
  %v3528 = vmul.f32 %v3036, %v3208
  %v3529 = vmul.f32 %v3037, %v3209
  %v3530 = vmul.f32 %v3038, %v3210
  %v3531 = vmul.f32 %v3039, %v3211
  %v3532 = vmul.f32 %v3040, %v3212
  %v3533 = vmul.f32 %v3041, %v3213
  %v3534 = vmul.f32 %v3042, %v3214
  %v3535 = vmul.f32 %v3043, %v3215
  %v3536 = vmul.f32 %v3044, %v3216
  %v3537 = vmul.f32 %v3045, %v3217
  %v3538 = vmul.f32 %v3046, %v3218
  %v3539 = vmul.f32 %v3047, %v3219
  %v3540 = vmul.f32 %v3048, %v3220
  %v3541 = vld [vmem:[%s3] sm:$0xff]
  %v3542 = vld [vmem:[%s3 + $0x8] sm:$0xff]
  %vm3543 = vcmask 31744
  %v3545 = vsel %vm3543, %v3542, 0
  %v3547 = vsel %vm1126, %v1413, 0
  %v3549 = vsel %vm1126, %v1428, 0
  %v3551 = vsel %vm1126, %v1443, 0
  %v3553 = vsel %vm1126, %v1458, 0
  %v3555 = vsel %vm1126, %v1473, 0
  %v3557 = vsel %vm1126, %v1488, 0
  %v3559 = vsel %vm1126, %v1503, 0
  %v3561 = vsel %vm1126, %v1518, 0
  %v3563 = vsel %vm1126, %v1533, 0
  %v3565 = vsel %vm1126, %v1548, 0
  %v3567 = vsel %vm1126, %v1563, 0
  %v3569 = vsel %vm1126, %v1578, 0
  %v3571 = vsel %vm1126, %v1593, 0
  %v3573 = vsel %vm1126, %v1608, 0
  %v3575 = vsel %vm1126, %v1623, 0
  %v3577 = vsel %vm1126, %v1638, 0
  %3579 = vmatpush.msra.mxu0 0.0
  %3580 = vmatpush.msra.mxu0 0.0
  %3581 = vmatpush.msra.mxu0 0.0
  %3582 = vmatpush.msra.mxu0 0.0
  %3583 = vmatpush.msra.mxu0 0.0
  %3584 = vmatpush.msra.mxu0 0.0
  %3585 = vmatpush.msra.mxu0 0.0
  %3586 = vmatpush.msra.mxu0 0.0
  %3587 = vmatpush.msra.mxu0 0.0
  %3588 = vmatpush.msra.mxu0 0.0
  %3589 = vmatpush.msra.mxu0 0.0
  %3590 = vmatpush.msra.mxu0 0.0
  %3591 = vmatpush.msra.mxu0 0.0
  %3592 = vmatpush.msra.mxu0 0.0
  %3593 = vmatpush.msra.mxu0 0.0
  %3594 = vmatpush.msra.mxu0 %v3547
  %3595 = vmatmul.f32.gmra.mxu0 %v3545
  %v3596 = vpop.f32.mrf.mxu0
  %v3597 = vadd.f32 0.0, %v3596
  %3598 = vdwg.mxu0
  %3599 = vmatpush.msra.mxu0 0.0
  %3600 = vmatpush.msra.mxu0 0.0
  %3601 = vmatpush.msra.mxu0 0.0
  %3602 = vmatpush.msra.mxu0 0.0
  %3603 = vmatpush.msra.mxu0 0.0
  %3604 = vmatpush.msra.mxu0 0.0
  %3605 = vmatpush.msra.mxu0 0.0
  %3606 = vmatpush.msra.mxu0 0.0
  %3607 = vmatpush.msra.mxu0 0.0
  %3608 = vmatpush.msra.mxu0 0.0
  %3609 = vmatpush.msra.mxu0 0.0
  %3610 = vmatpush.msra.mxu0 0.0
  %3611 = vmatpush.msra.mxu0 0.0
  %3612 = vmatpush.msra.mxu0 0.0
  %3613 = vmatpush.msra.mxu0 0.0
  %3614 = vmatpush.msra.mxu0 %v3549
  %3615 = vmatmul.f32.gmra.mxu0 %v3545
  %v3616 = vpop.f32.mrf.mxu0
  %v3617 = vadd.f32 0.0, %v3616
  %3618 = vdwg.mxu0
  %3619 = vmatpush.msra.mxu0 0.0
  %3620 = vmatpush.msra.mxu0 0.0
  %3621 = vmatpush.msra.mxu0 0.0
  %3622 = vmatpush.msra.mxu0 0.0
  %3623 = vmatpush.msra.mxu0 0.0
  %3624 = vmatpush.msra.mxu0 0.0
  %3625 = vmatpush.msra.mxu0 0.0
  %3626 = vmatpush.msra.mxu0 0.0
  %3627 = vmatpush.msra.mxu0 0.0
  %3628 = vmatpush.msra.mxu0 0.0
  %3629 = vmatpush.msra.mxu0 0.0
  %3630 = vmatpush.msra.mxu0 0.0
  %3631 = vmatpush.msra.mxu0 0.0
  %3632 = vmatpush.msra.mxu0 0.0
  %3633 = vmatpush.msra.mxu0 0.0
  %3634 = vmatpush.msra.mxu0 %v3551
  %3635 = vmatmul.f32.gmra.mxu0 %v3545
  %v3636 = vpop.f32.mrf.mxu0
  %v3637 = vadd.f32 0.0, %v3636
  %3638 = vdwg.mxu0
  %3639 = vmatpush.msra.mxu0 0.0
  %3640 = vmatpush.msra.mxu0 0.0
  %3641 = vmatpush.msra.mxu0 0.0
  %3642 = vmatpush.msra.mxu0 0.0
  %3643 = vmatpush.msra.mxu0 0.0
  %3644 = vmatpush.msra.mxu0 0.0
  %3645 = vmatpush.msra.mxu0 0.0
  %3646 = vmatpush.msra.mxu0 0.0
  %3647 = vmatpush.msra.mxu0 0.0
  %3648 = vmatpush.msra.mxu0 0.0
  %3649 = vmatpush.msra.mxu0 0.0
  %3650 = vmatpush.msra.mxu0 0.0
  %3651 = vmatpush.msra.mxu0 0.0
  %3652 = vmatpush.msra.mxu0 0.0
  %3653 = vmatpush.msra.mxu0 0.0
  %3654 = vmatpush.msra.mxu0 %v3553
  %3655 = vmatmul.f32.gmra.mxu0 %v3545
  %v3656 = vpop.f32.mrf.mxu0
  %v3657 = vadd.f32 0.0, %v3656
  %3658 = vdwg.mxu0
  %3659 = vmatpush.msra.mxu0 0.0
  %3660 = vmatpush.msra.mxu0 0.0
  %3661 = vmatpush.msra.mxu0 0.0
  %3662 = vmatpush.msra.mxu0 0.0
  %3663 = vmatpush.msra.mxu0 0.0
  %3664 = vmatpush.msra.mxu0 0.0
  %3665 = vmatpush.msra.mxu0 0.0
  %3666 = vmatpush.msra.mxu0 0.0
  %3667 = vmatpush.msra.mxu0 0.0
  %3668 = vmatpush.msra.mxu0 0.0
  %3669 = vmatpush.msra.mxu0 0.0
  %3670 = vmatpush.msra.mxu0 0.0
  %3671 = vmatpush.msra.mxu0 0.0
  %3672 = vmatpush.msra.mxu0 0.0
  %3673 = vmatpush.msra.mxu0 0.0
  %3674 = vmatpush.msra.mxu0 %v3555
  %3675 = vmatmul.f32.gmra.mxu0 %v3545
  %v3676 = vpop.f32.mrf.mxu0
  %v3677 = vadd.f32 0.0, %v3676
  %3678 = vdwg.mxu0
  %3679 = vmatpush.msra.mxu0 0.0
  %3680 = vmatpush.msra.mxu0 0.0
  %3681 = vmatpush.msra.mxu0 0.0
  %3682 = vmatpush.msra.mxu0 0.0
  %3683 = vmatpush.msra.mxu0 0.0
  %3684 = vmatpush.msra.mxu0 0.0
  %3685 = vmatpush.msra.mxu0 0.0
  %3686 = vmatpush.msra.mxu0 0.0
  %3687 = vmatpush.msra.mxu0 0.0
  %3688 = vmatpush.msra.mxu0 0.0
  %3689 = vmatpush.msra.mxu0 0.0
  %3690 = vmatpush.msra.mxu0 0.0
  %3691 = vmatpush.msra.mxu0 0.0
  %3692 = vmatpush.msra.mxu0 0.0
  %3693 = vmatpush.msra.mxu0 0.0
  %3694 = vmatpush.msra.mxu0 %v3557
  %3695 = vmatmul.f32.gmra.mxu0 %v3545
  %v3696 = vpop.f32.mrf.mxu0
  %v3697 = vadd.f32 0.0, %v3696
  %3698 = vdwg.mxu0
  %3699 = vmatpush.msra.mxu0 0.0
  %3700 = vmatpush.msra.mxu0 0.0
  %3701 = vmatpush.msra.mxu0 0.0
  %3702 = vmatpush.msra.mxu0 0.0
  %3703 = vmatpush.msra.mxu0 0.0
  %3704 = vmatpush.msra.mxu0 0.0
  %3705 = vmatpush.msra.mxu0 0.0
  %3706 = vmatpush.msra.mxu0 0.0
  %3707 = vmatpush.msra.mxu0 0.0
  %3708 = vmatpush.msra.mxu0 0.0
  %3709 = vmatpush.msra.mxu0 0.0
  %3710 = vmatpush.msra.mxu0 0.0
  %3711 = vmatpush.msra.mxu0 0.0
  %3712 = vmatpush.msra.mxu0 0.0
  %3713 = vmatpush.msra.mxu0 0.0
  %3714 = vmatpush.msra.mxu0 %v3559
  %3715 = vmatmul.f32.gmra.mxu0 %v3545
  %v3716 = vpop.f32.mrf.mxu0
  %v3717 = vadd.f32 0.0, %v3716
  %3718 = vdwg.mxu0
  %3719 = vmatpush.msra.mxu0 0.0
  %3720 = vmatpush.msra.mxu0 0.0
  %3721 = vmatpush.msra.mxu0 0.0
  %3722 = vmatpush.msra.mxu0 0.0
  %3723 = vmatpush.msra.mxu0 0.0
  %3724 = vmatpush.msra.mxu0 0.0
  %3725 = vmatpush.msra.mxu0 0.0
  %3726 = vmatpush.msra.mxu0 0.0
  %3727 = vmatpush.msra.mxu0 0.0
  %3728 = vmatpush.msra.mxu0 0.0
  %3729 = vmatpush.msra.mxu0 0.0
  %3730 = vmatpush.msra.mxu0 0.0
  %3731 = vmatpush.msra.mxu0 0.0
  %3732 = vmatpush.msra.mxu0 0.0
  %3733 = vmatpush.msra.mxu0 0.0
  %3734 = vmatpush.msra.mxu0 %v3561
  %3735 = vmatmul.f32.gmra.mxu0 %v3545
  %v3736 = vpop.f32.mrf.mxu0
  %v3737 = vadd.f32 0.0, %v3736
  %3738 = vdwg.mxu0
  %3739 = vmatpush.msra.mxu0 0.0
  %3740 = vmatpush.msra.mxu0 0.0
  %3741 = vmatpush.msra.mxu0 0.0
  %3742 = vmatpush.msra.mxu0 0.0
  %3743 = vmatpush.msra.mxu0 0.0
  %3744 = vmatpush.msra.mxu0 0.0
  %3745 = vmatpush.msra.mxu0 0.0
  %3746 = vmatpush.msra.mxu0 0.0
  %3747 = vmatpush.msra.mxu0 0.0
  %3748 = vmatpush.msra.mxu0 0.0
  %3749 = vmatpush.msra.mxu0 0.0
  %3750 = vmatpush.msra.mxu0 0.0
  %3751 = vmatpush.msra.mxu0 0.0
  %3752 = vmatpush.msra.mxu0 0.0
  %3753 = vmatpush.msra.mxu0 0.0
  %3754 = vmatpush.msra.mxu0 %v3563
  %3755 = vmatmul.f32.gmra.mxu0 %v3545
  %v3756 = vpop.f32.mrf.mxu0
  %v3757 = vadd.f32 0.0, %v3756
  %3758 = vdwg.mxu0
  %3759 = vmatpush.msra.mxu0 0.0
  %3760 = vmatpush.msra.mxu0 0.0
  %3761 = vmatpush.msra.mxu0 0.0
  %3762 = vmatpush.msra.mxu0 0.0
  %3763 = vmatpush.msra.mxu0 0.0
  %3764 = vmatpush.msra.mxu0 0.0
  %3765 = vmatpush.msra.mxu0 0.0
  %3766 = vmatpush.msra.mxu0 0.0
  %3767 = vmatpush.msra.mxu0 0.0
  %3768 = vmatpush.msra.mxu0 0.0
  %3769 = vmatpush.msra.mxu0 0.0
  %3770 = vmatpush.msra.mxu0 0.0
  %3771 = vmatpush.msra.mxu0 0.0
  %3772 = vmatpush.msra.mxu0 0.0
  %3773 = vmatpush.msra.mxu0 0.0
  %3774 = vmatpush.msra.mxu0 %v3565
  %3775 = vmatmul.f32.gmra.mxu0 %v3545
  %v3776 = vpop.f32.mrf.mxu0
  %v3777 = vadd.f32 0.0, %v3776
  %3778 = vdwg.mxu0
  %3779 = vmatpush.msra.mxu0 0.0
  %3780 = vmatpush.msra.mxu0 0.0
  %3781 = vmatpush.msra.mxu0 0.0
  %3782 = vmatpush.msra.mxu0 0.0
  %3783 = vmatpush.msra.mxu0 0.0
  %3784 = vmatpush.msra.mxu0 0.0
  %3785 = vmatpush.msra.mxu0 0.0
  %3786 = vmatpush.msra.mxu0 0.0
  %3787 = vmatpush.msra.mxu0 0.0
  %3788 = vmatpush.msra.mxu0 0.0
  %3789 = vmatpush.msra.mxu0 0.0
  %3790 = vmatpush.msra.mxu0 0.0
  %3791 = vmatpush.msra.mxu0 0.0
  %3792 = vmatpush.msra.mxu0 0.0
  %3793 = vmatpush.msra.mxu0 0.0
  %3794 = vmatpush.msra.mxu0 %v3567
  %3795 = vmatmul.f32.gmra.mxu0 %v3545
  %v3796 = vpop.f32.mrf.mxu0
  %v3797 = vadd.f32 0.0, %v3796
  %3798 = vdwg.mxu0
  %3799 = vmatpush.msra.mxu0 0.0
  %3800 = vmatpush.msra.mxu0 0.0
  %3801 = vmatpush.msra.mxu0 0.0
  %3802 = vmatpush.msra.mxu0 0.0
  %3803 = vmatpush.msra.mxu0 0.0
  %3804 = vmatpush.msra.mxu0 0.0
  %3805 = vmatpush.msra.mxu0 0.0
  %3806 = vmatpush.msra.mxu0 0.0
  %3807 = vmatpush.msra.mxu0 0.0
  %3808 = vmatpush.msra.mxu0 0.0
  %3809 = vmatpush.msra.mxu0 0.0
  %3810 = vmatpush.msra.mxu0 0.0
  %3811 = vmatpush.msra.mxu0 0.0
  %3812 = vmatpush.msra.mxu0 0.0
  %3813 = vmatpush.msra.mxu0 0.0
  %3814 = vmatpush.msra.mxu0 %v3569
  %3815 = vmatmul.f32.gmra.mxu0 %v3545
  %v3816 = vpop.f32.mrf.mxu0
  %v3817 = vadd.f32 0.0, %v3816
  %3818 = vdwg.mxu0
  %3819 = vmatpush.msra.mxu0 0.0
  %3820 = vmatpush.msra.mxu0 0.0
  %3821 = vmatpush.msra.mxu0 0.0
  %3822 = vmatpush.msra.mxu0 0.0
  %3823 = vmatpush.msra.mxu0 0.0
  %3824 = vmatpush.msra.mxu0 0.0
  %3825 = vmatpush.msra.mxu0 0.0
  %3826 = vmatpush.msra.mxu0 0.0
  %3827 = vmatpush.msra.mxu0 0.0
  %3828 = vmatpush.msra.mxu0 0.0
  %3829 = vmatpush.msra.mxu0 0.0
  %3830 = vmatpush.msra.mxu0 0.0
  %3831 = vmatpush.msra.mxu0 0.0
  %3832 = vmatpush.msra.mxu0 0.0
  %3833 = vmatpush.msra.mxu0 0.0
  %3834 = vmatpush.msra.mxu0 %v3571
  %3835 = vmatmul.f32.gmra.mxu0 %v3545
  %v3836 = vpop.f32.mrf.mxu0
  %v3837 = vadd.f32 0.0, %v3836
  %3838 = vdwg.mxu0
  %3839 = vmatpush.msra.mxu0 0.0
  %3840 = vmatpush.msra.mxu0 0.0
  %3841 = vmatpush.msra.mxu0 0.0
  %3842 = vmatpush.msra.mxu0 0.0
  %3843 = vmatpush.msra.mxu0 0.0
  %3844 = vmatpush.msra.mxu0 0.0
  %3845 = vmatpush.msra.mxu0 0.0
  %3846 = vmatpush.msra.mxu0 0.0
  %3847 = vmatpush.msra.mxu0 0.0
  %3848 = vmatpush.msra.mxu0 0.0
  %3849 = vmatpush.msra.mxu0 0.0
  %3850 = vmatpush.msra.mxu0 0.0
  %3851 = vmatpush.msra.mxu0 0.0
  %3852 = vmatpush.msra.mxu0 0.0
  %3853 = vmatpush.msra.mxu0 0.0
  %3854 = vmatpush.msra.mxu0 %v3573
  %3855 = vmatmul.f32.gmra.mxu0 %v3545
  %v3856 = vpop.f32.mrf.mxu0
  %v3857 = vadd.f32 0.0, %v3856
  %3858 = vdwg.mxu0
  %3859 = vmatpush.msra.mxu0 0.0
  %3860 = vmatpush.msra.mxu0 0.0
  %3861 = vmatpush.msra.mxu0 0.0
  %3862 = vmatpush.msra.mxu0 0.0
  %3863 = vmatpush.msra.mxu0 0.0
  %3864 = vmatpush.msra.mxu0 0.0
  %3865 = vmatpush.msra.mxu0 0.0
  %3866 = vmatpush.msra.mxu0 0.0
  %3867 = vmatpush.msra.mxu0 0.0
  %3868 = vmatpush.msra.mxu0 0.0
  %3869 = vmatpush.msra.mxu0 0.0
  %3870 = vmatpush.msra.mxu0 0.0
  %3871 = vmatpush.msra.mxu0 0.0
  %3872 = vmatpush.msra.mxu0 0.0
  %3873 = vmatpush.msra.mxu0 0.0
  %3874 = vmatpush.msra.mxu0 %v3575
  %3875 = vmatmul.f32.gmra.mxu0 %v3545
  %v3876 = vpop.f32.mrf.mxu0
  %v3877 = vadd.f32 0.0, %v3876
  %3878 = vdwg.mxu0
  %3879 = vmatpush.msra.mxu0 0.0
  %3880 = vmatpush.msra.mxu0 0.0
  %3881 = vmatpush.msra.mxu0 0.0
  %3882 = vmatpush.msra.mxu0 0.0
  %3883 = vmatpush.msra.mxu0 0.0
  %3884 = vmatpush.msra.mxu0 0.0
  %3885 = vmatpush.msra.mxu0 0.0
  %3886 = vmatpush.msra.mxu0 0.0
  %3887 = vmatpush.msra.mxu0 0.0
  %3888 = vmatpush.msra.mxu0 0.0
  %3889 = vmatpush.msra.mxu0 0.0
  %3890 = vmatpush.msra.mxu0 0.0
  %3891 = vmatpush.msra.mxu0 0.0
  %3892 = vmatpush.msra.mxu0 0.0
  %3893 = vmatpush.msra.mxu0 0.0
  %3894 = vmatpush.msra.mxu0 %v3577
  %3895 = vmatmul.f32.gmra.mxu0 %v3545
  %v3896 = vpop.f32.mrf.mxu0
  %v3897 = vadd.f32 0.0, %v3896
  %3898 = vdwg.mxu0
  %3899 = vmatpush.msra.mxu0 %v3525
  %3900 = vmatpush.msra.mxu0 %v3509
  %3901 = vmatpush.msra.mxu0 %v3493
  %3902 = vmatpush.msra.mxu0 %v3477
  %3903 = vmatpush.msra.mxu0 %v3461
  %3904 = vmatpush.msra.mxu0 %v3445
  %3905 = vmatpush.msra.mxu0 %v3429
  %3906 = vmatpush.msra.mxu0 %v3413
  %3907 = vmatpush.msra.mxu0 %v3397
  %3908 = vmatpush.msra.mxu0 %v3381
  %3909 = vmatpush.msra.mxu0 %v3365
  %3910 = vmatpush.msra.mxu0 %v3349
  %3911 = vmatpush.msra.mxu0 %v3333
  %3912 = vmatpush.msra.mxu0 %v3317
  %3913 = vmatpush.msra.mxu0 %v3301
  %3914 = vmatpush.msra.mxu0 %v3285
  %3915 = vmatmul.f32.gmra.mxu0 %v3541
  %v3916 = vpop.f32.mrf.mxu0
  %v3917 = vadd.f32 %v3597, %v3916
  %3918 = vdwg.mxu0
  %3919 = vmatpush.msra.mxu0 %v3526
  %3920 = vmatpush.msra.mxu0 %v3510
  %3921 = vmatpush.msra.mxu0 %v3494
  %3922 = vmatpush.msra.mxu0 %v3478
  %3923 = vmatpush.msra.mxu0 %v3462
  %3924 = vmatpush.msra.mxu0 %v3446
  %3925 = vmatpush.msra.mxu0 %v3430
  %3926 = vmatpush.msra.mxu0 %v3414
  %3927 = vmatpush.msra.mxu0 %v3398
  %3928 = vmatpush.msra.mxu0 %v3382
  %3929 = vmatpush.msra.mxu0 %v3366
  %3930 = vmatpush.msra.mxu0 %v3350
  %3931 = vmatpush.msra.mxu0 %v3334
  %3932 = vmatpush.msra.mxu0 %v3318
  %3933 = vmatpush.msra.mxu0 %v3302
  %3934 = vmatpush.msra.mxu0 %v3286
  %3935 = vmatmul.f32.gmra.mxu0 %v3541
  %v3936 = vpop.f32.mrf.mxu0
  %v3937 = vadd.f32 %v3617, %v3936
  %3938 = vdwg.mxu0
  %3939 = vmatpush.msra.mxu0 %v3527
  %3940 = vmatpush.msra.mxu0 %v3511
  %3941 = vmatpush.msra.mxu0 %v3495
  %3942 = vmatpush.msra.mxu0 %v3479
  %3943 = vmatpush.msra.mxu0 %v3463
  %3944 = vmatpush.msra.mxu0 %v3447
  %3945 = vmatpush.msra.mxu0 %v3431
  %3946 = vmatpush.msra.mxu0 %v3415
  %3947 = vmatpush.msra.mxu0 %v3399
  %3948 = vmatpush.msra.mxu0 %v3383
  %3949 = vmatpush.msra.mxu0 %v3367
  %3950 = vmatpush.msra.mxu0 %v3351
  %3951 = vmatpush.msra.mxu0 %v3335
  %3952 = vmatpush.msra.mxu0 %v3319
  %3953 = vmatpush.msra.mxu0 %v3303
  %3954 = vmatpush.msra.mxu0 %v3287
  %3955 = vmatmul.f32.gmra.mxu0 %v3541
  %v3956 = vpop.f32.mrf.mxu0
  %v3957 = vadd.f32 %v3637, %v3956
  %3958 = vdwg.mxu0
  %3959 = vmatpush.msra.mxu0 %v3528
  %3960 = vmatpush.msra.mxu0 %v3512
  %3961 = vmatpush.msra.mxu0 %v3496
  %3962 = vmatpush.msra.mxu0 %v3480
  %3963 = vmatpush.msra.mxu0 %v3464
  %3964 = vmatpush.msra.mxu0 %v3448
  %3965 = vmatpush.msra.mxu0 %v3432
  %3966 = vmatpush.msra.mxu0 %v3416
  %3967 = vmatpush.msra.mxu0 %v3400
  %3968 = vmatpush.msra.mxu0 %v3384
  %3969 = vmatpush.msra.mxu0 %v3368
  %3970 = vmatpush.msra.mxu0 %v3352
  %3971 = vmatpush.msra.mxu0 %v3336
  %3972 = vmatpush.msra.mxu0 %v3320
  %3973 = vmatpush.msra.mxu0 %v3304
  %3974 = vmatpush.msra.mxu0 %v3288
  %3975 = vmatmul.f32.gmra.mxu0 %v3541
  %v3976 = vpop.f32.mrf.mxu0
  %v3977 = vadd.f32 %v3657, %v3976
  %3978 = vdwg.mxu0
  %3979 = vmatpush.msra.mxu0 %v3529
  %3980 = vmatpush.msra.mxu0 %v3513
  %3981 = vmatpush.msra.mxu0 %v3497
  %3982 = vmatpush.msra.mxu0 %v3481
  %3983 = vmatpush.msra.mxu0 %v3465
  %3984 = vmatpush.msra.mxu0 %v3449
  %3985 = vmatpush.msra.mxu0 %v3433
  %3986 = vmatpush.msra.mxu0 %v3417
  %3987 = vmatpush.msra.mxu0 %v3401
  %3988 = vmatpush.msra.mxu0 %v3385
  %3989 = vmatpush.msra.mxu0 %v3369
  %3990 = vmatpush.msra.mxu0 %v3353
  %3991 = vmatpush.msra.mxu0 %v3337
  %3992 = vmatpush.msra.mxu0 %v3321
  %3993 = vmatpush.msra.mxu0 %v3305
  %3994 = vmatpush.msra.mxu0 %v3289
  %3995 = vmatmul.f32.gmra.mxu0 %v3541
  %v3996 = vpop.f32.mrf.mxu0
  %v3997 = vadd.f32 %v3677, %v3996
  %3998 = vdwg.mxu0
  %3999 = vmatpush.msra.mxu0 %v3530
  %4000 = vmatpush.msra.mxu0 %v3514
  %4001 = vmatpush.msra.mxu0 %v3498
  %4002 = vmatpush.msra.mxu0 %v3482
  %4003 = vmatpush.msra.mxu0 %v3466
  %4004 = vmatpush.msra.mxu0 %v3450
  %4005 = vmatpush.msra.mxu0 %v3434
  %4006 = vmatpush.msra.mxu0 %v3418
  %4007 = vmatpush.msra.mxu0 %v3402
  %4008 = vmatpush.msra.mxu0 %v3386
  %4009 = vmatpush.msra.mxu0 %v3370
  %4010 = vmatpush.msra.mxu0 %v3354
  %4011 = vmatpush.msra.mxu0 %v3338
  %4012 = vmatpush.msra.mxu0 %v3322
  %4013 = vmatpush.msra.mxu0 %v3306
  %4014 = vmatpush.msra.mxu0 %v3290
  %4015 = vmatmul.f32.gmra.mxu0 %v3541
  %v4016 = vpop.f32.mrf.mxu0
  %v4017 = vadd.f32 %v3697, %v4016
  %4018 = vdwg.mxu0
  %4019 = vmatpush.msra.mxu0 %v3531
  %4020 = vmatpush.msra.mxu0 %v3515
  %4021 = vmatpush.msra.mxu0 %v3499
  %4022 = vmatpush.msra.mxu0 %v3483
  %4023 = vmatpush.msra.mxu0 %v3467
  %4024 = vmatpush.msra.mxu0 %v3451
  %4025 = vmatpush.msra.mxu0 %v3435
  %4026 = vmatpush.msra.mxu0 %v3419
  %4027 = vmatpush.msra.mxu0 %v3403
  %4028 = vmatpush.msra.mxu0 %v3387
  %4029 = vmatpush.msra.mxu0 %v3371
  %4030 = vmatpush.msra.mxu0 %v3355
  %4031 = vmatpush.msra.mxu0 %v3339
  %4032 = vmatpush.msra.mxu0 %v3323
  %4033 = vmatpush.msra.mxu0 %v3307
  %4034 = vmatpush.msra.mxu0 %v3291
  %4035 = vmatmul.f32.gmra.mxu0 %v3541
  %v4036 = vpop.f32.mrf.mxu0
  %v4037 = vadd.f32 %v3717, %v4036
  %4038 = vdwg.mxu0
  %4039 = vmatpush.msra.mxu0 %v3532
  %4040 = vmatpush.msra.mxu0 %v3516
  %4041 = vmatpush.msra.mxu0 %v3500
  %4042 = vmatpush.msra.mxu0 %v3484
  %4043 = vmatpush.msra.mxu0 %v3468
  %4044 = vmatpush.msra.mxu0 %v3452
  %4045 = vmatpush.msra.mxu0 %v3436
  %4046 = vmatpush.msra.mxu0 %v3420
  %4047 = vmatpush.msra.mxu0 %v3404
  %4048 = vmatpush.msra.mxu0 %v3388
  %4049 = vmatpush.msra.mxu0 %v3372
  %4050 = vmatpush.msra.mxu0 %v3356
  %4051 = vmatpush.msra.mxu0 %v3340
  %4052 = vmatpush.msra.mxu0 %v3324
  %4053 = vmatpush.msra.mxu0 %v3308
  %4054 = vmatpush.msra.mxu0 %v3292
  %4055 = vmatmul.f32.gmra.mxu0 %v3541
  %v4056 = vpop.f32.mrf.mxu0
  %v4057 = vadd.f32 %v3737, %v4056
  %4058 = vdwg.mxu0
  %4059 = vmatpush.msra.mxu0 %v3533
  %4060 = vmatpush.msra.mxu0 %v3517
  %4061 = vmatpush.msra.mxu0 %v3501
  %4062 = vmatpush.msra.mxu0 %v3485
  %4063 = vmatpush.msra.mxu0 %v3469
  %4064 = vmatpush.msra.mxu0 %v3453
  %4065 = vmatpush.msra.mxu0 %v3437
  %4066 = vmatpush.msra.mxu0 %v3421
  %4067 = vmatpush.msra.mxu0 %v3405
  %4068 = vmatpush.msra.mxu0 %v3389
  %4069 = vmatpush.msra.mxu0 %v3373
  %4070 = vmatpush.msra.mxu0 %v3357
  %4071 = vmatpush.msra.mxu0 %v3341
  %4072 = vmatpush.msra.mxu0 %v3325
  %4073 = vmatpush.msra.mxu0 %v3309
  %4074 = vmatpush.msra.mxu0 %v3293
  %4075 = vmatmul.f32.gmra.mxu0 %v3541
  %v4076 = vpop.f32.mrf.mxu0
  %v4077 = vadd.f32 %v3757, %v4076
  %4078 = vdwg.mxu0
  %4079 = vmatpush.msra.mxu0 %v3534
  %4080 = vmatpush.msra.mxu0 %v3518
  %4081 = vmatpush.msra.mxu0 %v3502
  %4082 = vmatpush.msra.mxu0 %v3486
  %4083 = vmatpush.msra.mxu0 %v3470
  %4084 = vmatpush.msra.mxu0 %v3454
  %4085 = vmatpush.msra.mxu0 %v3438
  %4086 = vmatpush.msra.mxu0 %v3422
  %4087 = vmatpush.msra.mxu0 %v3406
  %4088 = vmatpush.msra.mxu0 %v3390
  %4089 = vmatpush.msra.mxu0 %v3374
  %4090 = vmatpush.msra.mxu0 %v3358
  %4091 = vmatpush.msra.mxu0 %v3342
  %4092 = vmatpush.msra.mxu0 %v3326
  %4093 = vmatpush.msra.mxu0 %v3310
  %4094 = vmatpush.msra.mxu0 %v3294
  %4095 = vmatmul.f32.gmra.mxu0 %v3541
  %v4096 = vpop.f32.mrf.mxu0
  %v4097 = vadd.f32 %v3777, %v4096
  %4098 = vdwg.mxu0
  %4099 = vmatpush.msra.mxu0 %v3535
  %4100 = vmatpush.msra.mxu0 %v3519
  %4101 = vmatpush.msra.mxu0 %v3503
  %4102 = vmatpush.msra.mxu0 %v3487
  %4103 = vmatpush.msra.mxu0 %v3471
  %4104 = vmatpush.msra.mxu0 %v3455
  %4105 = vmatpush.msra.mxu0 %v3439
  %4106 = vmatpush.msra.mxu0 %v3423
  %4107 = vmatpush.msra.mxu0 %v3407
  %4108 = vmatpush.msra.mxu0 %v3391
  %4109 = vmatpush.msra.mxu0 %v3375
  %4110 = vmatpush.msra.mxu0 %v3359
  %4111 = vmatpush.msra.mxu0 %v3343
  %4112 = vmatpush.msra.mxu0 %v3327
  %4113 = vmatpush.msra.mxu0 %v3311
  %4114 = vmatpush.msra.mxu0 %v3295
  %4115 = vmatmul.f32.gmra.mxu0 %v3541
  %v4116 = vpop.f32.mrf.mxu0
  %v4117 = vadd.f32 %v3797, %v4116
  %4118 = vdwg.mxu0
  %4119 = vmatpush.msra.mxu0 %v3536
  %4120 = vmatpush.msra.mxu0 %v3520
  %4121 = vmatpush.msra.mxu0 %v3504
  %4122 = vmatpush.msra.mxu0 %v3488
  %4123 = vmatpush.msra.mxu0 %v3472
  %4124 = vmatpush.msra.mxu0 %v3456
  %4125 = vmatpush.msra.mxu0 %v3440
  %4126 = vmatpush.msra.mxu0 %v3424
  %4127 = vmatpush.msra.mxu0 %v3408
  %4128 = vmatpush.msra.mxu0 %v3392
  %4129 = vmatpush.msra.mxu0 %v3376
  %4130 = vmatpush.msra.mxu0 %v3360
  %4131 = vmatpush.msra.mxu0 %v3344
  %4132 = vmatpush.msra.mxu0 %v3328
  %4133 = vmatpush.msra.mxu0 %v3312
  %4134 = vmatpush.msra.mxu0 %v3296
  %4135 = vmatmul.f32.gmra.mxu0 %v3541
  %v4136 = vpop.f32.mrf.mxu0
  %v4137 = vadd.f32 %v3817, %v4136
  %4138 = vdwg.mxu0
  %4139 = vmatpush.msra.mxu0 %v3537
  %4140 = vmatpush.msra.mxu0 %v3521
  %4141 = vmatpush.msra.mxu0 %v3505
  %4142 = vmatpush.msra.mxu0 %v3489
  %4143 = vmatpush.msra.mxu0 %v3473
  %4144 = vmatpush.msra.mxu0 %v3457
  %4145 = vmatpush.msra.mxu0 %v3441
  %4146 = vmatpush.msra.mxu0 %v3425
  %4147 = vmatpush.msra.mxu0 %v3409
  %4148 = vmatpush.msra.mxu0 %v3393
  %4149 = vmatpush.msra.mxu0 %v3377
  %4150 = vmatpush.msra.mxu0 %v3361
  %4151 = vmatpush.msra.mxu0 %v3345
  %4152 = vmatpush.msra.mxu0 %v3329
  %4153 = vmatpush.msra.mxu0 %v3313
  %4154 = vmatpush.msra.mxu0 %v3297
  %4155 = vmatmul.f32.gmra.mxu0 %v3541
  %v4156 = vpop.f32.mrf.mxu0
  %v4157 = vadd.f32 %v3837, %v4156
  %4158 = vdwg.mxu0
  %4159 = vmatpush.msra.mxu0 %v3538
  %4160 = vmatpush.msra.mxu0 %v3522
  %4161 = vmatpush.msra.mxu0 %v3506
  %4162 = vmatpush.msra.mxu0 %v3490
  %4163 = vmatpush.msra.mxu0 %v3474
  %4164 = vmatpush.msra.mxu0 %v3458
  %4165 = vmatpush.msra.mxu0 %v3442
  %4166 = vmatpush.msra.mxu0 %v3426
  %4167 = vmatpush.msra.mxu0 %v3410
  %4168 = vmatpush.msra.mxu0 %v3394
  %4169 = vmatpush.msra.mxu0 %v3378
  %4170 = vmatpush.msra.mxu0 %v3362
  %4171 = vmatpush.msra.mxu0 %v3346
  %4172 = vmatpush.msra.mxu0 %v3330
  %4173 = vmatpush.msra.mxu0 %v3314
  %4174 = vmatpush.msra.mxu0 %v3298
  %4175 = vmatmul.f32.gmra.mxu0 %v3541
  %v4176 = vpop.f32.mrf.mxu0
  %v4177 = vadd.f32 %v3857, %v4176
  %4178 = vdwg.mxu0
  %4179 = vmatpush.msra.mxu0 %v3539
  %4180 = vmatpush.msra.mxu0 %v3523
  %4181 = vmatpush.msra.mxu0 %v3507
  %4182 = vmatpush.msra.mxu0 %v3491
  %4183 = vmatpush.msra.mxu0 %v3475
  %4184 = vmatpush.msra.mxu0 %v3459
  %4185 = vmatpush.msra.mxu0 %v3443
  %4186 = vmatpush.msra.mxu0 %v3427
  %4187 = vmatpush.msra.mxu0 %v3411
  %4188 = vmatpush.msra.mxu0 %v3395
  %4189 = vmatpush.msra.mxu0 %v3379
  %4190 = vmatpush.msra.mxu0 %v3363
  %4191 = vmatpush.msra.mxu0 %v3347
  %4192 = vmatpush.msra.mxu0 %v3331
  %4193 = vmatpush.msra.mxu0 %v3315
  %4194 = vmatpush.msra.mxu0 %v3299
  %4195 = vmatmul.f32.gmra.mxu0 %v3541
  %v4196 = vpop.f32.mrf.mxu0
  %v4197 = vadd.f32 %v3877, %v4196
  %4198 = vdwg.mxu0
  %4199 = vmatpush.msra.mxu0 %v3540
  %4200 = vmatpush.msra.mxu0 %v3524
  %4201 = vmatpush.msra.mxu0 %v3508
  %4202 = vmatpush.msra.mxu0 %v3492
  %4203 = vmatpush.msra.mxu0 %v3476
  %4204 = vmatpush.msra.mxu0 %v3460
  %4205 = vmatpush.msra.mxu0 %v3444
  %4206 = vmatpush.msra.mxu0 %v3428
  %4207 = vmatpush.msra.mxu0 %v3412
  %4208 = vmatpush.msra.mxu0 %v3396
  %4209 = vmatpush.msra.mxu0 %v3380
  %4210 = vmatpush.msra.mxu0 %v3364
  %4211 = vmatpush.msra.mxu0 %v3348
  %4212 = vmatpush.msra.mxu0 %v3332
  %4213 = vmatpush.msra.mxu0 %v3316
  %4214 = vmatpush.msra.mxu0 %v3300
  %4215 = vmatmul.f32.gmra.mxu0 %v3541
  %v4216 = vpop.f32.mrf.mxu0
  %v4217 = vadd.f32 %v3897, %v4216
  %4218 = vdwg.mxu0
  %4219 = vst [vmem:[%s4] sm:$0xff] %v3917
  %4220 = vst [vmem:[%s4 + $0x8] sm:$0xff] %v3937
  %4221 = vst [vmem:[%s4 + $0x10] sm:$0xff] %v3957
  %4222 = vst [vmem:[%s4 + $0x18] sm:$0xff] %v3977
  %4223 = vst [vmem:[%s4 + $0x20] sm:$0xff] %v3997
  %4224 = vst [vmem:[%s4 + $0x28] sm:$0xff] %v4017
  %4225 = vst [vmem:[%s4 + $0x30] sm:$0xff] %v4037
  %4226 = vst [vmem:[%s4 + $0x38] sm:$0xff] %v4057
  %4227 = vst [vmem:[%s4 + $0x40] sm:$0xff] %v4077
  %4228 = vst [vmem:[%s4 + $0x48] sm:$0xff] %v4097
  %4229 = vst [vmem:[%s4 + $0x50] sm:$0xff] %v4117
  %4230 = vst [vmem:[%s4 + $0x58] sm:$0xff] %v4137
  %4231 = vst [vmem:[%s4 + $0x60] sm:$0xff] %v4157
  %4232 = vst [vmem:[%s4 + $0x68] sm:$0xff] %v4177
  %4233 = vst [vmem:[%s4 + $0x70] sm:$0xff] %v4197
  %4234 = vst [vmem:[%s4 + $0x78] sm:$0xff] %v4217
  // Predicated region
  $region18: #{mega_nerf_forward.1} parent=0 // pred_check
    _
  $region19: #{mega_nerf_forward.1} parent=0 // pred_check_branch
    %4236 = sbr.rel (0) target = $region21
  $region20: #{mega_nerf_forward.1} parent=0 // pred_region
    _
  $region21: #{mega_nerf_forward.1} parent=0 // pred_fallthru
    _
  // Predicated region
  $region22: #{mega_nerf_forward.1} parent=0 // pred_check
    _
  $region23: #{mega_nerf_forward.1} parent=0 // pred_check_branch
    %4238 = sbr.rel (0) target = $region25
  $region24: #{mega_nerf_forward.1} parent=0 // pred_region
    _
  $region25: #{mega_nerf_forward.1} parent=0 // pred_fallthru
    _

</llo_original>
